<compile_context>
chip_gen: v7x
topology: tpu7x:2x2x1
jax: 0.10.0
libtpu: 0.0.40
codegen_flags: <defaults>
</compile_context>

<pallas_src>
import functools
import math

import numpy as np

import jax
import jax.numpy as jnp
from jax.experimental import pallas as pl
from jax.experimental.pallas import tpu as pltpu


# ----------------------------------------------------------------------------- kernel
def _lenet_kernel(lhs1_ref,   # (24*Bt, 140) bf16  im2col of the input, rows (g=2s+di, u, b)
                  w1b_ref,    # (140, 512)   bf16  banded conv1 weight, 256-lane dj blocks
                  b1t_ref,    # (1, 256)     f32   conv1 bias tiled over the 12 pooled cols
                  w2b_ref,    # (1280, 512)  bf16  banded conv2 weight, 256-lane ej blocks
                  b2t_ref,    # (1, 256)     f32   conv2 bias tiled over the 4 pooled cols
                  whead_ref,  # (4, 256, 128) bf16 folded bottleneck*BN*fc weight per p2 block
                  bhead_ref,  # (1, 128)     f32   folded head bias (classes padded to 128)
                  out_ref,    # (Bt, 128)    f32   lane-dense logits (cols >= 10 are zero)
                  lhs2_ref):  # scratch VMEM (8*Bt, 1280) bf16: conv2 im2col
    Bt = out_ref.shape[0]
    n1 = 6 * Bt          # rows per (row-phase, col-phase) group of the conv1 result

    # ---- conv1 (+ fused 2x2 max-pool phase extraction): one MXU matmul ----------------
    c1 = jnp.dot(lhs1_ref[...], w1b_ref[...],
                 preferred_element_type=jnp.float32)              # (24*Bt, 512)

    def c1_phase(g, dj):                                          # g = 2*s + di
        return c1[g * n1:(g + 1) * n1, dj * 256:(dj + 1) * 256]

    pooled1 = []  # pooled1[s][u*Bt + b, w*20 + ic] = relu(maxpool(conv1)+b1)[b, ic, 2u+s, w]
    for s in (0, 1):
        m = jnp.maximum(jnp.maximum(c1_phase(2 * s + 0, 0), c1_phase(2 * s + 0, 1)),
                        jnp.maximum(c1_phase(2 * s + 1, 0), c1_phase(2 * s + 1, 1)))
        pooled1.append(jnp.maximum(m + b1t_ref[...], 0.0).astype(jnp.bfloat16))  # (6Bt, 256)

    # ---- conv2 im2col: 10 contiguous (4*Bt, 256) aligned stores, no zero-fill ----------
    for ei in (0, 1):                      # pool2 row phase
        for ki in range(5):                # conv2 row tap
            s = (ei + ki) % 2
            off = (ei + ki) // 2
            lhs2_ref[ei * 4 * Bt:(ei + 1) * 4 * Bt, ki * 256:(ki + 1) * 256] = \
                pooled1[s][off * Bt:(off + 4) * Bt, :]

    # ---- conv2 (+ fused 2x2 max-pool phase extraction): one MXU matmul -----------------
    c2 = jnp.dot(lhs2_ref[...], w2b_ref[...],
                 preferred_element_type=jnp.float32)              # (8*Bt, 512)
    m2 = jnp.maximum(c2[0:4 * Bt, :], c2[4 * Bt:8 * Bt, :])       # max over row phase ei
    m2 = jnp.maximum(m2[:, 0:256], m2[:, 256:512])                # max over col phase ej
    pooled2 = jnp.maximum(m2 + b2t_ref[...], 0.0).astype(jnp.bfloat16)  # (4Bt, 256), rows (p2, b)

    # ---- folded head (bottleneck -> BN -> dropout -> fc): 4 accumulating matmuls -------
    acc = bhead_ref[...] + jnp.dot(pooled2[0:Bt, :], whead_ref[0],
                                   preferred_element_type=jnp.float32)
    for p2 in range(1, 4):
        acc = acc + jnp.dot(pooled2[p2 * Bt:(p2 + 1) * Bt, :], whead_ref[p2],
                            preferred_element_type=jnp.float32)
    out_ref[...] = acc


# ------------------------------------------------------------------- parameter prep
def init_params(key):
    """Synthetic parameters with the exact nn.Module shapes (eval-mode BN buffers)."""
    ks = jax.random.split(key, 12)

    def uni(k, shape, bound):
        return jax.random.uniform(k, shape, jnp.float32, -bound, bound)

    return {
        "conv1_w": uni(ks[0], (20, 1, 5, 5), 1.0 / 5.0),
        "conv1_b": uni(ks[1], (20,), 1.0 / 5.0),
        "conv2_w": uni(ks[2], (50, 20, 5, 5), 1.0 / math.sqrt(20 * 25)),
        "conv2_b": uni(ks[3], (50,), 1.0 / math.sqrt(20 * 25)),
        "bottleneck_w": jax.random.normal(ks[4], (256, 800), jnp.float32)
                        * math.sqrt(2.0 / (800 + 256)),
        "bottleneck_b": jnp.zeros((256,), jnp.float32),
        "fc_w": jax.random.normal(ks[5], (10, 256), jnp.float32)
                * math.sqrt(2.0 / (256 + 10)),
        "fc_b": jnp.zeros((10,), jnp.float32),
        "bn_gamma": 1.0 + 0.02 * jax.random.normal(ks[6], (256,), jnp.float32),
        "bn_beta": jnp.zeros((256,), jnp.float32),
        "bn_mean": 0.1 * jax.random.normal(ks[7], (256,), jnp.float32),
        "bn_var": jax.random.uniform(ks[8], (256,), jnp.float32, 0.5, 1.5),
    }


def prepare_kernel_params(params, eps=1e-5):
    """One-time (outside the jitted forward) folding of PyTorch-layout weights into the
    banded / phase-folded, 256-lane-padded, bf16 matrices the kernel consumes."""
    W1 = np.asarray(params["conv1_w"], np.float32)
    b1 = np.asarray(params["conv1_b"], np.float32)
    W2 = np.asarray(params["conv2_w"], np.float32)
    b2 = np.asarray(params["conv2_b"], np.float32)
    Wb = np.asarray(params["bottleneck_w"], np.float32)
    bb = np.asarray(params["bottleneck_b"], np.float32)
    Wf = np.asarray(params["fc_w"], np.float32)
    bf = np.asarray(params["fc_b"], np.float32)
    gamma = np.asarray(params["bn_gamma"], np.float32)
    beta = np.asarray(params["bn_beta"], np.float32)
    mean = np.asarray(params["bn_mean"], np.float32)
    var = np.asarray(params["bn_var"], np.float32)

    # conv1: K = ki*28 + jin ; N = dj*256 + v*20 + oc   (lanes 240..255 of each block zero)
    w1b = np.zeros((5 * 28, 2 * 256), np.float32)
    for dj in range(2):
        for v in range(12):
            for ki in range(5):
                for kj in range(5):
                    jin = 2 * v + dj + kj
                    w1b[ki * 28 + jin,
                        dj * 256 + v * 20: dj * 256 + v * 20 + 20] = W1[:, 0, ki, kj]

    # conv2: K = ki*256 + w*20 + ic ; N = ej*256 + v2*50 + oc2  (lanes 200..255 zero)
    w2b = np.zeros((5 * 256, 2 * 256), np.float32)
    for ej in range(2):
        for v2 in range(4):
            for ki in range(5):
                for kj in range(5):
                    w = 2 * v2 + ej + kj
                    w2b[ki * 256 + w * 20: ki * 256 + w * 20 + 20,
                        ej * 256 + v2 * 50: ej * 256 + v2 * 50 + 50] = W2[:, :, ki, kj].T

    b1t = np.zeros((1, 256), np.float32); b1t[0, :240] = np.tile(b1, 12)
    b2t = np.zeros((1, 256), np.float32); b2t[0, :200] = np.tile(b2, 4)

    # Fold bottleneck -> BN(eval) -> fc into a single (800,10) weight + (10,) bias, then split
    # per pooled-row block p2 and remap (c,h,w)-flatten order -> (v2*50+oc2) lane order.
    scale = gamma / np.sqrt(var + eps)
    shift = beta - mean * scale
    whead256 = scale[:, None] * Wf.T               # (256, 10)
    wfull = Wb.T @ whead256                        # (800, 10)
    bfull = bb @ whead256 + shift @ Wf.T + bf      # (10,)

    wf_chw = wfull.reshape(50, 4, 4, 10)           # (oc2, p2, v2, class)
    whead = np.zeros((4, 256, 128), np.float32)
    for p2 in range(4):
        whead[p2, :200, :10] = wf_chw[:, p2, :, :].transpose(1, 0, 2).reshape(200, 10)
    bhead = np.zeros((1, 128), np.float32); bhead[0, :10] = bfull

    return {
        "w1b": jnp.asarray(w1b, jnp.bfloat16),
        "b1t": jnp.asarray(b1t, jnp.float32),
        "w2b": jnp.asarray(w2b, jnp.bfloat16),
        "b2t": jnp.asarray(b2t, jnp.float32),
        "whead": jnp.asarray(whead, jnp.bfloat16),
        "bhead": jnp.asarray(bhead, jnp.float32),
    }


# ----------------------------------------------------------------------------- forward
@functools.partial(jax.jit, static_argnames=("num_classes", "batch_tile"))
def lenet_forward(x, kparams, num_classes=10, batch_tile=16):
    """x: (B, 1, 28, 28) float32. Returns (B, num_classes) logits (eval mode)."""
    B = x.shape[0]
    Bt = batch_tile                                  # multiple of 16 keeps all slices aligned
    nt = -(-B // Bt)
    B_pad = nt * Bt

    xs = x[:, 0].astype(jnp.float32)                 # (B, 28, 28)
    if B_pad != B:
        xs = jnp.pad(xs, ((0, B_pad - B), (0, 0), (0, 0)))
    xs_t = xs.reshape(nt, Bt, 28, 28)

    # im2col of the INPUT fused with the pool-phase decomposition (pure layout plumbing,
    # done by XLA). Row order inside each batch tile: (g = 2*s + di, u, b) -> phase-major,
    # u-major, batch-minor, so the kernel's phase slices are contiguous and aligned.
    groups = []
    for s in (0, 1):             # pooled-output row parity
        for di in (0, 1):        # pooling-window row phase
            taps = []
            for ki in range(5):  # conv1 row tap
                r0 = 2 * s + di + ki
                taps.append(xs_t[:, :, r0:r0 + 21:4, :])         # (nt, Bt, 6, 28)
            groups.append(jnp.concatenate(taps, axis=-1))        # (nt, Bt, 6, 140)
    lhs1 = jnp.stack(groups, axis=1)                             # (nt, 4, Bt, 6, 140)
    lhs1 = lhs1.transpose(0, 1, 3, 2, 4).reshape(nt * 24 * Bt, 140)
    lhs1 = lhs1.astype(jnp.bfloat16)

    out = pl.pallas_call(
        _lenet_kernel,
        out_shape=jax.ShapeDtypeStruct((B_pad, 128), jnp.float32),   # lane-dense padded logits
        grid=(nt,),
        in_specs=[
            pl.BlockSpec((24 * Bt, 140), lambda i: (i, 0)),      # per-tile im2col (pipelined)
            pl.BlockSpec((140, 512), lambda i: (0, 0)),          # weights: constant index maps
            pl.BlockSpec((1, 256), lambda i: (0, 0)),            #   -> DMA'd once and kept
            pl.BlockSpec((1280, 512), lambda i: (0, 0)),         #      VMEM-resident across
            pl.BlockSpec((1, 256), lambda i: (0, 0)),            #      all batch tiles
            pl.BlockSpec((4, 256, 128), lambda i: (0, 0, 0)),
            pl.BlockSpec((1, 128), lambda i: (0, 0)),
        ],
        out_specs=pl.BlockSpec((Bt, 128), lambda i: (i, 0)),
        scratch_shapes=[pltpu.VMEM((8 * Bt, 1280), jnp.bfloat16)],
        compiler_params=pltpu.CompilerParams(
            dimension_semantics=("parallel",)),
    )(lhs1, kparams["w1b"], kparams["b1t"], kparams["w2b"], kparams["b2t"],
      kparams["whead"], kparams["bhead"])
    return out[:B, :num_classes]


# --------------------------------------------------------------------------- reference
def lenet_reference(x, params, eps=1e-5):
    hi = jax.lax.Precision.HIGHEST

    def maxpool2(t):
        return jax.lax.reduce_window(t, -jnp.inf, jax.lax.max,
                                     (1, 1, 2, 2), (1, 1, 2, 2), "VALID")

    o1 = jax.lax.conv_general_dilated(x, params["conv1_w"], (1, 1), "VALID",
                                      dimension_numbers=("NCHW", "OIHW", "NCHW"),
                                      precision=hi)
    o1 = o1 + params["conv1_b"][None, :, None, None]
    a1 = jnp.maximum(maxpool2(o1), 0.0)
    o2 = jax.lax.conv_general_dilated(a1, params["conv2_w"], (1, 1), "VALID",
                                      dimension_numbers=("NCHW", "OIHW", "NCHW"),
                                      precision=hi)
    o2 = o2 + params["conv2_b"][None, :, None, None]
    a2 = jnp.maximum(maxpool2(o2), 0.0)
    f = a2.reshape(a2.shape[0], -1)
    z = jnp.dot(f, params["bottleneck_w"].T, precision=hi) + params["bottleneck_b"]
    scale = params["bn_gamma"] * jax.lax.rsqrt(params["bn_var"] + eps)
    y = (z - params["bn_mean"]) * scale + params["bn_beta"]
    return jnp.dot(y, params["fc_w"].T, precision=hi) + params["fc_b"]


if __name__ == "__main__":
    B = 32                         # two batch tiles of 16 -> exercises the grid + resident weights
    key = jax.random.PRNGKey(0)
    kx, kp = jax.random.split(key)

    params = init_params(kp)
    kparams = prepare_kernel_params(params)
    x = jax.random.normal(kx, (B, 1, 28, 28), jnp.float32)

    out = jax.block_until_ready(lenet_forward(x, kparams))

    assert out.shape == (B, 10)
    assert bool(jnp.all(jnp.isfinite(out)))

    ref = jax.block_until_ready(lenet_reference(x, params))
    np.testing.assert_allclose(np.asarray(out), np.asarray(ref), rtol=5e-2, atol=8e-2)

    print("KERNEL_OK")
</pallas_src>

<mosaic_0001>
module attributes {stable_mosaic.version = 11 : i64} {
  func.func @_lenet_kernel(%arg0: i32, %arg1: memref<384x140xbf16, #tpu.memory_space<vmem>>, %arg2: memref<140x512xbf16, #tpu.memory_space<vmem>>, %arg3: memref<1x256xf32, #tpu.memory_space<vmem>>, %arg4: memref<1280x512xbf16, #tpu.memory_space<vmem>>, %arg5: memref<1x256xf32, #tpu.memory_space<vmem>>, %arg6: memref<4x256x128xbf16, #tpu.memory_space<vmem>>, %arg7: memref<1x128xf32, #tpu.memory_space<vmem>>, %arg8: memref<16x128xf32, #tpu.memory_space<vmem>>, %arg9: memref<128x1280xbf16, #tpu.memory_space<vmem>>) attributes {dimension_semantics = [#tpu.dimension_semantics<parallel>], iteration_bounds = array<i64: 2>, scalar_prefetch = 0 : i64, scratch_operands = 1 : i64, tpu.core_type = #tpu.core_type<tc>, window_params = [{transform_indices = @transform_0, window_bounds = array<i64: 384, 140>}, {pipeline_mode = #tpu.pipeline_mode<synchronous>, transform_indices = @transform_1, window_bounds = array<i64: 140, 512>}, {pipeline_mode = #tpu.pipeline_mode<synchronous>, transform_indices = @transform_2, window_bounds = array<i64: 1, 256>}, {pipeline_mode = #tpu.pipeline_mode<synchronous>, transform_indices = @transform_3, window_bounds = array<i64: 1280, 512>}, {pipeline_mode = #tpu.pipeline_mode<synchronous>, transform_indices = @transform_4, window_bounds = array<i64: 1, 256>}, {pipeline_mode = #tpu.pipeline_mode<synchronous>, transform_indices = @transform_5, window_bounds = array<i64: 4, 256, 128>}, {pipeline_mode = #tpu.pipeline_mode<synchronous>, transform_indices = @transform_6, window_bounds = array<i64: 1, 128>}, {transform_indices = @transform_7, window_bounds = array<i64: 16, 128>}]} {
    %c0 = arith.constant 0 : index
    %c0_0 = arith.constant 0 : index
    %0 = vector.load %arg1[%c0, %c0_0] : memref<384x140xbf16, #tpu.memory_space<vmem>>, vector<384x140xbf16>
    %c0_1 = arith.constant 0 : index
    %c0_2 = arith.constant 0 : index
    %1 = vector.load %arg2[%c0_1, %c0_2] : memref<140x512xbf16, #tpu.memory_space<vmem>>, vector<140x512xbf16>
    %cst = arith.constant dense<0.000000e+00> : vector<384x512xf32>
    %2 = tpu.matmul %0, %1, %cst {dimension_numbers = #tpu.dot_dimension_numbers<[1], [0], [0], [1], [0, 0, 1, 1], [], []>} : vector<384x140xbf16>, vector<140x512xbf16>, vector<384x512xf32> -> vector<384x512xf32>
    %3 = vector.extract_strided_slice %2 {offsets = [0, 0], sizes = [96, 256], strides = [1, 1]} : vector<384x512xf32> to vector<96x256xf32>
    %4 = vector.extract_strided_slice %2 {offsets = [0, 256], sizes = [96, 256], strides = [1, 1]} : vector<384x512xf32> to vector<96x256xf32>
    %5 = arith.maximumf %3, %4 : vector<96x256xf32>
    %6 = vector.extract_strided_slice %2 {offsets = [96, 0], sizes = [96, 256], strides = [1, 1]} : vector<384x512xf32> to vector<96x256xf32>
    %7 = vector.extract_strided_slice %2 {offsets = [96, 256], sizes = [96, 256], strides = [1, 1]} : vector<384x512xf32> to vector<96x256xf32>
    %8 = arith.maximumf %6, %7 : vector<96x256xf32>
    %9 = arith.maximumf %5, %8 : vector<96x256xf32>
    %c0_3 = arith.constant 0 : index
    %c0_4 = arith.constant 0 : index
    %10 = vector.load %arg3[%c0_3, %c0_4] : memref<1x256xf32, #tpu.memory_space<vmem>>, vector<1x256xf32>
    %11 = vector.broadcast %10 : vector<1x256xf32> to vector<96x256xf32>
    %12 = arith.addf %9, %11 : vector<96x256xf32>
    %cst_5 = arith.constant 0.000000e+00 : f32
    %13 = vector.broadcast %cst_5 : f32 to vector<96x256xf32>
    %14 = arith.maximumf %12, %13 : vector<96x256xf32>
    %15 = arith.truncf %14 : vector<96x256xf32> to vector<96x256xbf16>
    %16 = vector.extract_strided_slice %2 {offsets = [192, 0], sizes = [96, 256], strides = [1, 1]} : vector<384x512xf32> to vector<96x256xf32>
    %17 = vector.extract_strided_slice %2 {offsets = [192, 256], sizes = [96, 256], strides = [1, 1]} : vector<384x512xf32> to vector<96x256xf32>
    %18 = arith.maximumf %16, %17 : vector<96x256xf32>
    %19 = vector.extract_strided_slice %2 {offsets = [288, 0], sizes = [96, 256], strides = [1, 1]} : vector<384x512xf32> to vector<96x256xf32>
    %20 = vector.extract_strided_slice %2 {offsets = [288, 256], sizes = [96, 256], strides = [1, 1]} : vector<384x512xf32> to vector<96x256xf32>
    %21 = arith.maximumf %19, %20 : vector<96x256xf32>
    %22 = arith.maximumf %18, %21 : vector<96x256xf32>
    %c0_6 = arith.constant 0 : index
    %c0_7 = arith.constant 0 : index
    %23 = vector.load %arg3[%c0_6, %c0_7] : memref<1x256xf32, #tpu.memory_space<vmem>>, vector<1x256xf32>
    %24 = vector.broadcast %23 : vector<1x256xf32> to vector<96x256xf32>
    %25 = arith.addf %22, %24 : vector<96x256xf32>
    %cst_8 = arith.constant 0.000000e+00 : f32
    %26 = vector.broadcast %cst_8 : f32 to vector<96x256xf32>
    %27 = arith.maximumf %25, %26 : vector<96x256xf32>
    %28 = arith.truncf %27 : vector<96x256xf32> to vector<96x256xbf16>
    %29 = vector.extract_strided_slice %15 {offsets = [0, 0], sizes = [64, 256], strides = [1, 1]} : vector<96x256xbf16> to vector<64x256xbf16>
    %c0_9 = arith.constant 0 : index
    %c0_10 = arith.constant 0 : index
    %30 = vector.load %arg9[%c0_9, %c0_10] : memref<128x1280xbf16, #tpu.memory_space<vmem>>, vector<64x256xbf16>
    tpu.vector_store %arg9[%c0_9, %c0_10], %29 {strides = array<i32>} : memref<128x1280xbf16, #tpu.memory_space<vmem>>, vector<64x256xbf16>,
    %31 = vector.extract_strided_slice %28 {offsets = [0, 0], sizes = [64, 256], strides = [1, 1]} : vector<96x256xbf16> to vector<64x256xbf16>
    %c0_11 = arith.constant 0 : index
    %c256 = arith.constant 256 : index
    %32 = vector.load %arg9[%c0_11, %c256] : memref<128x1280xbf16, #tpu.memory_space<vmem>>, vector<64x256xbf16>
    tpu.vector_store %arg9[%c0_11, %c256], %31 {strides = array<i32>} : memref<128x1280xbf16, #tpu.memory_space<vmem>>, vector<64x256xbf16>,
    %33 = vector.extract_strided_slice %15 {offsets = [16, 0], sizes = [64, 256], strides = [1, 1]} : vector<96x256xbf16> to vector<64x256xbf16>
    %c0_12 = arith.constant 0 : index
    %c512 = arith.constant 512 : index
    %34 = vector.load %arg9[%c0_12, %c512] : memref<128x1280xbf16, #tpu.memory_space<vmem>>, vector<64x256xbf16>
    tpu.vector_store %arg9[%c0_12, %c512], %33 {strides = array<i32>} : memref<128x1280xbf16, #tpu.memory_space<vmem>>, vector<64x256xbf16>,
    %35 = vector.extract_strided_slice %28 {offsets = [16, 0], sizes = [64, 256], strides = [1, 1]} : vector<96x256xbf16> to vector<64x256xbf16>
    %c0_13 = arith.constant 0 : index
    %c768 = arith.constant 768 : index
    %36 = vector.load %arg9[%c0_13, %c768] : memref<128x1280xbf16, #tpu.memory_space<vmem>>, vector<64x256xbf16>
    tpu.vector_store %arg9[%c0_13, %c768], %35 {strides = array<i32>} : memref<128x1280xbf16, #tpu.memory_space<vmem>>, vector<64x256xbf16>,
    %37 = vector.extract_strided_slice %15 {offsets = [32, 0], sizes = [64, 256], strides = [1, 1]} : vector<96x256xbf16> to vector<64x256xbf16>
    %c0_14 = arith.constant 0 : index
    %c1024 = arith.constant 1024 : index
    %38 = vector.load %arg9[%c0_14, %c1024] : memref<128x1280xbf16, #tpu.memory_space<vmem>>, vector<64x256xbf16>
    tpu.vector_store %arg9[%c0_14, %c1024], %37 {strides = array<i32>} : memref<128x1280xbf16, #tpu.memory_space<vmem>>, vector<64x256xbf16>,
    %39 = vector.extract_strided_slice %28 {offsets = [0, 0], sizes = [64, 256], strides = [1, 1]} : vector<96x256xbf16> to vector<64x256xbf16>
    %c64 = arith.constant 64 : index
    %c0_15 = arith.constant 0 : index
    %40 = vector.load %arg9[%c64, %c0_15] : memref<128x1280xbf16, #tpu.memory_space<vmem>>, vector<64x256xbf16>
    tpu.vector_store %arg9[%c64, %c0_15], %39 {strides = array<i32>} : memref<128x1280xbf16, #tpu.memory_space<vmem>>, vector<64x256xbf16>,
    %41 = vector.extract_strided_slice %15 {offsets = [16, 0], sizes = [64, 256], strides = [1, 1]} : vector<96x256xbf16> to vector<64x256xbf16>
    %c64_16 = arith.constant 64 : index
    %c256_17 = arith.constant 256 : index
    %42 = vector.load %arg9[%c64_16, %c256_17] : memref<128x1280xbf16, #tpu.memory_space<vmem>>, vector<64x256xbf16>
    tpu.vector_store %arg9[%c64_16, %c256_17], %41 {strides = array<i32>} : memref<128x1280xbf16, #tpu.memory_space<vmem>>, vector<64x256xbf16>,
    %43 = vector.extract_strided_slice %28 {offsets = [16, 0], sizes = [64, 256], strides = [1, 1]} : vector<96x256xbf16> to vector<64x256xbf16>
    %c64_18 = arith.constant 64 : index
    %c512_19 = arith.constant 512 : index
    %44 = vector.load %arg9[%c64_18, %c512_19] : memref<128x1280xbf16, #tpu.memory_space<vmem>>, vector<64x256xbf16>
    tpu.vector_store %arg9[%c64_18, %c512_19], %43 {strides = array<i32>} : memref<128x1280xbf16, #tpu.memory_space<vmem>>, vector<64x256xbf16>,
    %45 = vector.extract_strided_slice %15 {offsets = [32, 0], sizes = [64, 256], strides = [1, 1]} : vector<96x256xbf16> to vector<64x256xbf16>
    %c64_20 = arith.constant 64 : index
    %c768_21 = arith.constant 768 : index
    %46 = vector.load %arg9[%c64_20, %c768_21] : memref<128x1280xbf16, #tpu.memory_space<vmem>>, vector<64x256xbf16>
    tpu.vector_store %arg9[%c64_20, %c768_21], %45 {strides = array<i32>} : memref<128x1280xbf16, #tpu.memory_space<vmem>>, vector<64x256xbf16>,
    %47 = vector.extract_strided_slice %28 {offsets = [32, 0], sizes = [64, 256], strides = [1, 1]} : vector<96x256xbf16> to vector<64x256xbf16>
    %c64_22 = arith.constant 64 : index
    %c1024_23 = arith.constant 1024 : index
    %48 = vector.load %arg9[%c64_22, %c1024_23] : memref<128x1280xbf16, #tpu.memory_space<vmem>>, vector<64x256xbf16>
    tpu.vector_store %arg9[%c64_22, %c1024_23], %47 {strides = array<i32>} : memref<128x1280xbf16, #tpu.memory_space<vmem>>, vector<64x256xbf16>,
    %c0_24 = arith.constant 0 : index
    %c0_25 = arith.constant 0 : index
    %49 = vector.load %arg9[%c0_24, %c0_25] : memref<128x1280xbf16, #tpu.memory_space<vmem>>, vector<128x1280xbf16>
    %c0_26 = arith.constant 0 : index
    %c0_27 = arith.constant 0 : index
    %50 = vector.load %arg4[%c0_26, %c0_27] : memref<1280x512xbf16, #tpu.memory_space<vmem>>, vector<1280x512xbf16>
    %cst_28 = arith.constant dense<0.000000e+00> : vector<128x512xf32>
    %51 = tpu.matmul %49, %50, %cst_28 {dimension_numbers = #tpu.dot_dimension_numbers<[1], [0], [0], [1], [0, 0, 1, 1], [], []>} : vector<128x1280xbf16>, vector<1280x512xbf16>, vector<128x512xf32> -> vector<128x512xf32>
    %52 = vector.extract_strided_slice %51 {offsets = [0, 0], sizes = [64, 512], strides = [1, 1]} : vector<128x512xf32> to vector<64x512xf32>
    %53 = vector.extract_strided_slice %51 {offsets = [64, 0], sizes = [64, 512], strides = [1, 1]} : vector<128x512xf32> to vector<64x512xf32>
    %54 = arith.maximumf %52, %53 : vector<64x512xf32>
    %55 = vector.extract_strided_slice %54 {offsets = [0, 0], sizes = [64, 256], strides = [1, 1]} : vector<64x512xf32> to vector<64x256xf32>
    %56 = vector.extract_strided_slice %54 {offsets = [0, 256], sizes = [64, 256], strides = [1, 1]} : vector<64x512xf32> to vector<64x256xf32>
    %57 = arith.maximumf %55, %56 : vector<64x256xf32>
    %c0_29 = arith.constant 0 : index
    %c0_30 = arith.constant 0 : index
    %58 = vector.load %arg5[%c0_29, %c0_30] : memref<1x256xf32, #tpu.memory_space<vmem>>, vector<1x256xf32>
    %59 = vector.broadcast %58 : vector<1x256xf32> to vector<64x256xf32>
    %60 = arith.addf %57, %59 : vector<64x256xf32>
    %cst_31 = arith.constant 0.000000e+00 : f32
    %61 = vector.broadcast %cst_31 : f32 to vector<64x256xf32>
    %62 = arith.maximumf %60, %61 : vector<64x256xf32>
    %63 = arith.truncf %62 : vector<64x256xf32> to vector<64x256xbf16>
    %c0_32 = arith.constant 0 : index
    %c0_33 = arith.constant 0 : index
    %64 = vector.load %arg7[%c0_32, %c0_33] : memref<1x128xf32, #tpu.memory_space<vmem>>, vector<1x128xf32>
    %65 = vector.extract_strided_slice %63 {offsets = [0, 0], sizes = [16, 256], strides = [1, 1]} : vector<64x256xbf16> to vector<16x256xbf16>
    %c0_34 = arith.constant 0 : index
    %c0_35 = arith.constant 0 : index
    %c0_36 = arith.constant 0 : index
    %66 = vector.load %arg6[%c0_34, %c0_35, %c0_36] : memref<4x256x128xbf16, #tpu.memory_space<vmem>>, vector<1x256x128xbf16>
    %67 = vector.shape_cast %66 : vector<1x256x128xbf16> to vector<256x128xbf16>
    %cst_37 = arith.constant dense<0.000000e+00> : vector<16x128xf32>
    %68 = tpu.matmul %65, %67, %cst_37 {dimension_numbers = #tpu.dot_dimension_numbers<[1], [0], [0], [1], [0, 0, 1, 1], [], []>} : vector<16x256xbf16>, vector<256x128xbf16>, vector<16x128xf32> -> vector<16x128xf32>
    %69 = vector.broadcast %64 : vector<1x128xf32> to vector<16x128xf32>
    %70 = arith.addf %69, %68 : vector<16x128xf32>
    %71 = vector.extract_strided_slice %63 {offsets = [16, 0], sizes = [16, 256], strides = [1, 1]} : vector<64x256xbf16> to vector<16x256xbf16>
    %c1 = arith.constant 1 : index
    %c0_38 = arith.constant 0 : index
    %c0_39 = arith.constant 0 : index
    %72 = vector.load %arg6[%c1, %c0_38, %c0_39] : memref<4x256x128xbf16, #tpu.memory_space<vmem>>, vector<1x256x128xbf16>
    %73 = vector.shape_cast %72 : vector<1x256x128xbf16> to vector<256x128xbf16>
    %cst_40 = arith.constant dense<0.000000e+00> : vector<16x128xf32>
    %74 = tpu.matmul %71, %73, %cst_40 {dimension_numbers = #tpu.dot_dimension_numbers<[1], [0], [0], [1], [0, 0, 1, 1], [], []>} : vector<16x256xbf16>, vector<256x128xbf16>, vector<16x128xf32> -> vector<16x128xf32>
    %75 = arith.addf %70, %74 : vector<16x128xf32>
    %76 = vector.extract_strided_slice %63 {offsets = [32, 0], sizes = [16, 256], strides = [1, 1]} : vector<64x256xbf16> to vector<16x256xbf16>
    %c2 = arith.constant 2 : index
    %c0_41 = arith.constant 0 : index
    %c0_42 = arith.constant 0 : index
    %77 = vector.load %arg6[%c2, %c0_41, %c0_42] : memref<4x256x128xbf16, #tpu.memory_space<vmem>>, vector<1x256x128xbf16>
    %78 = vector.shape_cast %77 : vector<1x256x128xbf16> to vector<256x128xbf16>
    %cst_43 = arith.constant dense<0.000000e+00> : vector<16x128xf32>
    %79 = tpu.matmul %76, %78, %cst_43 {dimension_numbers = #tpu.dot_dimension_numbers<[1], [0], [0], [1], [0, 0, 1, 1], [], []>} : vector<16x256xbf16>, vector<256x128xbf16>, vector<16x128xf32> -> vector<16x128xf32>
    %80 = arith.addf %75, %79 : vector<16x128xf32>
    %81 = vector.extract_strided_slice %63 {offsets = [48, 0], sizes = [16, 256], strides = [1, 1]} : vector<64x256xbf16> to vector<16x256xbf16>
    %c3 = arith.constant 3 : index
    %c0_44 = arith.constant 0 : index
    %c0_45 = arith.constant 0 : index
    %82 = vector.load %arg6[%c3, %c0_44, %c0_45] : memref<4x256x128xbf16, #tpu.memory_space<vmem>>, vector<1x256x128xbf16>
    %83 = vector.shape_cast %82 : vector<1x256x128xbf16> to vector<256x128xbf16>
    %cst_46 = arith.constant dense<0.000000e+00> : vector<16x128xf32>
    %84 = tpu.matmul %81, %83, %cst_46 {dimension_numbers = #tpu.dot_dimension_numbers<[1], [0], [0], [1], [0, 0, 1, 1], [], []>} : vector<16x256xbf16>, vector<256x128xbf16>, vector<16x128xf32> -> vector<16x128xf32>
    %85 = arith.addf %80, %84 : vector<16x128xf32>
    %c0_47 = arith.constant 0 : index
    %c0_48 = arith.constant 0 : index
    %86 = vector.load %arg8[%c0_47, %c0_48] : memref<16x128xf32, #tpu.memory_space<vmem>>, vector<16x128xf32>
    tpu.vector_store %arg8[%c0_47, %c0_48], %85 {strides = array<i32>} : memref<16x128xf32, #tpu.memory_space<vmem>>, vector<16x128xf32>,
    return
  }
  func.func @transform_0(%arg0: i32) -> (i32, i32) {
    %c0_i32 = arith.constant 0 : i32
    %c0_i32_0 = arith.constant 0 : i32
    return %arg0, %c0_i32 : i32, i32
  }
  func.func @transform_1(%arg0: i32) -> (i32, i32) {
    %c0_i32 = arith.constant 0 : i32
    %c0_i32_0 = arith.constant 0 : i32
    %c0_i32_1 = arith.constant 0 : i32
    return %c0_i32, %c0_i32_0 : i32, i32
  }
  func.func @transform_2(%arg0: i32) -> (i32, i32) {
    %c0_i32 = arith.constant 0 : i32
    %c0_i32_0 = arith.constant 0 : i32
    %c0_i32_1 = arith.constant 0 : i32
    return %c0_i32, %c0_i32_0 : i32, i32
  }
  func.func @transform_3(%arg0: i32) -> (i32, i32) {
    %c0_i32 = arith.constant 0 : i32
    %c0_i32_0 = arith.constant 0 : i32
    %c0_i32_1 = arith.constant 0 : i32
    return %c0_i32, %c0_i32_0 : i32, i32
  }
  func.func @transform_4(%arg0: i32) -> (i32, i32) {
    %c0_i32 = arith.constant 0 : i32
    %c0_i32_0 = arith.constant 0 : i32
    %c0_i32_1 = arith.constant 0 : i32
    return %c0_i32, %c0_i32_0 : i32, i32
  }
  func.func @transform_5(%arg0: i32) -> (i32, i32, i32) {
    %c0_i32 = arith.constant 0 : i32
    %c0_i32_0 = arith.constant 0 : i32
    %c0_i32_1 = arith.constant 0 : i32
    %c0_i32_2 = arith.constant 0 : i32
    return %c0_i32, %c0_i32_0, %c0_i32_1 : i32, i32, i32
  }
  func.func @transform_6(%arg0: i32) -> (i32, i32) {
    %c0_i32 = arith.constant 0 : i32
    %c0_i32_0 = arith.constant 0 : i32
    %c0_i32_1 = arith.constant 0 : i32
    return %c0_i32, %c0_i32_0 : i32, i32
  }
  func.func @transform_7(%arg0: i32) -> (i32, i32) {
    %c0_i32 = arith.constant 0 : i32
    %c0_i32_0 = arith.constant 0 : i32
    return %arg0, %c0_i32 : i32, i32
  }
}

</mosaic_0001>

<llo_original>
// kernel: lenet_forward.1
$region0: #{lenet_forward.1}
  #allocation0 [shape = 'u32[]', space=smem, size = 0x4, offset = 0x4, fixed_abs, tag = 'smem constant byte address 0x4 - core index']
  #allocation1 [shape = 'u32[144,128]{1,0:T(1,128)}', space=vmem, size = 0x12000, scoped, tag = 'internal scratch']
  #allocation2 [shape = 'bf16[128,1280]{1,0:T(16,128)(2,1)}', space=vmem, size = 0x50000, scoped, tag = 'scratch operand']
  %s0 = inlined_call_operand.vmem [shape: bf16[768,140], index: 0, kind: input, shape index: {}]
  %s1 = inlined_call_operand.vmem [shape: bf16[140,512], index: 1, kind: input, shape index: {}]
  %s2 = inlined_call_operand.vmem [shape: f32[1,256], index: 2, kind: input, shape index: {}]
  %s3 = inlined_call_operand.vmem [shape: bf16[1280,512], index: 3, kind: input, shape index: {}]
  %s4 = inlined_call_operand.vmem [shape: f32[1,256], index: 4, kind: input, shape index: {}]
  %s5 = inlined_call_operand.vmem [shape: bf16[4,256,128], index: 5, kind: input, shape index: {}]
  %s6 = inlined_call_operand.vmem [shape: f32[1,128], index: 6, kind: input, shape index: {}]
  %s7 = inlined_call_operand.vmem [shape: f32[32,128], index: 7, kind: output, shape index: {}]
  %s8 = sld [smem:[#allocation0]]
  $region61: #{lenet_forward.1} parent=0
    _
  %s10 = ssub.s32 1, %s8
  %s11 = scalar_select 0, %s10, %s8
  loop: start=0, step=1, limit=4
  $region2: #{lenet_forward.1} parent=0 // loop_pre_header
    _
  $region3: #{lenet_forward.1} parent=0 // loop_header
    %s13 = sphi 0, %s17
    %p14 = scmp.ge.s32.totalorder %s13, 4
    %s23 = sphi 0, %s25
    %s26 = sphi 0, %s23
    %s27 = sphi 0, %s26
    %s43 = sphi 0, %s27
    %s47 = sphi 0, %s47
    %s49 = sphi 0, %s47
    %s50 = sphi 0, %s49
    %s64 = sphi 0, %s50
    %s68 = sphi 0, %s68
    %s70 = sphi 0, %s68
    %s71 = sphi 0, %s70
    %s85 = sphi 0, %s71
    %s89 = sphi 0, %s89
    %s91 = sphi 0, %s89
    %s92 = sphi 0, %s91
    %s106 = sphi 0, %s92
    %s110 = sphi 0, %s110
    %s112 = sphi 0, %s110
    %s113 = sphi 0, %s112
    %s127 = sphi 0, %s113
    %s131 = sphi 0, %s131
    %s133 = sphi 0, %s131
    %s134 = sphi 0, %s133
    %s148 = sphi 0, %s134
    %s152 = sphi 0, %s152
    %s154 = sphi 0, %s152
    %s155 = sphi 0, %s154
    %s169 = sphi 0, %s155
    %s175 = sphi 0, %s177
    %s178 = sphi 0, %s175
    %s179 = sphi 0, %s178
    %s195 = sphi 0, %s179
  $region4: #{lenet_forward.1} parent=0 // loop_header_branch
    %16 = sbr.rel (%p14) target = $region8
  $region5: #{lenet_forward.1} parent=0 // loop_body
    %s18 = ssub.s32 %s13, 1
    %s19 = ssub.s32 %s13, 2
    %s20 = sadd.s32 %s13, 1
    %s21 = ssub.s32 %s13, %s20
    %p22 = scmp.eq.s32.totalorder %s21, 0
    %s24 = sadd.s32 %s23, 1
    %s25 = scalar_select %p22, %s23, %s24
    %p28 = pneg %p22
    %p29 = scmp.eq.s32.totalorder %s13, 1
    %p30 = por %p28, %p29
    %p31 = scmp.ne.s32.totalorder %s23, %s26
    %p32 = scmp.eq.s32.totalorder %s13, 0
    %p33 = por %p31, %p32
    %p34 = scmp.ne.s32.totalorder %s23, %s26
    %p35 = scmp.eq.s32.totalorder %s18, 1
    %p36 = por %p34, %p35
    %p37 = scmp.ne.s32.totalorder %s26, %s27
    %p38 = scmp.eq.s32.totalorder %s18, 0
    %p39 = por %p37, %p38
    %p40 = scmp.ne.s32.totalorder %s26, %s27
    %p41 = scmp.eq.s32.totalorder %s19, 1
    %p42 = por %p40, %p41
    %p44 = scmp.ne.s32.totalorder %s27, %s43
    %p45 = scmp.eq.s32.totalorder %s19, 0
    %p46 = por %p44, %p45
    %s48 = sadd.s32 %s47, 1
    %p51 = scmp.eq.s32.totalorder %s13, 1
    %p52 = scmp.ne.s32.totalorder %s47, %s49
    %p53 = scmp.eq.s32.totalorder %s13, 0
    %p54 = por %p52, %p53
    %p55 = scmp.ne.s32.totalorder %s47, %s49
    %p56 = scmp.eq.s32.totalorder %s18, 1
    %p57 = por %p55, %p56
    %p58 = scmp.ne.s32.totalorder %s49, %s50
    %p59 = scmp.eq.s32.totalorder %s18, 0
    %p60 = por %p58, %p59
    %p61 = scmp.ne.s32.totalorder %s49, %s50
    %p62 = scmp.eq.s32.totalorder %s19, 1
    %p63 = por %p61, %p62
    %p65 = scmp.ne.s32.totalorder %s50, %s64
    %p66 = scmp.eq.s32.totalorder %s19, 0
    %p67 = por %p65, %p66
    %s69 = sadd.s32 %s68, 1
    %p72 = scmp.eq.s32.totalorder %s13, 1
    %p73 = scmp.ne.s32.totalorder %s68, %s70
    %p74 = scmp.eq.s32.totalorder %s13, 0
    %p75 = por %p73, %p74
    %p76 = scmp.ne.s32.totalorder %s68, %s70
    %p77 = scmp.eq.s32.totalorder %s18, 1
    %p78 = por %p76, %p77
    %p79 = scmp.ne.s32.totalorder %s70, %s71
    %p80 = scmp.eq.s32.totalorder %s18, 0
    %p81 = por %p79, %p80
    %p82 = scmp.ne.s32.totalorder %s70, %s71
    %p83 = scmp.eq.s32.totalorder %s19, 1
    %p84 = por %p82, %p83
    %p86 = scmp.ne.s32.totalorder %s71, %s85
    %p87 = scmp.eq.s32.totalorder %s19, 0
    %p88 = por %p86, %p87
    %s90 = sadd.s32 %s89, 1
    %p93 = scmp.eq.s32.totalorder %s13, 1
    %p94 = scmp.ne.s32.totalorder %s89, %s91
    %p95 = scmp.eq.s32.totalorder %s13, 0
    %p96 = por %p94, %p95
    %p97 = scmp.ne.s32.totalorder %s89, %s91
    %p98 = scmp.eq.s32.totalorder %s18, 1
    %p99 = por %p97, %p98
    %p100 = scmp.ne.s32.totalorder %s91, %s92
    %p101 = scmp.eq.s32.totalorder %s18, 0
    %p102 = por %p100, %p101
    %p103 = scmp.ne.s32.totalorder %s91, %s92
    %p104 = scmp.eq.s32.totalorder %s19, 1
    %p105 = por %p103, %p104
    %p107 = scmp.ne.s32.totalorder %s92, %s106
    %p108 = scmp.eq.s32.totalorder %s19, 0
    %p109 = por %p107, %p108
    %s111 = sadd.s32 %s110, 1
    %p114 = scmp.eq.s32.totalorder %s13, 1
    %p115 = scmp.ne.s32.totalorder %s110, %s112
    %p116 = scmp.eq.s32.totalorder %s13, 0
    %p117 = por %p115, %p116
    %p118 = scmp.ne.s32.totalorder %s110, %s112
    %p119 = scmp.eq.s32.totalorder %s18, 1
    %p120 = por %p118, %p119
    %p121 = scmp.ne.s32.totalorder %s112, %s113
    %p122 = scmp.eq.s32.totalorder %s18, 0
    %p123 = por %p121, %p122
    %p124 = scmp.ne.s32.totalorder %s112, %s113
    %p125 = scmp.eq.s32.totalorder %s19, 1
    %p126 = por %p124, %p125
    %p128 = scmp.ne.s32.totalorder %s113, %s127
    %p129 = scmp.eq.s32.totalorder %s19, 0
    %p130 = por %p128, %p129
    %s132 = sadd.s32 %s131, 1
    %p135 = scmp.eq.s32.totalorder %s13, 1
    %p136 = scmp.ne.s32.totalorder %s131, %s133
    %p137 = scmp.eq.s32.totalorder %s13, 0
    %p138 = por %p136, %p137
    %p139 = scmp.ne.s32.totalorder %s131, %s133
    %p140 = scmp.eq.s32.totalorder %s18, 1
    %p141 = por %p139, %p140
    %p142 = scmp.ne.s32.totalorder %s133, %s134
    %p143 = scmp.eq.s32.totalorder %s18, 0
    %p144 = por %p142, %p143
    %p145 = scmp.ne.s32.totalorder %s133, %s134
    %p146 = scmp.eq.s32.totalorder %s19, 1
    %p147 = por %p145, %p146
    %p149 = scmp.ne.s32.totalorder %s134, %s148
    %p150 = scmp.eq.s32.totalorder %s19, 0
    %p151 = por %p149, %p150
    %s153 = sadd.s32 %s152, 1
    %p156 = scmp.eq.s32.totalorder %s13, 1
    %p157 = scmp.ne.s32.totalorder %s152, %s154
    %p158 = scmp.eq.s32.totalorder %s13, 0
    %p159 = por %p157, %p158
    %p160 = scmp.ne.s32.totalorder %s152, %s154
    %p161 = scmp.eq.s32.totalorder %s18, 1
    %p162 = por %p160, %p161
    %p163 = scmp.ne.s32.totalorder %s154, %s155
    %p164 = scmp.eq.s32.totalorder %s18, 0
    %p165 = por %p163, %p164
    %p166 = scmp.ne.s32.totalorder %s154, %s155
    %p167 = scmp.eq.s32.totalorder %s19, 1
    %p168 = por %p166, %p167
    %p170 = scmp.ne.s32.totalorder %s155, %s169
    %p171 = scmp.eq.s32.totalorder %s19, 0
    %p172 = por %p170, %p171
    %s173 = ssub.s32 %s13, %s20
    %p174 = scmp.eq.s32.totalorder %s173, 0
    %s176 = sadd.s32 %s175, 1
    %s177 = scalar_select %p174, %s175, %s176
    %p180 = pneg %p174
    %p181 = scmp.eq.s32.totalorder %s13, 1
    %p182 = por %p180, %p181
    %p183 = scmp.ne.s32.totalorder %s175, %s178
    %p184 = scmp.eq.s32.totalorder %s13, 0
    %p185 = por %p183, %p184
    %p186 = scmp.ne.s32.totalorder %s175, %s178
    %p187 = scmp.eq.s32.totalorder %s18, 1
    %p188 = por %p186, %p187
    %p189 = scmp.ne.s32.totalorder %s178, %s179
    %p190 = scmp.eq.s32.totalorder %s18, 0
    %p191 = por %p189, %p190
    %p192 = scmp.ne.s32.totalorder %s178, %s179
    %p193 = scmp.eq.s32.totalorder %s19, 1
    %p194 = por %p192, %p193
    %p196 = scmp.ne.s32.totalorder %s179, %s195
    %p197 = scmp.eq.s32.totalorder %s19, 0
    %p198 = por %p196, %p197
    %p199 = scmp.le.s32.totalorder 1, %s13
    %p200 = scmp.lt.s32.totalorder %s13, 3
    %p201 = pnand %p199, %p200
    %p202 = pneg %p201
    // Predicated region
    $region9: #{lenet_forward.1} parent=5 // pred_check
      _
    $region10: #{lenet_forward.1} parent=5 // pred_check_branch
      %204 = sbr.rel (%p201) target = $region12
    $region11: #{lenet_forward.1} parent=5 // pred_region
      %s205 = ssub.s32 %s13, 1
      // Predicated region
      $region13: #{lenet_forward.1} parent=11 // pred_check
        %p206 = pneg %p60
      $region14: #{lenet_forward.1} parent=11 // pred_check_branch
        %208 = sbr.rel (%p206) target = $region16
      $region15: #{lenet_forward.1} parent=11 // pred_region
        _
      $region16: #{lenet_forward.1} parent=11 // pred_fallthru
        _
      // Predicated region
      $region17: #{lenet_forward.1} parent=11 // pred_check
        %p209 = pneg %p81
      $region18: #{lenet_forward.1} parent=11 // pred_check_branch
        %211 = sbr.rel (%p209) target = $region20
      $region19: #{lenet_forward.1} parent=11 // pred_region
        _
      $region20: #{lenet_forward.1} parent=11 // pred_fallthru
        _
      // Predicated region
      $region21: #{lenet_forward.1} parent=11 // pred_check
        %p212 = pneg %p102
      $region22: #{lenet_forward.1} parent=11 // pred_check_branch
        %214 = sbr.rel (%p212) target = $region24
      $region23: #{lenet_forward.1} parent=11 // pred_region
        _
      $region24: #{lenet_forward.1} parent=11 // pred_fallthru
        _
      // Predicated region
      $region25: #{lenet_forward.1} parent=11 // pred_check
        %p215 = pneg %p123
      $region26: #{lenet_forward.1} parent=11 // pred_check_branch
        %217 = sbr.rel (%p215) target = $region28
      $region27: #{lenet_forward.1} parent=11 // pred_region
        _
      $region28: #{lenet_forward.1} parent=11 // pred_fallthru
        _
      // Predicated region
      $region29: #{lenet_forward.1} parent=11 // pred_check
        %p218 = pneg %p144
      $region30: #{lenet_forward.1} parent=11 // pred_check_branch
        %220 = sbr.rel (%p218) target = $region32
      $region31: #{lenet_forward.1} parent=11 // pred_region
        _
      $region32: #{lenet_forward.1} parent=11 // pred_fallthru
        _
      // Predicated region
      $region33: #{lenet_forward.1} parent=11 // pred_check
        %p221 = pneg %p165
      $region34: #{lenet_forward.1} parent=11 // pred_check_branch
        %223 = sbr.rel (%p221) target = $region36
      $region35: #{lenet_forward.1} parent=11 // pred_region
        _
      $region36: #{lenet_forward.1} parent=11 // pred_fallthru
        _
    $region12: #{lenet_forward.1} parent=5 // pred_fallthru
      _
    %p224 = scmp.lt.s32.totalorder %s13, 2
    // Predicated region
    $region37: #{lenet_forward.1} parent=5 // pred_check
      %p225 = pneg %p224
    $region38: #{lenet_forward.1} parent=5 // pred_check_branch
      %227 = sbr.rel (%p225) target = $region40
    $region39: #{lenet_forward.1} parent=5 // pred_region
      // Predicated region
      $region41: #{lenet_forward.1} parent=39 // pred_check
        %p228 = pneg %p33
      $region42: #{lenet_forward.1} parent=39 // pred_check_branch
        %230 = sbr.rel (%p228) target = $region44
      $region43: #{lenet_forward.1} parent=39 // pred_region
        %s231 = smul.u32 48, %s13
        %p232 = scmp.lt.s32.totalorder %s231, 95
        %s233 = scalar_select %p232, %s231, 95
        %s234 = smul.addr %s233, 2
        %s235 = smul.addr %s234, 4
        %s236 = scalar_lea.vmem %s0, %s235
        %s237 = smul.u32 48, %s13
      $region44: #{lenet_forward.1} parent=39 // pred_fallthru
        _
    $region40: #{lenet_forward.1} parent=5 // pred_fallthru
      _
    %p238 = scmp.le.s32.totalorder 1, %s13
    %p239 = scmp.lt.s32.totalorder %s13, 3
    %p240 = pnand %p238, %p239
    %p241 = pneg %p240
    // Predicated region
    $region45: #{lenet_forward.1} parent=5 // pred_check
      _
    $region46: #{lenet_forward.1} parent=5 // pred_check_branch
      %243 = sbr.rel (%p240) target = $region48
    $region47: #{lenet_forward.1} parent=5 // pred_region
      %s244 = ssub.s32 %s13, 1
      %s245 = smul.u32 48, %s18
      %p246 = scmp.lt.s32.totalorder %s245, 95
      %s247 = scalar_select %p246, %s245, 95
      %s248 = smul.addr %s247, 2
      %s249 = smul.addr %s248, 4
      %s250 = scalar_lea.vmem %s0, %s249
      %p251 = pneg %p39
      %p252 = pneg %p36
      %p253 = pneg %p60
      %p254 = pneg %p57
      %p255 = pneg %p81
      %p256 = pneg %p78
      %p257 = pneg %p102
      %p258 = pneg %p99
      %p259 = pneg %p123
      %p260 = pneg %p120
      %p261 = pneg %p144
      %p262 = pneg %p141
      %p263 = pneg %p165
      %p264 = pneg %p162
      %p265 = pneg %p191
      %p266 = pneg %p188
      %s267 = smul.u32 2, %s18
      %p268 = scmp.lt.s32.totalorder %s267, 3
      %s269 = scalar_select %p268, %s267, 3
      %s270 = smul.addr %s269, 8
      %s271 = scalar_lea.vmem %s7, %s270
      %s272 = smul.u32 48, %s18
      %p273 = scmp.lt.s32.totalorder %s272, 95
      %s274 = scalar_select %p273, %s272, 95
      %s275 = smul.addr %s274, 2
      %s276 = smul.addr %s275, 4
      %s277 = scalar_lea.vmem %s0, %s276
      %s278 = smul.u32 48, %s18
      %s279 = smul.u32 2, %s18
      %p280 = scmp.lt.s32.totalorder %s279, 3
      %s281 = scalar_select %p280, %s279, 3
      %s282 = smul.addr %s281, 8
      %s283 = scalar_lea.vmem %s7, %s282
      %s284 = smul.u32 2, %s18
      %v286 = vld [vmem:[%s277] sm:$0xff]
      %v287 = vld [vmem:[%s277 + $0x8] sm:$0xff]
      %v288 = vld [vmem:[%s277 + $0x10] sm:$0xff]
      %v289 = vld [vmem:[%s277 + $0x18] sm:$0xff]
      %v290 = vld [vmem:[%s277 + $0x20] sm:$0xff]
      %v291 = vld [vmem:[%s277 + $0x28] sm:$0xff]
      %v292 = vld [vmem:[%s277 + $0x30] sm:$0xff]
      %v293 = vld [vmem:[%s277 + $0x38] sm:$0xff]
      %v294 = vld [vmem:[%s277 + $0x40] sm:$0xff]
      %v295 = vld [vmem:[%s277 + $0x48] sm:$0xff]
      %v296 = vld [vmem:[%s277 + $0x50] sm:$0xff]
      %v297 = vld [vmem:[%s277 + $0x58] sm:$0xff]
      %v298 = vld [vmem:[%s277 + $0x60] sm:$0xff]
      %v299 = vld [vmem:[%s277 + $0x68] sm:$0xff]
      %v300 = vld [vmem:[%s277 + $0x70] sm:$0xff]
      %v301 = vld [vmem:[%s277 + $0x78] sm:$0xff]
      %v302 = vld [vmem:[%s277 + $0x80] sm:$0xff]
      %v303 = vld [vmem:[%s277 + $0x88] sm:$0xff]
      %v304 = vld [vmem:[%s277 + $0x90] sm:$0xff]
      %v305 = vld [vmem:[%s277 + $0x98] sm:$0xff]
      %v306 = vld [vmem:[%s277 + $0xa0] sm:$0xff]
      %v307 = vld [vmem:[%s277 + $0xa8] sm:$0xff]
      %v308 = vld [vmem:[%s277 + $0xb0] sm:$0xff]
      %v309 = vld [vmem:[%s277 + $0xb8] sm:$0xff]
      %v310 = vld [vmem:[%s277 + $0xc0] sm:$0xff]
      %v311 = vld [vmem:[%s277 + $0xc8] sm:$0xff]
      %v312 = vld [vmem:[%s277 + $0xd0] sm:$0xff]
      %v313 = vld [vmem:[%s277 + $0xd8] sm:$0xff]
      %v314 = vld [vmem:[%s277 + $0xe0] sm:$0xff]
      %v315 = vld [vmem:[%s277 + $0xe8] sm:$0xff]
      %v316 = vld [vmem:[%s277 + $0xf0] sm:$0xff]
      %v317 = vld [vmem:[%s277 + $0xf8] sm:$0xff]
      %v318 = vld [vmem:[%s277 + $0x100] sm:$0xff]
      %v319 = vld [vmem:[%s277 + $0x108] sm:$0xff]
      %v320 = vld [vmem:[%s277 + $0x110] sm:$0xff]
      %v321 = vld [vmem:[%s277 + $0x118] sm:$0xff]
      %v322 = vld [vmem:[%s277 + $0x120] sm:$0xff]
      %v323 = vld [vmem:[%s277 + $0x128] sm:$0xff]
      %v324 = vld [vmem:[%s277 + $0x130] sm:$0xff]
      %v325 = vld [vmem:[%s277 + $0x138] sm:$0xff]
      %v326 = vld [vmem:[%s277 + $0x140] sm:$0xff]
      %v327 = vld [vmem:[%s277 + $0x148] sm:$0xff]
      %v328 = vld [vmem:[%s277 + $0x150] sm:$0xff]
      %v329 = vld [vmem:[%s277 + $0x158] sm:$0xff]
      %v330 = vld [vmem:[%s277 + $0x160] sm:$0xff]
      %v331 = vld [vmem:[%s277 + $0x168] sm:$0xff]
      %v332 = vld [vmem:[%s277 + $0x170] sm:$0xff]
      %v333 = vld [vmem:[%s277 + $0x178] sm:$0xff]
      %v334 = vld [vmem:[%s1] sm:$0xff]
      %v335 = vld [vmem:[%s1 + $0x8] sm:$0xff]
      %v336 = vld [vmem:[%s1 + $0x10] sm:$0xff]
      %v337 = vld [vmem:[%s1 + $0x18] sm:$0xff]
      %v338 = vld [vmem:[%s1 + $0x20] sm:$0xff]
      %v339 = vld [vmem:[%s1 + $0x28] sm:$0xff]
      %v340 = vld [vmem:[%s1 + $0x30] sm:$0xff]
      %v341 = vld [vmem:[%s1 + $0x38] sm:$0xff]
      %v342 = vld [vmem:[%s1 + $0x40] sm:$0xff]
      %v343 = vld [vmem:[%s1 + $0x48] sm:$0xff]
      %v344 = vld [vmem:[%s1 + $0x50] sm:$0xff]
      %v345 = vld [vmem:[%s1 + $0x58] sm:$0xff]
      %v346 = vld [vmem:[%s1 + $0x60] sm:$0xff]
      %v347 = vld [vmem:[%s1 + $0x68] sm:$0xff]
      %v348 = vld [vmem:[%s1 + $0x70] sm:$0xff]
      %v349 = vld [vmem:[%s1 + $0x78] sm:$0xff]
      %v350 = vld [vmem:[%s1 + $0x80] sm:$0xff]
      %v351 = vld [vmem:[%s1 + $0x88] sm:$0xff]
      %v352 = vld [vmem:[%s1 + $0x90] sm:$0xff]
      %v353 = vld [vmem:[%s1 + $0x98] sm:$0xff]
      %v354 = vld [vmem:[%s1 + $0xa0] sm:$0xff]
      %v355 = vld [vmem:[%s1 + $0xa8] sm:$0xff]
      %v356 = vld [vmem:[%s1 + $0xb0] sm:$0xff]
      %v357 = vld [vmem:[%s1 + $0xb8] sm:$0xff]
      %v358 = vld [vmem:[%s1 + $0xc0] sm:$0xff]
      %v359 = vld [vmem:[%s1 + $0xc8] sm:$0xff]
      %v360 = vld [vmem:[%s1 + $0xd0] sm:$0xff]
      %v361 = vld [vmem:[%s1 + $0xd8] sm:$0xff]
      %v362 = vld [vmem:[%s1 + $0xe0] sm:$0xff]
      %v363 = vld [vmem:[%s1 + $0xe8] sm:$0xff]
      %v364 = vld [vmem:[%s1 + $0xf0] sm:$0xff]
      %v365 = vld [vmem:[%s1 + $0xf8] sm:$0xff]
      %v366 = vld [vmem:[%s1 + $0x100] sm:$0xff]
      %v367 = vld [vmem:[%s1 + $0x108] sm:$0xff]
      %v368 = vld [vmem:[%s1 + $0x110] sm:$0x33]
      %v369 = vld [vmem:[%s1 + $0x118] sm:$0x33]
      %v418 = vunpack.c.l.b16 %v286
      %v419 = vunpack.c.h.b16 %v286
      %v420 = vunpack.c.l.b16 %v287
      %v421 = vunpack.c.h.b16 %v287
      %v422 = vunpack.c.l.b16 %v288
      %v423 = vunpack.c.h.b16 %v288
      %v424 = vunpack.c.l.b16 %v289
      %v425 = vunpack.c.h.b16 %v289
      %v426 = vunpack.c.l.b16 %v290
      %v427 = vunpack.c.h.b16 %v290
      %v428 = vunpack.c.l.b16 %v291
      %v429 = vunpack.c.h.b16 %v291
      %v430 = vunpack.c.l.b16 %v292
      %v431 = vunpack.c.h.b16 %v292
      %v432 = vunpack.c.l.b16 %v293
      %v433 = vunpack.c.h.b16 %v293
      %v434 = vunpack.c.l.b16 %v294
      %v435 = vunpack.c.h.b16 %v294
      %v436 = vunpack.c.l.b16 %v295
      %v437 = vunpack.c.h.b16 %v295
      %v438 = vunpack.c.l.b16 %v296
      %v439 = vunpack.c.h.b16 %v296
      %v440 = vunpack.c.l.b16 %v297
      %v441 = vunpack.c.h.b16 %v297
      %v442 = vunpack.c.l.b16 %v298
      %v443 = vunpack.c.h.b16 %v298
      %v444 = vunpack.c.l.b16 %v299
      %v445 = vunpack.c.h.b16 %v299
      %v446 = vunpack.c.l.b16 %v300
      %v447 = vunpack.c.h.b16 %v300
      %v448 = vunpack.c.l.b16 %v301
      %v449 = vunpack.c.h.b16 %v301
      %v450 = vunpack.c.l.b16 %v302
      %v451 = vunpack.c.h.b16 %v302
      %v452 = vunpack.c.l.b16 %v303
      %v453 = vunpack.c.h.b16 %v303
      %v454 = vunpack.c.l.b16 %v304
      %v455 = vunpack.c.h.b16 %v304
      %v456 = vunpack.c.l.b16 %v305
      %v457 = vunpack.c.h.b16 %v305
      %v458 = vunpack.c.l.b16 %v306
      %v459 = vunpack.c.h.b16 %v306
      %v460 = vunpack.c.l.b16 %v307
      %v461 = vunpack.c.h.b16 %v307
      %v462 = vunpack.c.l.b16 %v308
      %v463 = vunpack.c.h.b16 %v308
      %v464 = vunpack.c.l.b16 %v309
      %v465 = vunpack.c.h.b16 %v309
      %v466 = vunpack.c.l.b16 %v310
      %v467 = vunpack.c.h.b16 %v310
      %v468 = vunpack.c.l.b16 %v311
      %v469 = vunpack.c.h.b16 %v311
      %v470 = vunpack.c.l.b16 %v312
      %v471 = vunpack.c.h.b16 %v312
      %v472 = vunpack.c.l.b16 %v313
      %v473 = vunpack.c.h.b16 %v313
      %v474 = vunpack.c.l.b16 %v314
      %v475 = vunpack.c.h.b16 %v314
      %v476 = vunpack.c.l.b16 %v315
      %v477 = vunpack.c.h.b16 %v315
      %v478 = vunpack.c.l.b16 %v316
      %v479 = vunpack.c.h.b16 %v316
      %v480 = vunpack.c.l.b16 %v317
      %v481 = vunpack.c.h.b16 %v317
      %v482 = vunpack.c.l.b16 %v318
      %v483 = vunpack.c.h.b16 %v318
      %v484 = vunpack.c.l.b16 %v319
      %v485 = vunpack.c.h.b16 %v319
      %v486 = vunpack.c.l.b16 %v320
      %v487 = vunpack.c.h.b16 %v320
      %v488 = vunpack.c.l.b16 %v321
      %v489 = vunpack.c.h.b16 %v321
      %v490 = vunpack.c.l.b16 %v322
      %v491 = vunpack.c.h.b16 %v322
      %v492 = vunpack.c.l.b16 %v323
      %v493 = vunpack.c.h.b16 %v323
      %v494 = vunpack.c.l.b16 %v324
      %v495 = vunpack.c.h.b16 %v324
      %v496 = vunpack.c.l.b16 %v325
      %v497 = vunpack.c.h.b16 %v325
      %v498 = vunpack.c.l.b16 %v326
      %v499 = vunpack.c.h.b16 %v326
      %v500 = vunpack.c.l.b16 %v327
      %v501 = vunpack.c.h.b16 %v327
      %v502 = vunpack.c.l.b16 %v328
      %v503 = vunpack.c.h.b16 %v328
      %v504 = vunpack.c.l.b16 %v329
      %v505 = vunpack.c.h.b16 %v329
      %v506 = vunpack.c.l.b16 %v330
      %v507 = vunpack.c.h.b16 %v330
      %v508 = vunpack.c.l.b16 %v331
      %v509 = vunpack.c.h.b16 %v331
      %v510 = vunpack.c.l.b16 %v332
      %v511 = vunpack.c.h.b16 %v332
      %v512 = vunpack.c.l.b16 %v333
      %v513 = vunpack.c.h.b16 %v333
      %v514 = vpack.c.b16 %v420, %v418
      %v515 = vpack.c.b16 %v421, %v419
      %v516 = vpack.c.b16 %v424, %v422
      %v517 = vpack.c.b16 %v425, %v423
      %v518 = vpack.c.b16 %v428, %v426
      %v519 = vpack.c.b16 %v429, %v427
      %v520 = vpack.c.b16 %v432, %v430
      %v521 = vpack.c.b16 %v433, %v431
      %v522 = vpack.c.b16 %v436, %v434
      %v523 = vpack.c.b16 %v437, %v435
      %v524 = vpack.c.b16 %v440, %v438
      %v525 = vpack.c.b16 %v441, %v439
      %v526 = vpack.c.b16 %v444, %v442
      %v527 = vpack.c.b16 %v445, %v443
      %v528 = vpack.c.b16 %v448, %v446
      %v529 = vpack.c.b16 %v449, %v447
      %v530 = vpack.c.b16 %v452, %v450
      %v531 = vpack.c.b16 %v453, %v451
      %v532 = vpack.c.b16 %v456, %v454
      %v533 = vpack.c.b16 %v457, %v455
      %v534 = vpack.c.b16 %v460, %v458
      %v535 = vpack.c.b16 %v461, %v459
      %v536 = vpack.c.b16 %v464, %v462
      %v537 = vpack.c.b16 %v465, %v463
      %v538 = vpack.c.b16 %v468, %v466
      %v539 = vpack.c.b16 %v469, %v467
      %v540 = vpack.c.b16 %v472, %v470
      %v541 = vpack.c.b16 %v473, %v471
      %v542 = vpack.c.b16 %v476, %v474
      %v543 = vpack.c.b16 %v477, %v475
      %v544 = vpack.c.b16 %v480, %v478
      %v545 = vpack.c.b16 %v481, %v479
      %v546 = vpack.c.b16 %v484, %v482
      %v547 = vpack.c.b16 %v485, %v483
      %v548 = vpack.c.b16 %v488, %v486
      %v549 = vpack.c.b16 %v489, %v487
      %v550 = vpack.c.b16 %v492, %v490
      %v551 = vpack.c.b16 %v493, %v491
      %v552 = vpack.c.b16 %v496, %v494
      %v553 = vpack.c.b16 %v497, %v495
      %v554 = vpack.c.b16 %v500, %v498
      %v555 = vpack.c.b16 %v501, %v499
      %v556 = vpack.c.b16 %v504, %v502
      %v557 = vpack.c.b16 %v505, %v503
      %v558 = vpack.c.b16 %v508, %v506
      %v559 = vpack.c.b16 %v509, %v507
      %v560 = vpack.c.b16 %v512, %v510
      %v561 = vpack.c.b16 %v513, %v511
      %v622 = vunpack.c.l.b16 %v334
      %v623 = vunpack.c.h.b16 %v334
      %v624 = vunpack.c.l.b16 %v335
      %v625 = vunpack.c.h.b16 %v335
      %v626 = vunpack.c.l.b16 %v336
      %v627 = vunpack.c.h.b16 %v336
      %v628 = vunpack.c.l.b16 %v337
      %v629 = vunpack.c.h.b16 %v337
      %v630 = vunpack.c.l.b16 %v338
      %v631 = vunpack.c.h.b16 %v338
      %v632 = vunpack.c.l.b16 %v339
      %v633 = vunpack.c.h.b16 %v339
      %v634 = vunpack.c.l.b16 %v340
      %v635 = vunpack.c.h.b16 %v340
      %v636 = vunpack.c.l.b16 %v341
      %v637 = vunpack.c.h.b16 %v341
      %v638 = vunpack.c.l.b16 %v342
      %v639 = vunpack.c.h.b16 %v342
      %v640 = vunpack.c.l.b16 %v343
      %v641 = vunpack.c.h.b16 %v343
      %v642 = vunpack.c.l.b16 %v344
      %v643 = vunpack.c.h.b16 %v344
      %v644 = vunpack.c.l.b16 %v345
      %v645 = vunpack.c.h.b16 %v345
      %v646 = vunpack.c.l.b16 %v346
      %v647 = vunpack.c.h.b16 %v346
      %v648 = vunpack.c.l.b16 %v347
      %v649 = vunpack.c.h.b16 %v347
      %v650 = vunpack.c.l.b16 %v348
      %v651 = vunpack.c.h.b16 %v348
      %v652 = vunpack.c.l.b16 %v349
      %v653 = vunpack.c.h.b16 %v349
      %v654 = vunpack.c.l.b16 %v350
      %v655 = vunpack.c.h.b16 %v350
      %v656 = vunpack.c.l.b16 %v351
      %v657 = vunpack.c.h.b16 %v351
      %v658 = vunpack.c.l.b16 %v352
      %v659 = vunpack.c.h.b16 %v352
      %v660 = vunpack.c.l.b16 %v353
      %v661 = vunpack.c.h.b16 %v353
      %v662 = vunpack.c.l.b16 %v354
      %v663 = vunpack.c.h.b16 %v354
      %v664 = vunpack.c.l.b16 %v355
      %v665 = vunpack.c.h.b16 %v355
      %v666 = vunpack.c.l.b16 %v356
      %v667 = vunpack.c.h.b16 %v356
      %v668 = vunpack.c.l.b16 %v357
      %v669 = vunpack.c.h.b16 %v357
      %v670 = vunpack.c.l.b16 %v358
      %v671 = vunpack.c.h.b16 %v358
      %v672 = vunpack.c.l.b16 %v359
      %v673 = vunpack.c.h.b16 %v359
      %v674 = vunpack.c.l.b16 %v360
      %v675 = vunpack.c.h.b16 %v360
      %v676 = vunpack.c.l.b16 %v361
      %v677 = vunpack.c.h.b16 %v361
      %v678 = vunpack.c.l.b16 %v362
      %v679 = vunpack.c.h.b16 %v362
      %v680 = vunpack.c.l.b16 %v363
      %v681 = vunpack.c.h.b16 %v363
      %v682 = vunpack.c.l.b16 %v364
      %v683 = vunpack.c.h.b16 %v364
      %v684 = vunpack.c.l.b16 %v365
      %v685 = vunpack.c.h.b16 %v365
      %v686 = vunpack.c.l.b16 %v366
      %v687 = vunpack.c.h.b16 %v366
      %v688 = vunpack.c.l.b16 %v367
      %v689 = vunpack.c.h.b16 %v367
      %v690 = vunpack.c.l.b16 %v368
      %v691 = vunpack.c.h.b16 %v368
      %v692 = vunpack.c.l.b16 %v369
      %v693 = vunpack.c.h.b16 %v369
      %v694 = vpack.c.b16 %v626, %v622
      %v695 = vpack.c.b16 %v627, %v623
      %v696 = vpack.c.b16 %v628, %v624
      %v697 = vpack.c.b16 %v629, %v625
      %v698 = vpack.c.b16 %v634, %v630
      %v699 = vpack.c.b16 %v635, %v631
      %v700 = vpack.c.b16 %v636, %v632
      %v701 = vpack.c.b16 %v637, %v633
      %v702 = vpack.c.b16 %v642, %v638
      %v703 = vpack.c.b16 %v643, %v639
      %v704 = vpack.c.b16 %v644, %v640
      %v705 = vpack.c.b16 %v645, %v641
      %v706 = vpack.c.b16 %v650, %v646
      %v707 = vpack.c.b16 %v651, %v647
      %v708 = vpack.c.b16 %v652, %v648
      %v709 = vpack.c.b16 %v653, %v649
      %v710 = vpack.c.b16 %v658, %v654
      %v711 = vpack.c.b16 %v659, %v655
      %v712 = vpack.c.b16 %v660, %v656
      %v713 = vpack.c.b16 %v661, %v657
      %v714 = vpack.c.b16 %v666, %v662
      %v715 = vpack.c.b16 %v667, %v663
      %v716 = vpack.c.b16 %v668, %v664
      %v717 = vpack.c.b16 %v669, %v665
      %v718 = vpack.c.b16 %v674, %v670
      %v719 = vpack.c.b16 %v675, %v671
      %v720 = vpack.c.b16 %v676, %v672
      %v721 = vpack.c.b16 %v677, %v673
      %v722 = vpack.c.b16 %v682, %v678
      %v723 = vpack.c.b16 %v683, %v679
      %v724 = vpack.c.b16 %v684, %v680
      %v725 = vpack.c.b16 %v685, %v681
      %v726 = vpack.c.b16 %v690, %v686
      %v727 = vpack.c.b16 %v691, %v687
      %v728 = vpack.c.b16 %v692, %v688
      %v729 = vpack.c.b16 %v693, %v689
      %vm762 = vcmask 97280
      %v764 = vsel %vm762, %v515, 0
      %v767 = vsel %vm762, %v517, 0
      %v770 = vsel %vm762, %v519, 0
      %v773 = vsel %vm762, %v521, 0
      %v776 = vsel %vm762, %v523, 0
      %v779 = vsel %vm762, %v525, 0
      %v782 = vsel %vm762, %v527, 0
      %v785 = vsel %vm762, %v529, 0
      %v788 = vsel %vm762, %v531, 0
      %v791 = vsel %vm762, %v533, 0
      %v794 = vsel %vm762, %v535, 0
      %v797 = vsel %vm762, %v537, 0
      %v800 = vsel %vm762, %v539, 0
      %v803 = vsel %vm762, %v541, 0
      %v806 = vsel %vm762, %v543, 0
      %v809 = vsel %vm762, %v545, 0
      %v812 = vsel %vm762, %v547, 0
      %v815 = vsel %vm762, %v549, 0
      %v818 = vsel %vm762, %v551, 0
      %v821 = vsel %vm762, %v553, 0
      %v824 = vsel %vm762, %v555, 0
      %v827 = vsel %vm762, %v557, 0
      %v830 = vsel %vm762, %v559, 0
      %v833 = vsel %vm762, %v561, 0
      %vm835 = vcmask 1045504
      %v837 = vsel %vm835, %v726, 0
      %v840 = vsel %vm835, %v727, 0
      %v843 = vsel %vm835, %v728, 0
      %v846 = vsel %vm835, %v729, 0
      %848 = vmatprep.subr.bf16.mxu0 %v695
      %849 = vmatpush1.bf16.msra.mxu0 %v694
      %850 = vmatprep.subr.bf16.mxu0 %v699
      %851 = vmatpush1.bf16.msra.mxu0 %v698
      %852 = vmatprep.subr.bf16.mxu0 %v703
      %853 = vmatpush1.bf16.msra.mxu0 %v702
      %854 = vmatprep.subr.bf16.mxu0 %v707
      %855 = vmatpush1.bf16.msra.mxu0 %v706
      %856 = vmatprep.subr.bf16.mxu0 %v711
      %857 = vmatpush1.bf16.msra.mxu0 %v710
      %858 = vmatprep.subr.bf16.mxu0 %v715
      %859 = vmatpush1.bf16.msra.mxu0 %v714
      %860 = vmatprep.subr.bf16.mxu0 %v719
      %861 = vmatpush1.bf16.msra.mxu0 %v718
      %862 = vmatprep.subr.bf16.mxu0 %v723
      %863 = vmatpush1.bf16.msra.mxu0 %v722
      %864 = vmatprep.subr.bf16.mxu0 %v840
      %865 = vmatpush1.bf16.msra.mxu0 %v837
      %866 = vmatprep.subr.bf16.mxu0 0
      %867 = vmatpush1.bf16.msra.mxu0 0
      %868 = vmatprep.subr.bf16.mxu0 0
      %869 = vmatpush1.bf16.msra.mxu0 0
      %870 = vmatprep.subr.bf16.mxu0 0
      %871 = vmatpush1.bf16.msra.mxu0 0
      %872 = vmatprep.subr.bf16.mxu0 0
      %873 = vmatpush1.bf16.msra.mxu0 0
      %874 = vmatprep.subr.bf16.mxu0 0
      %875 = vmatpush1.bf16.msra.mxu0 0
      %876 = vmatprep.subr.bf16.mxu0 0
      %877 = vmatpush1.bf16.msra.mxu0 0
      %878 = vmatprep.subr.bf16.mxu0 0
      %879 = vmatpush1.bf16.msra.mxu0 0
      %880 = vmatprep.mubr.bf16.mxu0 %v764
      %881 = vmatmul.mubr.bf16.gmra.mrb[0].mxu0 %v514
      %v882 = vpop.f32.mrb[0].mxu0
      %v883 = vadd.f32 0.0, %v882
      %v884 = vpop.f32.mrb[0].mxu0
      %v885 = vadd.f32 0.0, %v884
      %v886 = vpop.f32.mrb[0].mxu0
      %v887 = vadd.f32 0.0, %v886
      %v888 = vpop.f32.mrb[0].mxu0
      %v889 = vadd.f32 0.0, %v888
      %890 = vmatprep.mubr.bf16.mxu0 %v767
      %891 = vmatmul.mubr.bf16.gmra.mrb[0].mxu0 %v516
      %v892 = vpop.f32.mrb[0].mxu0
      %v893 = vadd.f32 0.0, %v892
      %v894 = vpop.f32.mrb[0].mxu0
      %v895 = vadd.f32 0.0, %v894
      %v896 = vpop.f32.mrb[0].mxu0
      %v897 = vadd.f32 0.0, %v896
      %v898 = vpop.f32.mrb[0].mxu0
      %v899 = vadd.f32 0.0, %v898
      %900 = vmatprep.mubr.bf16.mxu0 %v770
      %901 = vmatmul.mubr.bf16.gmra.mrb[0].mxu0 %v518
      %v902 = vpop.f32.mrb[0].mxu0
      %v903 = vadd.f32 0.0, %v902
      %v904 = vpop.f32.mrb[0].mxu0
      %v905 = vadd.f32 0.0, %v904
      %v906 = vpop.f32.mrb[0].mxu0
      %v907 = vadd.f32 0.0, %v906
      %v908 = vpop.f32.mrb[0].mxu0
      %v909 = vadd.f32 0.0, %v908
      %910 = vmatprep.mubr.bf16.mxu0 %v773
      %911 = vmatmul.mubr.bf16.gmra.mrb[0].mxu0 %v520
      %v912 = vpop.f32.mrb[0].mxu0
      %v913 = vadd.f32 0.0, %v912
      %v914 = vpop.f32.mrb[0].mxu0
      %v915 = vadd.f32 0.0, %v914
      %v916 = vpop.f32.mrb[0].mxu0
      %v917 = vadd.f32 0.0, %v916
      %v918 = vpop.f32.mrb[0].mxu0
      %v919 = vadd.f32 0.0, %v918
      %920 = vmatprep.mubr.bf16.mxu0 %v776
      %921 = vmatmul.mubr.bf16.gmra.mrb[0].mxu0 %v522
      %v922 = vpop.f32.mrb[0].mxu0
      %v923 = vadd.f32 0.0, %v922
      %v924 = vpop.f32.mrb[0].mxu0
      %v925 = vadd.f32 0.0, %v924
      %v926 = vpop.f32.mrb[0].mxu0
      %v927 = vadd.f32 0.0, %v926
      %v928 = vpop.f32.mrb[0].mxu0
      %v929 = vadd.f32 0.0, %v928
      %930 = vmatprep.mubr.bf16.mxu0 %v779
      %931 = vmatmul.mubr.bf16.gmra.mrb[0].mxu0 %v524
      %v932 = vpop.f32.mrb[0].mxu0
      %v933 = vadd.f32 0.0, %v932
      %v934 = vpop.f32.mrb[0].mxu0
      %v935 = vadd.f32 0.0, %v934
      %v936 = vpop.f32.mrb[0].mxu0
      %v937 = vadd.f32 0.0, %v936
      %v938 = vpop.f32.mrb[0].mxu0
      %v939 = vadd.f32 0.0, %v938
      %940 = vmatprep.mubr.bf16.mxu0 %v782
      %941 = vmatmul.mubr.bf16.gmra.mrb[0].mxu0 %v526
      %v942 = vpop.f32.mrb[0].mxu0
      %v943 = vadd.f32 0.0, %v942
      %v944 = vpop.f32.mrb[0].mxu0
      %v945 = vadd.f32 0.0, %v944
      %v946 = vpop.f32.mrb[0].mxu0
      %v947 = vadd.f32 0.0, %v946
      %v948 = vpop.f32.mrb[0].mxu0
      %v949 = vadd.f32 0.0, %v948
      %950 = vmatprep.mubr.bf16.mxu0 %v785
      %951 = vmatmul.mubr.bf16.gmra.mrb[0].mxu0 %v528
      %v952 = vpop.f32.mrb[0].mxu0
      %v953 = vadd.f32 0.0, %v952
      %v954 = vpop.f32.mrb[0].mxu0
      %v955 = vadd.f32 0.0, %v954
      %v956 = vpop.f32.mrb[0].mxu0
      %v957 = vadd.f32 0.0, %v956
      %v958 = vpop.f32.mrb[0].mxu0
      %v959 = vadd.f32 0.0, %v958
      %960 = vmatprep.mubr.bf16.mxu0 %v788
      %961 = vmatmul.mubr.bf16.gmra.mrb[0].mxu0 %v530
      %v962 = vpop.f32.mrb[0].mxu0
      %v963 = vadd.f32 0.0, %v962
      %v964 = vpop.f32.mrb[0].mxu0
      %v965 = vadd.f32 0.0, %v964
      %v966 = vpop.f32.mrb[0].mxu0
      %v967 = vadd.f32 0.0, %v966
      %v968 = vpop.f32.mrb[0].mxu0
      %v969 = vadd.f32 0.0, %v968
      %970 = vmatprep.mubr.bf16.mxu0 %v791
      %971 = vmatmul.mubr.bf16.gmra.mrb[0].mxu0 %v532
      %v972 = vpop.f32.mrb[0].mxu0
      %v973 = vadd.f32 0.0, %v972
      %v974 = vpop.f32.mrb[0].mxu0
      %v975 = vadd.f32 0.0, %v974
      %v976 = vpop.f32.mrb[0].mxu0
      %v977 = vadd.f32 0.0, %v976
      %v978 = vpop.f32.mrb[0].mxu0
      %v979 = vadd.f32 0.0, %v978
      %980 = vmatprep.mubr.bf16.mxu0 %v794
      %981 = vmatmul.mubr.bf16.gmra.mrb[0].mxu0 %v534
      %v982 = vpop.f32.mrb[0].mxu0
      %v983 = vadd.f32 0.0, %v982
      %v984 = vpop.f32.mrb[0].mxu0
      %v985 = vadd.f32 0.0, %v984
      %v986 = vpop.f32.mrb[0].mxu0
      %v987 = vadd.f32 0.0, %v986
      %v988 = vpop.f32.mrb[0].mxu0
      %v989 = vadd.f32 0.0, %v988
      %990 = vmatprep.mubr.bf16.mxu0 %v797
      %991 = vmatmul.mubr.bf16.gmra.mrb[0].mxu0 %v536
      %v992 = vpop.f32.mrb[0].mxu0
      %v993 = vadd.f32 0.0, %v992
      %v994 = vpop.f32.mrb[0].mxu0
      %v995 = vadd.f32 0.0, %v994
      %v996 = vpop.f32.mrb[0].mxu0
      %v997 = vadd.f32 0.0, %v996
      %v998 = vpop.f32.mrb[0].mxu0
      %v999 = vadd.f32 0.0, %v998
      %1000 = vmatprep.mubr.bf16.mxu0 %v800
      %1001 = vmatmul.mubr.bf16.gmra.mrb[0].mxu0 %v538
      %v1002 = vpop.f32.mrb[0].mxu0
      %v1003 = vadd.f32 0.0, %v1002
      %v1004 = vpop.f32.mrb[0].mxu0
      %v1005 = vadd.f32 0.0, %v1004
      %v1006 = vpop.f32.mrb[0].mxu0
      %v1007 = vadd.f32 0.0, %v1006
      %v1008 = vpop.f32.mrb[0].mxu0
      %v1009 = vadd.f32 0.0, %v1008
      %1010 = vmatprep.mubr.bf16.mxu0 %v803
      %1011 = vmatmul.mubr.bf16.gmra.mrb[0].mxu0 %v540
      %v1012 = vpop.f32.mrb[0].mxu0
      %v1013 = vadd.f32 0.0, %v1012
      %v1014 = vpop.f32.mrb[0].mxu0
      %v1015 = vadd.f32 0.0, %v1014
      %v1016 = vpop.f32.mrb[0].mxu0
      %v1017 = vadd.f32 0.0, %v1016
      %v1018 = vpop.f32.mrb[0].mxu0
      %v1019 = vadd.f32 0.0, %v1018
      %1020 = vmatprep.mubr.bf16.mxu0 %v806
      %1021 = vmatmul.mubr.bf16.gmra.mrb[0].mxu0 %v542
      %v1022 = vpop.f32.mrb[0].mxu0
      %v1023 = vadd.f32 0.0, %v1022
      %v1024 = vpop.f32.mrb[0].mxu0
      %v1025 = vadd.f32 0.0, %v1024
      %v1026 = vpop.f32.mrb[0].mxu0
      %v1027 = vadd.f32 0.0, %v1026
      %v1028 = vpop.f32.mrb[0].mxu0
      %v1029 = vadd.f32 0.0, %v1028
      %1030 = vmatprep.mubr.bf16.mxu0 %v809
      %1031 = vmatmul.mubr.bf16.gmra.mrb[0].mxu0 %v544
      %v1032 = vpop.f32.mrb[0].mxu0
      %v1033 = vadd.f32 0.0, %v1032
      %v1034 = vpop.f32.mrb[0].mxu0
      %v1035 = vadd.f32 0.0, %v1034
      %v1036 = vpop.f32.mrb[0].mxu0
      %v1037 = vadd.f32 0.0, %v1036
      %v1038 = vpop.f32.mrb[0].mxu0
      %v1039 = vadd.f32 0.0, %v1038
      %1040 = vmatprep.mubr.bf16.mxu0 %v812
      %1041 = vmatmul.mubr.bf16.gmra.mrb[0].mxu0 %v546
      %v1042 = vpop.f32.mrb[0].mxu0
      %v1043 = vadd.f32 0.0, %v1042
      %v1044 = vpop.f32.mrb[0].mxu0
      %v1045 = vadd.f32 0.0, %v1044
      %v1046 = vpop.f32.mrb[0].mxu0
      %v1047 = vadd.f32 0.0, %v1046
      %v1048 = vpop.f32.mrb[0].mxu0
      %v1049 = vadd.f32 0.0, %v1048
      %1050 = vmatprep.mubr.bf16.mxu0 %v815
      %1051 = vmatmul.mubr.bf16.gmra.mrb[0].mxu0 %v548
      %v1052 = vpop.f32.mrb[0].mxu0
      %v1053 = vadd.f32 0.0, %v1052
      %v1054 = vpop.f32.mrb[0].mxu0
      %v1055 = vadd.f32 0.0, %v1054
      %v1056 = vpop.f32.mrb[0].mxu0
      %v1057 = vadd.f32 0.0, %v1056
      %v1058 = vpop.f32.mrb[0].mxu0
      %v1059 = vadd.f32 0.0, %v1058
      %1060 = vmatprep.mubr.bf16.mxu0 %v818
      %1061 = vmatmul.mubr.bf16.gmra.mrb[0].mxu0 %v550
      %v1062 = vpop.f32.mrb[0].mxu0
      %v1063 = vadd.f32 0.0, %v1062
      %v1064 = vpop.f32.mrb[0].mxu0
      %v1065 = vadd.f32 0.0, %v1064
      %v1066 = vpop.f32.mrb[0].mxu0
      %v1067 = vadd.f32 0.0, %v1066
      %v1068 = vpop.f32.mrb[0].mxu0
      %v1069 = vadd.f32 0.0, %v1068
      %1070 = vmatprep.mubr.bf16.mxu0 %v821
      %1071 = vmatmul.mubr.bf16.gmra.mrb[0].mxu0 %v552
      %v1072 = vpop.f32.mrb[0].mxu0
      %v1073 = vadd.f32 0.0, %v1072
      %v1074 = vpop.f32.mrb[0].mxu0
      %v1075 = vadd.f32 0.0, %v1074
      %v1076 = vpop.f32.mrb[0].mxu0
      %v1077 = vadd.f32 0.0, %v1076
      %v1078 = vpop.f32.mrb[0].mxu0
      %v1079 = vadd.f32 0.0, %v1078
      %1080 = vmatprep.mubr.bf16.mxu0 %v824
      %1081 = vmatmul.mubr.bf16.gmra.mrb[0].mxu0 %v554
      %v1082 = vpop.f32.mrb[0].mxu0
      %v1083 = vadd.f32 0.0, %v1082
      %v1084 = vpop.f32.mrb[0].mxu0
      %v1085 = vadd.f32 0.0, %v1084
      %v1086 = vpop.f32.mrb[0].mxu0
      %v1087 = vadd.f32 0.0, %v1086
      %v1088 = vpop.f32.mrb[0].mxu0
      %v1089 = vadd.f32 0.0, %v1088
      %1090 = vmatprep.mubr.bf16.mxu0 %v827
      %1091 = vmatmul.mubr.bf16.gmra.mrb[0].mxu0 %v556
      %v1092 = vpop.f32.mrb[0].mxu0
      %v1093 = vadd.f32 0.0, %v1092
      %v1094 = vpop.f32.mrb[0].mxu0
      %v1095 = vadd.f32 0.0, %v1094
      %v1096 = vpop.f32.mrb[0].mxu0
      %v1097 = vadd.f32 0.0, %v1096
      %v1098 = vpop.f32.mrb[0].mxu0
      %v1099 = vadd.f32 0.0, %v1098
      %1100 = vmatprep.mubr.bf16.mxu0 %v830
      %1101 = vmatmul.mubr.bf16.gmra.mrb[0].mxu0 %v558
      %v1102 = vpop.f32.mrb[0].mxu0
      %v1103 = vadd.f32 0.0, %v1102
      %v1104 = vpop.f32.mrb[0].mxu0
      %v1105 = vadd.f32 0.0, %v1104
      %v1106 = vpop.f32.mrb[0].mxu0
      %v1107 = vadd.f32 0.0, %v1106
      %v1108 = vpop.f32.mrb[0].mxu0
      %v1109 = vadd.f32 0.0, %v1108
      %1110 = vmatprep.mubr.bf16.mxu0 %v833
      %1111 = vmatmul.mubr.bf16.gmra.mrb[0].mxu0 %v560
      %v1112 = vpop.f32.mrb[0].mxu0
      %v1113 = vadd.f32 0.0, %v1112
      %v1114 = vpop.f32.mrb[0].mxu0
      %v1115 = vadd.f32 0.0, %v1114
      %v1116 = vpop.f32.mrb[0].mxu0
      %v1117 = vadd.f32 0.0, %v1116
      %v1118 = vpop.f32.mrb[0].mxu0
      %v1119 = vadd.f32 0.0, %v1118
      %1120 = vdwg.mxu0
      %1121 = vmatprep.subr.bf16.mxu0 %v697
      %1122 = vmatpush1.bf16.msra.mxu0 %v696
      %1123 = vmatprep.subr.bf16.mxu0 %v701
      %1124 = vmatpush1.bf16.msra.mxu0 %v700
      %1125 = vmatprep.subr.bf16.mxu0 %v705
      %1126 = vmatpush1.bf16.msra.mxu0 %v704
      %1127 = vmatprep.subr.bf16.mxu0 %v709
      %1128 = vmatpush1.bf16.msra.mxu0 %v708
      %1129 = vmatprep.subr.bf16.mxu0 %v713
      %1130 = vmatpush1.bf16.msra.mxu0 %v712
      %1131 = vmatprep.subr.bf16.mxu0 %v717
      %1132 = vmatpush1.bf16.msra.mxu0 %v716
      %1133 = vmatprep.subr.bf16.mxu0 %v721
      %1134 = vmatpush1.bf16.msra.mxu0 %v720
      %1135 = vmatprep.subr.bf16.mxu0 %v725
      %1136 = vmatpush1.bf16.msra.mxu0 %v724
      %1137 = vmatprep.subr.bf16.mxu0 %v846
      %1138 = vmatpush1.bf16.msra.mxu0 %v843
      %1139 = vmatprep.subr.bf16.mxu0 0
      %1140 = vmatpush1.bf16.msra.mxu0 0
      %1141 = vmatprep.subr.bf16.mxu0 0
      %1142 = vmatpush1.bf16.msra.mxu0 0
      %1143 = vmatprep.subr.bf16.mxu0 0
      %1144 = vmatpush1.bf16.msra.mxu0 0
      %1145 = vmatprep.subr.bf16.mxu0 0
      %1146 = vmatpush1.bf16.msra.mxu0 0
      %1147 = vmatprep.subr.bf16.mxu0 0
      %1148 = vmatpush1.bf16.msra.mxu0 0
      %1149 = vmatprep.subr.bf16.mxu0 0
      %1150 = vmatpush1.bf16.msra.mxu0 0
      %1151 = vmatprep.subr.bf16.mxu0 0
      %1152 = vmatpush1.bf16.msra.mxu0 0
      %1153 = vmatprep.mubr.bf16.mxu0 %v764
      %1154 = vmatmul.mubr.bf16.gmra.mrb[0].mxu0 %v514
      %v1155 = vpop.f32.mrb[0].mxu0
      %v1156 = vadd.f32 0.0, %v1155
      %v1157 = vpop.f32.mrb[0].mxu0
      %v1158 = vadd.f32 0.0, %v1157
      %v1159 = vpop.f32.mrb[0].mxu0
      %v1160 = vadd.f32 0.0, %v1159
      %v1161 = vpop.f32.mrb[0].mxu0
      %v1162 = vadd.f32 0.0, %v1161
      %1163 = vmatprep.mubr.bf16.mxu0 %v767
      %1164 = vmatmul.mubr.bf16.gmra.mrb[0].mxu0 %v516
      %v1165 = vpop.f32.mrb[0].mxu0
      %v1166 = vadd.f32 0.0, %v1165
      %v1167 = vpop.f32.mrb[0].mxu0
      %v1168 = vadd.f32 0.0, %v1167
      %v1169 = vpop.f32.mrb[0].mxu0
      %v1170 = vadd.f32 0.0, %v1169
      %v1171 = vpop.f32.mrb[0].mxu0
      %v1172 = vadd.f32 0.0, %v1171
      %1173 = vmatprep.mubr.bf16.mxu0 %v770
      %1174 = vmatmul.mubr.bf16.gmra.mrb[0].mxu0 %v518
      %v1175 = vpop.f32.mrb[0].mxu0
      %v1176 = vadd.f32 0.0, %v1175
      %v1177 = vpop.f32.mrb[0].mxu0
      %v1178 = vadd.f32 0.0, %v1177
      %v1179 = vpop.f32.mrb[0].mxu0
      %v1180 = vadd.f32 0.0, %v1179
      %v1181 = vpop.f32.mrb[0].mxu0
      %v1182 = vadd.f32 0.0, %v1181
      %1183 = vmatprep.mubr.bf16.mxu0 %v773
      %1184 = vmatmul.mubr.bf16.gmra.mrb[0].mxu0 %v520
      %v1185 = vpop.f32.mrb[0].mxu0
      %v1186 = vadd.f32 0.0, %v1185
      %v1187 = vpop.f32.mrb[0].mxu0
      %v1188 = vadd.f32 0.0, %v1187
      %v1189 = vpop.f32.mrb[0].mxu0
      %v1190 = vadd.f32 0.0, %v1189
      %v1191 = vpop.f32.mrb[0].mxu0
      %v1192 = vadd.f32 0.0, %v1191
      %1193 = vmatprep.mubr.bf16.mxu0 %v776
      %1194 = vmatmul.mubr.bf16.gmra.mrb[0].mxu0 %v522
      %v1195 = vpop.f32.mrb[0].mxu0
      %v1196 = vadd.f32 0.0, %v1195
      %v1197 = vpop.f32.mrb[0].mxu0
      %v1198 = vadd.f32 0.0, %v1197
      %v1199 = vpop.f32.mrb[0].mxu0
      %v1200 = vadd.f32 0.0, %v1199
      %v1201 = vpop.f32.mrb[0].mxu0
      %v1202 = vadd.f32 0.0, %v1201
      %1203 = vmatprep.mubr.bf16.mxu0 %v779
      %1204 = vmatmul.mubr.bf16.gmra.mrb[0].mxu0 %v524
      %v1205 = vpop.f32.mrb[0].mxu0
      %v1206 = vadd.f32 0.0, %v1205
      %v1207 = vpop.f32.mrb[0].mxu0
      %v1208 = vadd.f32 0.0, %v1207
      %v1209 = vpop.f32.mrb[0].mxu0
      %v1210 = vadd.f32 0.0, %v1209
      %v1211 = vpop.f32.mrb[0].mxu0
      %v1212 = vadd.f32 0.0, %v1211
      %1213 = vmatprep.mubr.bf16.mxu0 %v782
      %1214 = vmatmul.mubr.bf16.gmra.mrb[0].mxu0 %v526
      %v1215 = vpop.f32.mrb[0].mxu0
      %v1216 = vadd.f32 0.0, %v1215
      %v1217 = vpop.f32.mrb[0].mxu0
      %v1218 = vadd.f32 0.0, %v1217
      %v1219 = vpop.f32.mrb[0].mxu0
      %v1220 = vadd.f32 0.0, %v1219
      %v1221 = vpop.f32.mrb[0].mxu0
      %v1222 = vadd.f32 0.0, %v1221
      %1223 = vmatprep.mubr.bf16.mxu0 %v785
      %1224 = vmatmul.mubr.bf16.gmra.mrb[0].mxu0 %v528
      %v1225 = vpop.f32.mrb[0].mxu0
      %v1226 = vadd.f32 0.0, %v1225
      %v1227 = vpop.f32.mrb[0].mxu0
      %v1228 = vadd.f32 0.0, %v1227
      %v1229 = vpop.f32.mrb[0].mxu0
      %v1230 = vadd.f32 0.0, %v1229
      %v1231 = vpop.f32.mrb[0].mxu0
      %v1232 = vadd.f32 0.0, %v1231
      %1233 = vmatprep.mubr.bf16.mxu0 %v788
      %1234 = vmatmul.mubr.bf16.gmra.mrb[0].mxu0 %v530
      %v1235 = vpop.f32.mrb[0].mxu0
      %v1236 = vadd.f32 0.0, %v1235
      %v1237 = vpop.f32.mrb[0].mxu0
      %v1238 = vadd.f32 0.0, %v1237
      %v1239 = vpop.f32.mrb[0].mxu0
      %v1240 = vadd.f32 0.0, %v1239
      %v1241 = vpop.f32.mrb[0].mxu0
      %v1242 = vadd.f32 0.0, %v1241
      %1243 = vmatprep.mubr.bf16.mxu0 %v791
      %1244 = vmatmul.mubr.bf16.gmra.mrb[0].mxu0 %v532
      %v1245 = vpop.f32.mrb[0].mxu0
      %v1246 = vadd.f32 0.0, %v1245
      %v1247 = vpop.f32.mrb[0].mxu0
      %v1248 = vadd.f32 0.0, %v1247
      %v1249 = vpop.f32.mrb[0].mxu0
      %v1250 = vadd.f32 0.0, %v1249
      %v1251 = vpop.f32.mrb[0].mxu0
      %v1252 = vadd.f32 0.0, %v1251
      %1253 = vmatprep.mubr.bf16.mxu0 %v794
      %1254 = vmatmul.mubr.bf16.gmra.mrb[0].mxu0 %v534
      %v1255 = vpop.f32.mrb[0].mxu0
      %v1256 = vadd.f32 0.0, %v1255
      %v1257 = vpop.f32.mrb[0].mxu0
      %v1258 = vadd.f32 0.0, %v1257
      %v1259 = vpop.f32.mrb[0].mxu0
      %v1260 = vadd.f32 0.0, %v1259
      %v1261 = vpop.f32.mrb[0].mxu0
      %v1262 = vadd.f32 0.0, %v1261
      %1263 = vmatprep.mubr.bf16.mxu0 %v797
      %1264 = vmatmul.mubr.bf16.gmra.mrb[0].mxu0 %v536
      %v1265 = vpop.f32.mrb[0].mxu0
      %v1266 = vadd.f32 0.0, %v1265
      %v1267 = vpop.f32.mrb[0].mxu0
      %v1268 = vadd.f32 0.0, %v1267
      %v1269 = vpop.f32.mrb[0].mxu0
      %v1270 = vadd.f32 0.0, %v1269
      %v1271 = vpop.f32.mrb[0].mxu0
      %v1272 = vadd.f32 0.0, %v1271
      %1273 = vmatprep.mubr.bf16.mxu0 %v800
      %1274 = vmatmul.mubr.bf16.gmra.mrb[0].mxu0 %v538
      %v1275 = vpop.f32.mrb[0].mxu0
      %v1276 = vadd.f32 0.0, %v1275
      %v1277 = vpop.f32.mrb[0].mxu0
      %v1278 = vadd.f32 0.0, %v1277
      %v1279 = vpop.f32.mrb[0].mxu0
      %v1280 = vadd.f32 0.0, %v1279
      %v1281 = vpop.f32.mrb[0].mxu0
      %v1282 = vadd.f32 0.0, %v1281
      %1283 = vmatprep.mubr.bf16.mxu0 %v803
      %1284 = vmatmul.mubr.bf16.gmra.mrb[0].mxu0 %v540
      %v1285 = vpop.f32.mrb[0].mxu0
      %v1286 = vadd.f32 0.0, %v1285
      %v1287 = vpop.f32.mrb[0].mxu0
      %v1288 = vadd.f32 0.0, %v1287
      %v1289 = vpop.f32.mrb[0].mxu0
      %v1290 = vadd.f32 0.0, %v1289
      %v1291 = vpop.f32.mrb[0].mxu0
      %v1292 = vadd.f32 0.0, %v1291
      %1293 = vmatprep.mubr.bf16.mxu0 %v806
      %1294 = vmatmul.mubr.bf16.gmra.mrb[0].mxu0 %v542
      %v1295 = vpop.f32.mrb[0].mxu0
      %v1296 = vadd.f32 0.0, %v1295
      %v1297 = vpop.f32.mrb[0].mxu0
      %v1298 = vadd.f32 0.0, %v1297
      %v1299 = vpop.f32.mrb[0].mxu0
      %v1300 = vadd.f32 0.0, %v1299
      %v1301 = vpop.f32.mrb[0].mxu0
      %v1302 = vadd.f32 0.0, %v1301
      %1303 = vmatprep.mubr.bf16.mxu0 %v809
      %1304 = vmatmul.mubr.bf16.gmra.mrb[0].mxu0 %v544
      %v1305 = vpop.f32.mrb[0].mxu0
      %v1306 = vadd.f32 0.0, %v1305
      %v1307 = vpop.f32.mrb[0].mxu0
      %v1308 = vadd.f32 0.0, %v1307
      %v1309 = vpop.f32.mrb[0].mxu0
      %v1310 = vadd.f32 0.0, %v1309
      %v1311 = vpop.f32.mrb[0].mxu0
      %v1312 = vadd.f32 0.0, %v1311
      %1313 = vmatprep.mubr.bf16.mxu0 %v812
      %1314 = vmatmul.mubr.bf16.gmra.mrb[0].mxu0 %v546
      %v1315 = vpop.f32.mrb[0].mxu0
      %v1316 = vadd.f32 0.0, %v1315
      %v1317 = vpop.f32.mrb[0].mxu0
      %v1318 = vadd.f32 0.0, %v1317
      %v1319 = vpop.f32.mrb[0].mxu0
      %v1320 = vadd.f32 0.0, %v1319
      %v1321 = vpop.f32.mrb[0].mxu0
      %v1322 = vadd.f32 0.0, %v1321
      %1323 = vmatprep.mubr.bf16.mxu0 %v815
      %1324 = vmatmul.mubr.bf16.gmra.mrb[0].mxu0 %v548
      %v1325 = vpop.f32.mrb[0].mxu0
      %v1326 = vadd.f32 0.0, %v1325
      %v1327 = vpop.f32.mrb[0].mxu0
      %v1328 = vadd.f32 0.0, %v1327
      %v1329 = vpop.f32.mrb[0].mxu0
      %v1330 = vadd.f32 0.0, %v1329
      %v1331 = vpop.f32.mrb[0].mxu0
      %v1332 = vadd.f32 0.0, %v1331
      %1333 = vmatprep.mubr.bf16.mxu0 %v818
      %1334 = vmatmul.mubr.bf16.gmra.mrb[0].mxu0 %v550
      %v1335 = vpop.f32.mrb[0].mxu0
      %v1336 = vadd.f32 0.0, %v1335
      %v1337 = vpop.f32.mrb[0].mxu0
      %v1338 = vadd.f32 0.0, %v1337
      %v1339 = vpop.f32.mrb[0].mxu0
      %v1340 = vadd.f32 0.0, %v1339
      %v1341 = vpop.f32.mrb[0].mxu0
      %v1342 = vadd.f32 0.0, %v1341
      %1343 = vmatprep.mubr.bf16.mxu0 %v821
      %1344 = vmatmul.mubr.bf16.gmra.mrb[0].mxu0 %v552
      %v1345 = vpop.f32.mrb[0].mxu0
      %v1346 = vadd.f32 0.0, %v1345
      %v1347 = vpop.f32.mrb[0].mxu0
      %v1348 = vadd.f32 0.0, %v1347
      %v1349 = vpop.f32.mrb[0].mxu0
      %v1350 = vadd.f32 0.0, %v1349
      %v1351 = vpop.f32.mrb[0].mxu0
      %v1352 = vadd.f32 0.0, %v1351
      %1353 = vmatprep.mubr.bf16.mxu0 %v824
      %1354 = vmatmul.mubr.bf16.gmra.mrb[0].mxu0 %v554
      %v1355 = vpop.f32.mrb[0].mxu0
      %v1356 = vadd.f32 0.0, %v1355
      %v1357 = vpop.f32.mrb[0].mxu0
      %v1358 = vadd.f32 0.0, %v1357
      %v1359 = vpop.f32.mrb[0].mxu0
      %v1360 = vadd.f32 0.0, %v1359
      %v1361 = vpop.f32.mrb[0].mxu0
      %v1362 = vadd.f32 0.0, %v1361
      %1363 = vmatprep.mubr.bf16.mxu0 %v827
      %1364 = vmatmul.mubr.bf16.gmra.mrb[0].mxu0 %v556
      %v1365 = vpop.f32.mrb[0].mxu0
      %v1366 = vadd.f32 0.0, %v1365
      %v1367 = vpop.f32.mrb[0].mxu0
      %v1368 = vadd.f32 0.0, %v1367
      %v1369 = vpop.f32.mrb[0].mxu0
      %v1370 = vadd.f32 0.0, %v1369
      %v1371 = vpop.f32.mrb[0].mxu0
      %v1372 = vadd.f32 0.0, %v1371
      %1373 = vmatprep.mubr.bf16.mxu0 %v830
      %1374 = vmatmul.mubr.bf16.gmra.mrb[0].mxu0 %v558
      %v1375 = vpop.f32.mrb[0].mxu0
      %v1376 = vadd.f32 0.0, %v1375
      %v1377 = vpop.f32.mrb[0].mxu0
      %v1378 = vadd.f32 0.0, %v1377
      %v1379 = vpop.f32.mrb[0].mxu0
      %v1380 = vadd.f32 0.0, %v1379
      %v1381 = vpop.f32.mrb[0].mxu0
      %v1382 = vadd.f32 0.0, %v1381
      %1383 = vmatprep.mubr.bf16.mxu0 %v833
      %1384 = vmatmul.mubr.bf16.gmra.mrb[0].mxu0 %v560
      %v1385 = vpop.f32.mrb[0].mxu0
      %v1386 = vadd.f32 0.0, %v1385
      %v1387 = vpop.f32.mrb[0].mxu0
      %v1388 = vadd.f32 0.0, %v1387
      %v1389 = vpop.f32.mrb[0].mxu0
      %v1390 = vadd.f32 0.0, %v1389
      %v1391 = vpop.f32.mrb[0].mxu0
      %v1392 = vadd.f32 0.0, %v1391
      %1393 = vdwg.mxu0
      %v1394 = vmax.f32 %v883, %v1156
      %v1395 = vmax.f32 %v885, %v1158
      %v1396 = vmax.f32 %v887, %v1160
      %v1397 = vmax.f32 %v889, %v1162
      %v1398 = vmax.f32 %v893, %v1166
      %v1399 = vmax.f32 %v895, %v1168
      %v1400 = vmax.f32 %v897, %v1170
      %v1401 = vmax.f32 %v899, %v1172
      %v1402 = vmax.f32 %v903, %v1176
      %v1403 = vmax.f32 %v905, %v1178
      %v1404 = vmax.f32 %v907, %v1180
      %v1405 = vmax.f32 %v909, %v1182
      %v1406 = vmax.f32 %v913, %v1186
      %v1407 = vmax.f32 %v915, %v1188
      %v1408 = vmax.f32 %v917, %v1190
      %v1409 = vmax.f32 %v919, %v1192
      %v1410 = vmax.f32 %v923, %v1196
      %v1411 = vmax.f32 %v925, %v1198
      %v1412 = vmax.f32 %v927, %v1200
      %v1413 = vmax.f32 %v929, %v1202
      %v1414 = vmax.f32 %v933, %v1206
      %v1415 = vmax.f32 %v935, %v1208
      %v1416 = vmax.f32 %v937, %v1210
      %v1417 = vmax.f32 %v939, %v1212
      %v1418 = vmax.f32 %v943, %v1216
      %v1419 = vmax.f32 %v945, %v1218
      %v1420 = vmax.f32 %v947, %v1220
      %v1421 = vmax.f32 %v949, %v1222
      %v1422 = vmax.f32 %v953, %v1226
      %v1423 = vmax.f32 %v955, %v1228
      %v1424 = vmax.f32 %v957, %v1230
      %v1425 = vmax.f32 %v959, %v1232
      %v1426 = vmax.f32 %v963, %v1236
      %v1427 = vmax.f32 %v965, %v1238
      %v1428 = vmax.f32 %v967, %v1240
      %v1429 = vmax.f32 %v969, %v1242
      %v1430 = vmax.f32 %v973, %v1246
      %v1431 = vmax.f32 %v975, %v1248
      %v1432 = vmax.f32 %v977, %v1250
      %v1433 = vmax.f32 %v979, %v1252
      %v1434 = vmax.f32 %v983, %v1256
      %v1435 = vmax.f32 %v985, %v1258
      %v1436 = vmax.f32 %v987, %v1260
      %v1437 = vmax.f32 %v989, %v1262
      %v1438 = vmax.f32 %v993, %v1266
      %v1439 = vmax.f32 %v995, %v1268
      %v1440 = vmax.f32 %v997, %v1270
      %v1441 = vmax.f32 %v999, %v1272
      %v1442 = vmax.f32 %v1394, %v1418
      %v1443 = vmax.f32 %v1395, %v1419
      %v1444 = vmax.f32 %v1396, %v1420
      %v1445 = vmax.f32 %v1397, %v1421
      %v1446 = vmax.f32 %v1398, %v1422
      %v1447 = vmax.f32 %v1399, %v1423
      %v1448 = vmax.f32 %v1400, %v1424
      %v1449 = vmax.f32 %v1401, %v1425
      %v1450 = vmax.f32 %v1402, %v1426
      %v1451 = vmax.f32 %v1403, %v1427
      %v1452 = vmax.f32 %v1404, %v1428
      %v1453 = vmax.f32 %v1405, %v1429
      %v1454 = vmax.f32 %v1406, %v1430
      %v1455 = vmax.f32 %v1407, %v1431
      %v1456 = vmax.f32 %v1408, %v1432
      %v1457 = vmax.f32 %v1409, %v1433
      %v1458 = vmax.f32 %v1410, %v1434
      %v1459 = vmax.f32 %v1411, %v1435
      %v1460 = vmax.f32 %v1412, %v1436
      %v1461 = vmax.f32 %v1413, %v1437
      %v1462 = vmax.f32 %v1414, %v1438
      %v1463 = vmax.f32 %v1415, %v1439
      %v1464 = vmax.f32 %v1416, %v1440
      %v1465 = vmax.f32 %v1417, %v1441
      %v1466 = vld [vmem:[%s2] sm:$0x3]
      %v1468 = vlaneseq
      %v1469 = vshrl.u32 %v1468, 7
      %v1470 = vsub.s32 0, %v1469
      %v1471 = vrot.slane %v1466, %v1470
      %v1472 = vlaneseq
      %v1473 = vshrl.u32 %v1472, 7
      %v1474 = vsub.s32 1, %v1473
      %v1475 = vrot.slane %v1466, %v1474
      %v1478 = vadd.f32 %v1442, %v1471
      %v1479 = vadd.f32 %v1443, %v1475
      %v1480 = vadd.f32 %v1444, %v1471
      %v1481 = vadd.f32 %v1445, %v1475
      %v1482 = vadd.f32 %v1446, %v1471
      %v1483 = vadd.f32 %v1447, %v1475
      %v1484 = vadd.f32 %v1448, %v1471
      %v1485 = vadd.f32 %v1449, %v1475
      %v1486 = vadd.f32 %v1450, %v1471
      %v1487 = vadd.f32 %v1451, %v1475
      %v1488 = vadd.f32 %v1452, %v1471
      %v1489 = vadd.f32 %v1453, %v1475
      %v1490 = vadd.f32 %v1454, %v1471
      %v1491 = vadd.f32 %v1455, %v1475
      %v1492 = vadd.f32 %v1456, %v1471
      %v1493 = vadd.f32 %v1457, %v1475
      %v1494 = vadd.f32 %v1458, %v1471
      %v1495 = vadd.f32 %v1459, %v1475
      %v1496 = vadd.f32 %v1460, %v1471
      %v1497 = vadd.f32 %v1461, %v1475
      %v1498 = vadd.f32 %v1462, %v1471
      %v1499 = vadd.f32 %v1463, %v1475
      %v1500 = vadd.f32 %v1464, %v1471
      %v1501 = vadd.f32 %v1465, %v1475
      %v1502 = vmax.f32 %v1478, 0.0
      %v1503 = vmax.f32 %v1479, 0.0
      %v1504 = vmax.f32 %v1480, 0.0
      %v1505 = vmax.f32 %v1481, 0.0
      %v1506 = vmax.f32 %v1482, 0.0
      %v1507 = vmax.f32 %v1483, 0.0
      %v1508 = vmax.f32 %v1484, 0.0
      %v1509 = vmax.f32 %v1485, 0.0
      %v1510 = vmax.f32 %v1486, 0.0
      %v1511 = vmax.f32 %v1487, 0.0
      %v1512 = vmax.f32 %v1488, 0.0
      %v1513 = vmax.f32 %v1489, 0.0
      %v1514 = vmax.f32 %v1490, 0.0
      %v1515 = vmax.f32 %v1491, 0.0
      %v1516 = vmax.f32 %v1492, 0.0
      %v1517 = vmax.f32 %v1493, 0.0
      %v1518 = vmax.f32 %v1494, 0.0
      %v1519 = vmax.f32 %v1495, 0.0
      %v1520 = vmax.f32 %v1496, 0.0
      %v1521 = vmax.f32 %v1497, 0.0
      %v1522 = vmax.f32 %v1498, 0.0
      %v1523 = vmax.f32 %v1499, 0.0
      %v1524 = vmax.f32 %v1500, 0.0
      %v1525 = vmax.f32 %v1501, 0.0
      %v1526 = vpack.c.bf16 %v1504, %v1502
      %v1527 = vpack.c.bf16 %v1505, %v1503
      %v1528 = vpack.c.bf16 %v1508, %v1506
      %v1529 = vpack.c.bf16 %v1509, %v1507
      %v1530 = vpack.c.bf16 %v1512, %v1510
      %v1531 = vpack.c.bf16 %v1513, %v1511
      %v1532 = vpack.c.bf16 %v1516, %v1514
      %v1533 = vpack.c.bf16 %v1517, %v1515
      %v1534 = vpack.c.bf16 %v1520, %v1518
      %v1535 = vpack.c.bf16 %v1521, %v1519
      %v1536 = vpack.c.bf16 %v1524, %v1522
      %v1537 = vpack.c.bf16 %v1525, %v1523
      %v1538 = vmax.f32 %v1003, %v1276
      %v1539 = vmax.f32 %v1005, %v1278
      %v1540 = vmax.f32 %v1007, %v1280
      %v1541 = vmax.f32 %v1009, %v1282
      %v1542 = vmax.f32 %v1013, %v1286
      %v1543 = vmax.f32 %v1015, %v1288
      %v1544 = vmax.f32 %v1017, %v1290
      %v1545 = vmax.f32 %v1019, %v1292
      %v1546 = vmax.f32 %v1023, %v1296
      %v1547 = vmax.f32 %v1025, %v1298
      %v1548 = vmax.f32 %v1027, %v1300
      %v1549 = vmax.f32 %v1029, %v1302
      %v1550 = vmax.f32 %v1033, %v1306
      %v1551 = vmax.f32 %v1035, %v1308
      %v1552 = vmax.f32 %v1037, %v1310
      %v1553 = vmax.f32 %v1039, %v1312
      %v1554 = vmax.f32 %v1043, %v1316
      %v1555 = vmax.f32 %v1045, %v1318
      %v1556 = vmax.f32 %v1047, %v1320
      %v1557 = vmax.f32 %v1049, %v1322
      %v1558 = vmax.f32 %v1053, %v1326
      %v1559 = vmax.f32 %v1055, %v1328
      %v1560 = vmax.f32 %v1057, %v1330
      %v1561 = vmax.f32 %v1059, %v1332
      %v1562 = vmax.f32 %v1063, %v1336
      %v1563 = vmax.f32 %v1065, %v1338
      %v1564 = vmax.f32 %v1067, %v1340
      %v1565 = vmax.f32 %v1069, %v1342
      %v1566 = vmax.f32 %v1073, %v1346
      %v1567 = vmax.f32 %v1075, %v1348
      %v1568 = vmax.f32 %v1077, %v1350
      %v1569 = vmax.f32 %v1079, %v1352
      %v1570 = vmax.f32 %v1083, %v1356
      %v1571 = vmax.f32 %v1085, %v1358
      %v1572 = vmax.f32 %v1087, %v1360
      %v1573 = vmax.f32 %v1089, %v1362
      %v1574 = vmax.f32 %v1093, %v1366
      %v1575 = vmax.f32 %v1095, %v1368
      %v1576 = vmax.f32 %v1097, %v1370
      %v1577 = vmax.f32 %v1099, %v1372
      %v1578 = vmax.f32 %v1103, %v1376
      %v1579 = vmax.f32 %v1105, %v1378
      %v1580 = vmax.f32 %v1107, %v1380
      %v1581 = vmax.f32 %v1109, %v1382
      %v1582 = vmax.f32 %v1113, %v1386
      %v1583 = vmax.f32 %v1115, %v1388
      %v1584 = vmax.f32 %v1117, %v1390
      %v1585 = vmax.f32 %v1119, %v1392
      %v1586 = vmax.f32 %v1538, %v1562
      %v1587 = vmax.f32 %v1539, %v1563
      %v1588 = vmax.f32 %v1540, %v1564
      %v1589 = vmax.f32 %v1541, %v1565
      %v1590 = vmax.f32 %v1542, %v1566
      %v1591 = vmax.f32 %v1543, %v1567
      %v1592 = vmax.f32 %v1544, %v1568
      %v1593 = vmax.f32 %v1545, %v1569
      %v1594 = vmax.f32 %v1546, %v1570
      %v1595 = vmax.f32 %v1547, %v1571
      %v1596 = vmax.f32 %v1548, %v1572
      %v1597 = vmax.f32 %v1549, %v1573
      %v1598 = vmax.f32 %v1550, %v1574
      %v1599 = vmax.f32 %v1551, %v1575
      %v1600 = vmax.f32 %v1552, %v1576
      %v1601 = vmax.f32 %v1553, %v1577
      %v1602 = vmax.f32 %v1554, %v1578
      %v1603 = vmax.f32 %v1555, %v1579
      %v1604 = vmax.f32 %v1556, %v1580
      %v1605 = vmax.f32 %v1557, %v1581
      %v1606 = vmax.f32 %v1558, %v1582
      %v1607 = vmax.f32 %v1559, %v1583
      %v1608 = vmax.f32 %v1560, %v1584
      %v1609 = vmax.f32 %v1561, %v1585
      %v1610 = vadd.f32 %v1586, %v1471
      %v1611 = vadd.f32 %v1587, %v1475
      %v1612 = vadd.f32 %v1588, %v1471
      %v1613 = vadd.f32 %v1589, %v1475
      %v1614 = vadd.f32 %v1590, %v1471
      %v1615 = vadd.f32 %v1591, %v1475
      %v1616 = vadd.f32 %v1592, %v1471
      %v1617 = vadd.f32 %v1593, %v1475
      %v1618 = vadd.f32 %v1594, %v1471
      %v1619 = vadd.f32 %v1595, %v1475
      %v1620 = vadd.f32 %v1596, %v1471
      %v1621 = vadd.f32 %v1597, %v1475
      %v1622 = vadd.f32 %v1598, %v1471
      %v1623 = vadd.f32 %v1599, %v1475
      %v1624 = vadd.f32 %v1600, %v1471
      %v1625 = vadd.f32 %v1601, %v1475
      %v1626 = vadd.f32 %v1602, %v1471
      %v1627 = vadd.f32 %v1603, %v1475
      %v1628 = vadd.f32 %v1604, %v1471
      %v1629 = vadd.f32 %v1605, %v1475
      %v1630 = vadd.f32 %v1606, %v1471
      %v1631 = vadd.f32 %v1607, %v1475
      %v1632 = vadd.f32 %v1608, %v1471
      %v1633 = vadd.f32 %v1609, %v1475
      %v1634 = vmax.f32 %v1610, 0.0
      %v1635 = vmax.f32 %v1611, 0.0
      %v1636 = vmax.f32 %v1612, 0.0
      %v1637 = vmax.f32 %v1613, 0.0
      %v1638 = vmax.f32 %v1614, 0.0
      %v1639 = vmax.f32 %v1615, 0.0
      %v1640 = vmax.f32 %v1616, 0.0
      %v1641 = vmax.f32 %v1617, 0.0
      %v1642 = vmax.f32 %v1618, 0.0
      %v1643 = vmax.f32 %v1619, 0.0
      %v1644 = vmax.f32 %v1620, 0.0
      %v1645 = vmax.f32 %v1621, 0.0
      %v1646 = vmax.f32 %v1622, 0.0
      %v1647 = vmax.f32 %v1623, 0.0
      %v1648 = vmax.f32 %v1624, 0.0
      %v1649 = vmax.f32 %v1625, 0.0
      %v1650 = vmax.f32 %v1626, 0.0
      %v1651 = vmax.f32 %v1627, 0.0
      %v1652 = vmax.f32 %v1628, 0.0
      %v1653 = vmax.f32 %v1629, 0.0
      %v1654 = vmax.f32 %v1630, 0.0
      %v1655 = vmax.f32 %v1631, 0.0
      %v1656 = vmax.f32 %v1632, 0.0
      %v1657 = vmax.f32 %v1633, 0.0
      %v1658 = vpack.c.bf16 %v1636, %v1634
      %v1659 = vpack.c.bf16 %v1637, %v1635
      %v1660 = vpack.c.bf16 %v1640, %v1638
      %v1661 = vpack.c.bf16 %v1641, %v1639
      %v1662 = vpack.c.bf16 %v1644, %v1642
      %v1663 = vpack.c.bf16 %v1645, %v1643
      %v1664 = vpack.c.bf16 %v1648, %v1646
      %v1665 = vpack.c.bf16 %v1649, %v1647
      %v1666 = vpack.c.bf16 %v1652, %v1650
      %v1667 = vpack.c.bf16 %v1653, %v1651
      %v1668 = vpack.c.bf16 %v1656, %v1654
      %v1669 = vpack.c.bf16 %v1657, %v1655
      %1670 = vst [vmem:[#allocation2] sm:$0xff] %v1526
      %1671 = vst [vmem:[#allocation2 + $0x8] sm:$0xff] %v1527
      %1672 = vst [vmem:[#allocation2 + $0x50] sm:$0xff] %v1528
      %1673 = vst [vmem:[#allocation2 + $0x58] sm:$0xff] %v1529
      %1674 = vst [vmem:[#allocation2 + $0xa0] sm:$0xff] %v1530
      %1675 = vst [vmem:[#allocation2 + $0xa8] sm:$0xff] %v1531
      %1676 = vst [vmem:[#allocation2 + $0xf0] sm:$0xff] %v1532
      %1677 = vst [vmem:[#allocation2 + $0xf8] sm:$0xff] %v1533
      %1678 = vst [vmem:[#allocation2 + $0x10] sm:$0xff] %v1658
      %1679 = vst [vmem:[#allocation2 + $0x18] sm:$0xff] %v1659
      %1680 = vst [vmem:[#allocation2 + $0x60] sm:$0xff] %v1660
      %1681 = vst [vmem:[#allocation2 + $0x68] sm:$0xff] %v1661
      %1682 = vst [vmem:[#allocation2 + $0xb0] sm:$0xff] %v1662
      %1683 = vst [vmem:[#allocation2 + $0xb8] sm:$0xff] %v1663
      %1684 = vst [vmem:[#allocation2 + $0x100] sm:$0xff] %v1664
      %1685 = vst [vmem:[#allocation2 + $0x108] sm:$0xff] %v1665
      %1686 = vst [vmem:[#allocation2 + $0x20] sm:$0xff] %v1528
      %1687 = vst [vmem:[#allocation2 + $0x28] sm:$0xff] %v1529
      %1688 = vst [vmem:[#allocation2 + $0x70] sm:$0xff] %v1530
      %1689 = vst [vmem:[#allocation2 + $0x78] sm:$0xff] %v1531
      %1690 = vst [vmem:[#allocation2 + $0xc0] sm:$0xff] %v1532
      %1691 = vst [vmem:[#allocation2 + $0xc8] sm:$0xff] %v1533
      %1692 = vst [vmem:[#allocation2 + $0x110] sm:$0xff] %v1534
      %1693 = vst [vmem:[#allocation2 + $0x118] sm:$0xff] %v1535
      %1694 = vst [vmem:[#allocation2 + $0x30] sm:$0xff] %v1660
      %1695 = vst [vmem:[#allocation2 + $0x38] sm:$0xff] %v1661
      %1696 = vst [vmem:[#allocation2 + $0x80] sm:$0xff] %v1662
      %1697 = vst [vmem:[#allocation2 + $0x88] sm:$0xff] %v1663
      %1698 = vst [vmem:[#allocation2 + $0xd0] sm:$0xff] %v1664
      %1699 = vst [vmem:[#allocation2 + $0xd8] sm:$0xff] %v1665
      %1700 = vst [vmem:[#allocation2 + $0x120] sm:$0xff] %v1666
      %1701 = vst [vmem:[#allocation2 + $0x128] sm:$0xff] %v1667
      %1702 = vst [vmem:[#allocation2 + $0x40] sm:$0xff] %v1530
      %1703 = vst [vmem:[#allocation2 + $0x48] sm:$0xff] %v1531
      %1704 = vst [vmem:[#allocation2 + $0x90] sm:$0xff] %v1532
      %1705 = vst [vmem:[#allocation2 + $0x98] sm:$0xff] %v1533
      %1706 = vst [vmem:[#allocation2 + $0xe0] sm:$0xff] %v1534
      %1707 = vst [vmem:[#allocation2 + $0xe8] sm:$0xff] %v1535
      %1708 = vst [vmem:[#allocation2 + $0x130] sm:$0xff] %v1536
      %1709 = vst [vmem:[#allocation2 + $0x138] sm:$0xff] %v1537
      %1710 = vst [vmem:[#allocation2 + $0x140] sm:$0xff] %v1658
      %1711 = vst [vmem:[#allocation2 + $0x148] sm:$0xff] %v1659
      %1712 = vst [vmem:[#allocation2 + $0x190] sm:$0xff] %v1660
      %1713 = vst [vmem:[#allocation2 + $0x198] sm:$0xff] %v1661
      %1714 = vst [vmem:[#allocation2 + $0x1e0] sm:$0xff] %v1662
      %1715 = vst [vmem:[#allocation2 + $0x1e8] sm:$0xff] %v1663
      %1716 = vst [vmem:[#allocation2 + $0x230] sm:$0xff] %v1664
      %1717 = vst [vmem:[#allocation2 + $0x238] sm:$0xff] %v1665
      %1718 = vst [vmem:[#allocation2 + $0x150] sm:$0xff] %v1528
      %1719 = vst [vmem:[#allocation2 + $0x158] sm:$0xff] %v1529
      %1720 = vst [vmem:[#allocation2 + $0x1a0] sm:$0xff] %v1530
      %1721 = vst [vmem:[#allocation2 + $0x1a8] sm:$0xff] %v1531
      %1722 = vst [vmem:[#allocation2 + $0x1f0] sm:$0xff] %v1532
      %1723 = vst [vmem:[#allocation2 + $0x1f8] sm:$0xff] %v1533
      %1724 = vst [vmem:[#allocation2 + $0x240] sm:$0xff] %v1534
      %1725 = vst [vmem:[#allocation2 + $0x248] sm:$0xff] %v1535
      %1726 = vst [vmem:[#allocation2 + $0x160] sm:$0xff] %v1660
      %1727 = vst [vmem:[#allocation2 + $0x168] sm:$0xff] %v1661
      %1728 = vst [vmem:[#allocation2 + $0x1b0] sm:$0xff] %v1662
      %1729 = vst [vmem:[#allocation2 + $0x1b8] sm:$0xff] %v1663
      %1730 = vst [vmem:[#allocation2 + $0x200] sm:$0xff] %v1664
      %1731 = vst [vmem:[#allocation2 + $0x208] sm:$0xff] %v1665
      %1732 = vst [vmem:[#allocation2 + $0x250] sm:$0xff] %v1666
      %1733 = vst [vmem:[#allocation2 + $0x258] sm:$0xff] %v1667
      %1734 = vst [vmem:[#allocation2 + $0x170] sm:$0xff] %v1530
      %1735 = vst [vmem:[#allocation2 + $0x178] sm:$0xff] %v1531
      %1736 = vst [vmem:[#allocation2 + $0x1c0] sm:$0xff] %v1532
      %1737 = vst [vmem:[#allocation2 + $0x1c8] sm:$0xff] %v1533
      %1738 = vst [vmem:[#allocation2 + $0x210] sm:$0xff] %v1534
      %1739 = vst [vmem:[#allocation2 + $0x218] sm:$0xff] %v1535
      %1740 = vst [vmem:[#allocation2 + $0x260] sm:$0xff] %v1536
      %1741 = vst [vmem:[#allocation2 + $0x268] sm:$0xff] %v1537
      %1742 = vst [vmem:[#allocation2 + $0x180] sm:$0xff] %v1662
      %1743 = vst [vmem:[#allocation2 + $0x188] sm:$0xff] %v1663
      %1744 = vst [vmem:[#allocation2 + $0x1d0] sm:$0xff] %v1664
      %1745 = vst [vmem:[#allocation2 + $0x1d8] sm:$0xff] %v1665
      %1746 = vst [vmem:[#allocation2 + $0x220] sm:$0xff] %v1666
      %1747 = vst [vmem:[#allocation2 + $0x228] sm:$0xff] %v1667
      %1748 = vst [vmem:[#allocation2 + $0x270] sm:$0xff] %v1668
      %1749 = vst [vmem:[#allocation2 + $0x278] sm:$0xff] %v1669
      %v1750 = vld [vmem:[#allocation2] sm:$0xff]
      %v1751 = vld [vmem:[#allocation2 + $0x8] sm:$0xff]
      %v1752 = vld [vmem:[#allocation2 + $0x10] sm:$0xff]
      %v1753 = vld [vmem:[#allocation2 + $0x18] sm:$0xff]
      %v1754 = vld [vmem:[#allocation2 + $0x20] sm:$0xff]
      %v1755 = vld [vmem:[#allocation2 + $0x28] sm:$0xff]
      %v1756 = vld [vmem:[#allocation2 + $0x30] sm:$0xff]
      %v1757 = vld [vmem:[#allocation2 + $0x38] sm:$0xff]
      %v1758 = vld [vmem:[#allocation2 + $0x40] sm:$0xff]
      %v1759 = vld [vmem:[#allocation2 + $0x48] sm:$0xff]
      %v1760 = vld [vmem:[#allocation2 + $0x50] sm:$0xff]
      %v1761 = vld [vmem:[#allocation2 + $0x58] sm:$0xff]
      %v1762 = vld [vmem:[#allocation2 + $0x60] sm:$0xff]
      %v1763 = vld [vmem:[#allocation2 + $0x68] sm:$0xff]
      %v1764 = vld [vmem:[#allocation2 + $0x70] sm:$0xff]
      %v1765 = vld [vmem:[#allocation2 + $0x78] sm:$0xff]
      %v1766 = vld [vmem:[#allocation2 + $0x80] sm:$0xff]
      %v1767 = vld [vmem:[#allocation2 + $0x88] sm:$0xff]
      %v1768 = vld [vmem:[#allocation2 + $0x90] sm:$0xff]
      %v1769 = vld [vmem:[#allocation2 + $0x98] sm:$0xff]
      %v1770 = vld [vmem:[#allocation2 + $0xa0] sm:$0xff]
      %v1771 = vld [vmem:[#allocation2 + $0xa8] sm:$0xff]
      %v1772 = vld [vmem:[#allocation2 + $0xb0] sm:$0xff]
      %v1773 = vld [vmem:[#allocation2 + $0xb8] sm:$0xff]
      %v1774 = vld [vmem:[#allocation2 + $0xc0] sm:$0xff]
      %v1775 = vld [vmem:[#allocation2 + $0xc8] sm:$0xff]
      %v1776 = vld [vmem:[#allocation2 + $0xd0] sm:$0xff]
      %v1777 = vld [vmem:[#allocation2 + $0xd8] sm:$0xff]
      %v1778 = vld [vmem:[#allocation2 + $0xe0] sm:$0xff]
      %v1779 = vld [vmem:[#allocation2 + $0xe8] sm:$0xff]
      %v1780 = vld [vmem:[#allocation2 + $0xf0] sm:$0xff]
      %v1781 = vld [vmem:[#allocation2 + $0xf8] sm:$0xff]
      %v1782 = vld [vmem:[#allocation2 + $0x100] sm:$0xff]
      %v1783 = vld [vmem:[#allocation2 + $0x108] sm:$0xff]
      %v1784 = vld [vmem:[#allocation2 + $0x110] sm:$0xff]
      %v1785 = vld [vmem:[#allocation2 + $0x118] sm:$0xff]
      %v1786 = vld [vmem:[#allocation2 + $0x120] sm:$0xff]
      %v1787 = vld [vmem:[#allocation2 + $0x128] sm:$0xff]
      %v1788 = vld [vmem:[#allocation2 + $0x130] sm:$0xff]
      %v1789 = vld [vmem:[#allocation2 + $0x138] sm:$0xff]
      %v1790 = vld [vmem:[#allocation2 + $0x140] sm:$0xff]
      %v1791 = vld [vmem:[#allocation2 + $0x148] sm:$0xff]
      %v1792 = vld [vmem:[#allocation2 + $0x150] sm:$0xff]
      %v1793 = vld [vmem:[#allocation2 + $0x158] sm:$0xff]
      %v1794 = vld [vmem:[#allocation2 + $0x160] sm:$0xff]
      %v1795 = vld [vmem:[#allocation2 + $0x168] sm:$0xff]
      %v1796 = vld [vmem:[#allocation2 + $0x170] sm:$0xff]
      %v1797 = vld [vmem:[#allocation2 + $0x178] sm:$0xff]
      %v1798 = vld [vmem:[#allocation2 + $0x180] sm:$0xff]
      %v1799 = vld [vmem:[#allocation2 + $0x188] sm:$0xff]
      %v1800 = vld [vmem:[#allocation2 + $0x190] sm:$0xff]
      %v1801 = vld [vmem:[#allocation2 + $0x198] sm:$0xff]
      %v1802 = vld [vmem:[#allocation2 + $0x1a0] sm:$0xff]
      %v1803 = vld [vmem:[#allocation2 + $0x1a8] sm:$0xff]
      %v1804 = vld [vmem:[#allocation2 + $0x1b0] sm:$0xff]
      %v1805 = vld [vmem:[#allocation2 + $0x1b8] sm:$0xff]
      %v1806 = vld [vmem:[#allocation2 + $0x1c0] sm:$0xff]
      %v1807 = vld [vmem:[#allocation2 + $0x1c8] sm:$0xff]
      %v1808 = vld [vmem:[#allocation2 + $0x1d0] sm:$0xff]
      %v1809 = vld [vmem:[#allocation2 + $0x1d8] sm:$0xff]
      %v1810 = vld [vmem:[#allocation2 + $0x1e0] sm:$0xff]
      %v1811 = vld [vmem:[#allocation2 + $0x1e8] sm:$0xff]
      %v1812 = vld [vmem:[#allocation2 + $0x1f0] sm:$0xff]
      %v1813 = vld [vmem:[#allocation2 + $0x1f8] sm:$0xff]
      %v1814 = vld [vmem:[#allocation2 + $0x200] sm:$0xff]
      %v1815 = vld [vmem:[#allocation2 + $0x208] sm:$0xff]
      %v1816 = vld [vmem:[#allocation2 + $0x210] sm:$0xff]
      %v1817 = vld [vmem:[#allocation2 + $0x218] sm:$0xff]
      %v1818 = vld [vmem:[#allocation2 + $0x220] sm:$0xff]
      %v1819 = vld [vmem:[#allocation2 + $0x228] sm:$0xff]
      %v1820 = vld [vmem:[#allocation2 + $0x230] sm:$0xff]
      %v1821 = vld [vmem:[#allocation2 + $0x238] sm:$0xff]
      %v1822 = vld [vmem:[#allocation2 + $0x240] sm:$0xff]
      %v1823 = vld [vmem:[#allocation2 + $0x248] sm:$0xff]
      %v1824 = vld [vmem:[#allocation2 + $0x250] sm:$0xff]
      %v1825 = vld [vmem:[#allocation2 + $0x258] sm:$0xff]
      %v1826 = vld [vmem:[#allocation2 + $0x260] sm:$0xff]
      %v1827 = vld [vmem:[#allocation2 + $0x268] sm:$0xff]
      %v1828 = vld [vmem:[#allocation2 + $0x270] sm:$0xff]
      %v1829 = vld [vmem:[#allocation2 + $0x278] sm:$0xff]
      %v1830 = vld [vmem:[%s3] sm:$0xff]
      %v1831 = vld [vmem:[%s3 + $0x8] sm:$0xff]
      %v1832 = vld [vmem:[%s3 + $0x10] sm:$0xff]
      %v1833 = vld [vmem:[%s3 + $0x18] sm:$0xff]
      %v1834 = vld [vmem:[%s3 + $0x20] sm:$0xff]
      %v1835 = vld [vmem:[%s3 + $0x28] sm:$0xff]
      %v1836 = vld [vmem:[%s3 + $0x30] sm:$0xff]
      %v1837 = vld [vmem:[%s3 + $0x38] sm:$0xff]
      %v1838 = vld [vmem:[%s3 + $0x40] sm:$0xff]
      %v1839 = vld [vmem:[%s3 + $0x48] sm:$0xff]
      %v1840 = vld [vmem:[%s3 + $0x50] sm:$0xff]
      %v1841 = vld [vmem:[%s3 + $0x58] sm:$0xff]
      %v1842 = vld [vmem:[%s3 + $0x60] sm:$0xff]
      %v1843 = vld [vmem:[%s3 + $0x68] sm:$0xff]
      %v1844 = vld [vmem:[%s3 + $0x70] sm:$0xff]
      %v1845 = vld [vmem:[%s3 + $0x78] sm:$0xff]
      %v1846 = vld [vmem:[%s3 + $0x80] sm:$0xff]
      %v1847 = vld [vmem:[%s3 + $0x88] sm:$0xff]
      %v1848 = vld [vmem:[%s3 + $0x90] sm:$0xff]
      %v1849 = vld [vmem:[%s3 + $0x98] sm:$0xff]
      %v1850 = vld [vmem:[%s3 + $0xa0] sm:$0xff]
      %v1851 = vld [vmem:[%s3 + $0xa8] sm:$0xff]
      %v1852 = vld [vmem:[%s3 + $0xb0] sm:$0xff]
      %v1853 = vld [vmem:[%s3 + $0xb8] sm:$0xff]
      %v1854 = vld [vmem:[%s3 + $0xc0] sm:$0xff]
      %v1855 = vld [vmem:[%s3 + $0xc8] sm:$0xff]
      %v1856 = vld [vmem:[%s3 + $0xd0] sm:$0xff]
      %v1857 = vld [vmem:[%s3 + $0xd8] sm:$0xff]
      %v1858 = vld [vmem:[%s3 + $0xe0] sm:$0xff]
      %v1859 = vld [vmem:[%s3 + $0xe8] sm:$0xff]
      %v1860 = vld [vmem:[%s3 + $0xf0] sm:$0xff]
      %v1861 = vld [vmem:[%s3 + $0xf8] sm:$0xff]
      %v1862 = vld [vmem:[%s3 + $0x100] sm:$0xff]
      %v1863 = vld [vmem:[%s3 + $0x108] sm:$0xff]
      %v1864 = vld [vmem:[%s3 + $0x110] sm:$0xff]
      %v1865 = vld [vmem:[%s3 + $0x118] sm:$0xff]
      %v1866 = vld [vmem:[%s3 + $0x120] sm:$0xff]
      %v1867 = vld [vmem:[%s3 + $0x128] sm:$0xff]
      %v1868 = vld [vmem:[%s3 + $0x130] sm:$0xff]
      %v1869 = vld [vmem:[%s3 + $0x138] sm:$0xff]
      %v1870 = vld [vmem:[%s3 + $0x140] sm:$0xff]
      %v1871 = vld [vmem:[%s3 + $0x148] sm:$0xff]
      %v1872 = vld [vmem:[%s3 + $0x150] sm:$0xff]
      %v1873 = vld [vmem:[%s3 + $0x158] sm:$0xff]
      %v1874 = vld [vmem:[%s3 + $0x160] sm:$0xff]
      %v1875 = vld [vmem:[%s3 + $0x168] sm:$0xff]
      %v1876 = vld [vmem:[%s3 + $0x170] sm:$0xff]
      %v1877 = vld [vmem:[%s3 + $0x178] sm:$0xff]
      %v1878 = vld [vmem:[%s3 + $0x180] sm:$0xff]
      %v1879 = vld [vmem:[%s3 + $0x188] sm:$0xff]
      %v1880 = vld [vmem:[%s3 + $0x190] sm:$0xff]
      %v1881 = vld [vmem:[%s3 + $0x198] sm:$0xff]
      %v1882 = vld [vmem:[%s3 + $0x1a0] sm:$0xff]
      %v1883 = vld [vmem:[%s3 + $0x1a8] sm:$0xff]
      %v1884 = vld [vmem:[%s3 + $0x1b0] sm:$0xff]
      %v1885 = vld [vmem:[%s3 + $0x1b8] sm:$0xff]
      %v1886 = vld [vmem:[%s3 + $0x1c0] sm:$0xff]
      %v1887 = vld [vmem:[%s3 + $0x1c8] sm:$0xff]
      %v1888 = vld [vmem:[%s3 + $0x1d0] sm:$0xff]
      %v1889 = vld [vmem:[%s3 + $0x1d8] sm:$0xff]
      %v1890 = vld [vmem:[%s3 + $0x1e0] sm:$0xff]
      %v1891 = vld [vmem:[%s3 + $0x1e8] sm:$0xff]
      %v1892 = vld [vmem:[%s3 + $0x1f0] sm:$0xff]
      %v1893 = vld [vmem:[%s3 + $0x1f8] sm:$0xff]
      %v1894 = vld [vmem:[%s3 + $0x200] sm:$0xff]
      %v1895 = vld [vmem:[%s3 + $0x208] sm:$0xff]
      %v1896 = vld [vmem:[%s3 + $0x210] sm:$0xff]
      %v1897 = vld [vmem:[%s3 + $0x218] sm:$0xff]
      %v1898 = vld [vmem:[%s3 + $0x220] sm:$0xff]
      %v1899 = vld [vmem:[%s3 + $0x228] sm:$0xff]
      %v1900 = vld [vmem:[%s3 + $0x230] sm:$0xff]
      %v1901 = vld [vmem:[%s3 + $0x238] sm:$0xff]
      %v1902 = vld [vmem:[%s3 + $0x240] sm:$0xff]
      %v1903 = vld [vmem:[%s3 + $0x248] sm:$0xff]
      %v1904 = vld [vmem:[%s3 + $0x250] sm:$0xff]
      %v1905 = vld [vmem:[%s3 + $0x258] sm:$0xff]
      %v1906 = vld [vmem:[%s3 + $0x260] sm:$0xff]
      %v1907 = vld [vmem:[%s3 + $0x268] sm:$0xff]
      %v1908 = vld [vmem:[%s3 + $0x270] sm:$0xff]
      %v1909 = vld [vmem:[%s3 + $0x278] sm:$0xff]
      %v1910 = vld [vmem:[%s3 + $0x280] sm:$0xff]
      %v1911 = vld [vmem:[%s3 + $0x288] sm:$0xff]
      %v1912 = vld [vmem:[%s3 + $0x290] sm:$0xff]
      %v1913 = vld [vmem:[%s3 + $0x298] sm:$0xff]
      %v1914 = vld [vmem:[%s3 + $0x2a0] sm:$0xff]
      %v1915 = vld [vmem:[%s3 + $0x2a8] sm:$0xff]
      %v1916 = vld [vmem:[%s3 + $0x2b0] sm:$0xff]
      %v1917 = vld [vmem:[%s3 + $0x2b8] sm:$0xff]
      %v1918 = vld [vmem:[%s3 + $0x2c0] sm:$0xff]
      %v1919 = vld [vmem:[%s3 + $0x2c8] sm:$0xff]
      %v1920 = vld [vmem:[%s3 + $0x2d0] sm:$0xff]
      %v1921 = vld [vmem:[%s3 + $0x2d8] sm:$0xff]
      %v1922 = vld [vmem:[%s3 + $0x2e0] sm:$0xff]
      %v1923 = vld [vmem:[%s3 + $0x2e8] sm:$0xff]
      %v1924 = vld [vmem:[%s3 + $0x2f0] sm:$0xff]
      %v1925 = vld [vmem:[%s3 + $0x2f8] sm:$0xff]
      %v1926 = vld [vmem:[%s3 + $0x300] sm:$0xff]
      %v1927 = vld [vmem:[%s3 + $0x308] sm:$0xff]
      %v1928 = vld [vmem:[%s3 + $0x310] sm:$0xff]
      %v1929 = vld [vmem:[%s3 + $0x318] sm:$0xff]
      %v1930 = vld [vmem:[%s3 + $0x320] sm:$0xff]
      %v1931 = vld [vmem:[%s3 + $0x328] sm:$0xff]
      %v1932 = vld [vmem:[%s3 + $0x330] sm:$0xff]
      %v1933 = vld [vmem:[%s3 + $0x338] sm:$0xff]
      %v1934 = vld [vmem:[%s3 + $0x340] sm:$0xff]
      %v1935 = vld [vmem:[%s3 + $0x348] sm:$0xff]
      %v1936 = vld [vmem:[%s3 + $0x350] sm:$0xff]
      %v1937 = vld [vmem:[%s3 + $0x358] sm:$0xff]
      %v1938 = vld [vmem:[%s3 + $0x360] sm:$0xff]
      %v1939 = vld [vmem:[%s3 + $0x368] sm:$0xff]
      %v1940 = vld [vmem:[%s3 + $0x370] sm:$0xff]
      %v1941 = vld [vmem:[%s3 + $0x378] sm:$0xff]
      %v1942 = vld [vmem:[%s3 + $0x380] sm:$0xff]
      %v1943 = vld [vmem:[%s3 + $0x388] sm:$0xff]
      %v1944 = vld [vmem:[%s3 + $0x390] sm:$0xff]
      %v1945 = vld [vmem:[%s3 + $0x398] sm:$0xff]
      %v1946 = vld [vmem:[%s3 + $0x3a0] sm:$0xff]
      %v1947 = vld [vmem:[%s3 + $0x3a8] sm:$0xff]
      %v1948 = vld [vmem:[%s3 + $0x3b0] sm:$0xff]
      %v1949 = vld [vmem:[%s3 + $0x3b8] sm:$0xff]
      %v1950 = vld [vmem:[%s3 + $0x3c0] sm:$0xff]
      %v1951 = vld [vmem:[%s3 + $0x3c8] sm:$0xff]
      %v1952 = vld [vmem:[%s3 + $0x3d0] sm:$0xff]
      %v1953 = vld [vmem:[%s3 + $0x3d8] sm:$0xff]
      %v1954 = vld [vmem:[%s3 + $0x3e0] sm:$0xff]
      %v1955 = vld [vmem:[%s3 + $0x3e8] sm:$0xff]
      %v1956 = vld [vmem:[%s3 + $0x3f0] sm:$0xff]
      %v1957 = vld [vmem:[%s3 + $0x3f8] sm:$0xff]
      %v1958 = vld [vmem:[%s3 + $0x400] sm:$0xff]
      %v1959 = vld [vmem:[%s3 + $0x408] sm:$0xff]
      %v1960 = vld [vmem:[%s3 + $0x410] sm:$0xff]
      %v1961 = vld [vmem:[%s3 + $0x418] sm:$0xff]
      %v1962 = vld [vmem:[%s3 + $0x420] sm:$0xff]
      %v1963 = vld [vmem:[%s3 + $0x428] sm:$0xff]
      %v1964 = vld [vmem:[%s3 + $0x430] sm:$0xff]
      %v1965 = vld [vmem:[%s3 + $0x438] sm:$0xff]
      %v1966 = vld [vmem:[%s3 + $0x440] sm:$0xff]
      %v1967 = vld [vmem:[%s3 + $0x448] sm:$0xff]
      %v1968 = vld [vmem:[%s3 + $0x450] sm:$0xff]
      %v1969 = vld [vmem:[%s3 + $0x458] sm:$0xff]
      %v1970 = vld [vmem:[%s3 + $0x460] sm:$0xff]
      %v1971 = vld [vmem:[%s3 + $0x468] sm:$0xff]
      %v1972 = vld [vmem:[%s3 + $0x470] sm:$0xff]
      %v1973 = vld [vmem:[%s3 + $0x478] sm:$0xff]
      %v1974 = vld [vmem:[%s3 + $0x480] sm:$0xff]
      %v1975 = vld [vmem:[%s3 + $0x488] sm:$0xff]
      %v1976 = vld [vmem:[%s3 + $0x490] sm:$0xff]
      %v1977 = vld [vmem:[%s3 + $0x498] sm:$0xff]
      %v1978 = vld [vmem:[%s3 + $0x4a0] sm:$0xff]
      %v1979 = vld [vmem:[%s3 + $0x4a8] sm:$0xff]
      %v1980 = vld [vmem:[%s3 + $0x4b0] sm:$0xff]
      %v1981 = vld [vmem:[%s3 + $0x4b8] sm:$0xff]
      %v1982 = vld [vmem:[%s3 + $0x4c0] sm:$0xff]
      %v1983 = vld [vmem:[%s3 + $0x4c8] sm:$0xff]
      %v1984 = vld [vmem:[%s3 + $0x4d0] sm:$0xff]
      %v1985 = vld [vmem:[%s3 + $0x4d8] sm:$0xff]
      %v1986 = vld [vmem:[%s3 + $0x4e0] sm:$0xff]
      %v1987 = vld [vmem:[%s3 + $0x4e8] sm:$0xff]
      %v1988 = vld [vmem:[%s3 + $0x4f0] sm:$0xff]
      %v1989 = vld [vmem:[%s3 + $0x4f8] sm:$0xff]
      %v1990 = vld [vmem:[%s3 + $0x500] sm:$0xff]
      %v1991 = vld [vmem:[%s3 + $0x508] sm:$0xff]
      %v1992 = vld [vmem:[%s3 + $0x510] sm:$0xff]
      %v1993 = vld [vmem:[%s3 + $0x518] sm:$0xff]
      %v1994 = vld [vmem:[%s3 + $0x520] sm:$0xff]
      %v1995 = vld [vmem:[%s3 + $0x528] sm:$0xff]
      %v1996 = vld [vmem:[%s3 + $0x530] sm:$0xff]
      %v1997 = vld [vmem:[%s3 + $0x538] sm:$0xff]
      %v1998 = vld [vmem:[%s3 + $0x540] sm:$0xff]
      %v1999 = vld [vmem:[%s3 + $0x548] sm:$0xff]
      %v2000 = vld [vmem:[%s3 + $0x550] sm:$0xff]
      %v2001 = vld [vmem:[%s3 + $0x558] sm:$0xff]
      %v2002 = vld [vmem:[%s3 + $0x560] sm:$0xff]
      %v2003 = vld [vmem:[%s3 + $0x568] sm:$0xff]
      %v2004 = vld [vmem:[%s3 + $0x570] sm:$0xff]
      %v2005 = vld [vmem:[%s3 + $0x578] sm:$0xff]
      %v2006 = vld [vmem:[%s3 + $0x580] sm:$0xff]
      %v2007 = vld [vmem:[%s3 + $0x588] sm:$0xff]
      %v2008 = vld [vmem:[%s3 + $0x590] sm:$0xff]
      %v2009 = vld [vmem:[%s3 + $0x598] sm:$0xff]
      %v2010 = vld [vmem:[%s3 + $0x5a0] sm:$0xff]
      %v2011 = vld [vmem:[%s3 + $0x5a8] sm:$0xff]
      %v2012 = vld [vmem:[%s3 + $0x5b0] sm:$0xff]
      %v2013 = vld [vmem:[%s3 + $0x5b8] sm:$0xff]
      %v2014 = vld [vmem:[%s3 + $0x5c0] sm:$0xff]
      %v2015 = vld [vmem:[%s3 + $0x5c8] sm:$0xff]
      %v2016 = vld [vmem:[%s3 + $0x5d0] sm:$0xff]
      %v2017 = vld [vmem:[%s3 + $0x5d8] sm:$0xff]
      %v2018 = vld [vmem:[%s3 + $0x5e0] sm:$0xff]
      %v2019 = vld [vmem:[%s3 + $0x5e8] sm:$0xff]
      %v2020 = vld [vmem:[%s3 + $0x5f0] sm:$0xff]
      %v2021 = vld [vmem:[%s3 + $0x5f8] sm:$0xff]
      %v2022 = vld [vmem:[%s3 + $0x600] sm:$0xff]
      %v2023 = vld [vmem:[%s3 + $0x608] sm:$0xff]
      %v2024 = vld [vmem:[%s3 + $0x610] sm:$0xff]
      %v2025 = vld [vmem:[%s3 + $0x618] sm:$0xff]
      %v2026 = vld [vmem:[%s3 + $0x620] sm:$0xff]
      %v2027 = vld [vmem:[%s3 + $0x628] sm:$0xff]
      %v2028 = vld [vmem:[%s3 + $0x630] sm:$0xff]
      %v2029 = vld [vmem:[%s3 + $0x638] sm:$0xff]
      %v2030 = vld [vmem:[%s3 + $0x640] sm:$0xff]
      %v2031 = vld [vmem:[%s3 + $0x648] sm:$0xff]
      %v2032 = vld [vmem:[%s3 + $0x650] sm:$0xff]
      %v2033 = vld [vmem:[%s3 + $0x658] sm:$0xff]
      %v2034 = vld [vmem:[%s3 + $0x660] sm:$0xff]
      %v2035 = vld [vmem:[%s3 + $0x668] sm:$0xff]
      %v2036 = vld [vmem:[%s3 + $0x670] sm:$0xff]
      %v2037 = vld [vmem:[%s3 + $0x678] sm:$0xff]
      %v2038 = vld [vmem:[%s3 + $0x680] sm:$0xff]
      %v2039 = vld [vmem:[%s3 + $0x688] sm:$0xff]
      %v2040 = vld [vmem:[%s3 + $0x690] sm:$0xff]
      %v2041 = vld [vmem:[%s3 + $0x698] sm:$0xff]
      %v2042 = vld [vmem:[%s3 + $0x6a0] sm:$0xff]
      %v2043 = vld [vmem:[%s3 + $0x6a8] sm:$0xff]
      %v2044 = vld [vmem:[%s3 + $0x6b0] sm:$0xff]
      %v2045 = vld [vmem:[%s3 + $0x6b8] sm:$0xff]
      %v2046 = vld [vmem:[%s3 + $0x6c0] sm:$0xff]
      %v2047 = vld [vmem:[%s3 + $0x6c8] sm:$0xff]
      %v2048 = vld [vmem:[%s3 + $0x6d0] sm:$0xff]
      %v2049 = vld [vmem:[%s3 + $0x6d8] sm:$0xff]
      %v2050 = vld [vmem:[%s3 + $0x6e0] sm:$0xff]
      %v2051 = vld [vmem:[%s3 + $0x6e8] sm:$0xff]
      %v2052 = vld [vmem:[%s3 + $0x6f0] sm:$0xff]
      %v2053 = vld [vmem:[%s3 + $0x6f8] sm:$0xff]
      %v2054 = vld [vmem:[%s3 + $0x700] sm:$0xff]
      %v2055 = vld [vmem:[%s3 + $0x708] sm:$0xff]
      %v2056 = vld [vmem:[%s3 + $0x710] sm:$0xff]
      %v2057 = vld [vmem:[%s3 + $0x718] sm:$0xff]
      %v2058 = vld [vmem:[%s3 + $0x720] sm:$0xff]
      %v2059 = vld [vmem:[%s3 + $0x728] sm:$0xff]
      %v2060 = vld [vmem:[%s3 + $0x730] sm:$0xff]
      %v2061 = vld [vmem:[%s3 + $0x738] sm:$0xff]
      %v2062 = vld [vmem:[%s3 + $0x740] sm:$0xff]
      %v2063 = vld [vmem:[%s3 + $0x748] sm:$0xff]
      %v2064 = vld [vmem:[%s3 + $0x750] sm:$0xff]
      %v2065 = vld [vmem:[%s3 + $0x758] sm:$0xff]
      %v2066 = vld [vmem:[%s3 + $0x760] sm:$0xff]
      %v2067 = vld [vmem:[%s3 + $0x768] sm:$0xff]
      %v2068 = vld [vmem:[%s3 + $0x770] sm:$0xff]
      %v2069 = vld [vmem:[%s3 + $0x778] sm:$0xff]
      %v2070 = vld [vmem:[%s3 + $0x780] sm:$0xff]
      %v2071 = vld [vmem:[%s3 + $0x788] sm:$0xff]
      %v2072 = vld [vmem:[%s3 + $0x790] sm:$0xff]
      %v2073 = vld [vmem:[%s3 + $0x798] sm:$0xff]
      %v2074 = vld [vmem:[%s3 + $0x7a0] sm:$0xff]
      %v2075 = vld [vmem:[%s3 + $0x7a8] sm:$0xff]
      %v2076 = vld [vmem:[%s3 + $0x7b0] sm:$0xff]
      %v2077 = vld [vmem:[%s3 + $0x7b8] sm:$0xff]
      %v2078 = vld [vmem:[%s3 + $0x7c0] sm:$0xff]
      %v2079 = vld [vmem:[%s3 + $0x7c8] sm:$0xff]
      %v2080 = vld [vmem:[%s3 + $0x7d0] sm:$0xff]
      %v2081 = vld [vmem:[%s3 + $0x7d8] sm:$0xff]
      %v2082 = vld [vmem:[%s3 + $0x7e0] sm:$0xff]
      %v2083 = vld [vmem:[%s3 + $0x7e8] sm:$0xff]
      %v2084 = vld [vmem:[%s3 + $0x7f0] sm:$0xff]
      %v2085 = vld [vmem:[%s3 + $0x7f8] sm:$0xff]
      %v2086 = vld [vmem:[%s3 + $0x800] sm:$0xff]
      %v2087 = vld [vmem:[%s3 + $0x808] sm:$0xff]
      %v2088 = vld [vmem:[%s3 + $0x810] sm:$0xff]
      %v2089 = vld [vmem:[%s3 + $0x818] sm:$0xff]
      %v2090 = vld [vmem:[%s3 + $0x820] sm:$0xff]
      %v2091 = vld [vmem:[%s3 + $0x828] sm:$0xff]
      %v2092 = vld [vmem:[%s3 + $0x830] sm:$0xff]
      %v2093 = vld [vmem:[%s3 + $0x838] sm:$0xff]
      %v2094 = vld [vmem:[%s3 + $0x840] sm:$0xff]
      %v2095 = vld [vmem:[%s3 + $0x848] sm:$0xff]
      %v2096 = vld [vmem:[%s3 + $0x850] sm:$0xff]
      %v2097 = vld [vmem:[%s3 + $0x858] sm:$0xff]
      %v2098 = vld [vmem:[%s3 + $0x860] sm:$0xff]
      %v2099 = vld [vmem:[%s3 + $0x868] sm:$0xff]
      %v2100 = vld [vmem:[%s3 + $0x870] sm:$0xff]
      %v2101 = vld [vmem:[%s3 + $0x878] sm:$0xff]
      %v2102 = vld [vmem:[%s3 + $0x880] sm:$0xff]
      %v2103 = vld [vmem:[%s3 + $0x888] sm:$0xff]
      %v2104 = vld [vmem:[%s3 + $0x890] sm:$0xff]
      %v2105 = vld [vmem:[%s3 + $0x898] sm:$0xff]
      %v2106 = vld [vmem:[%s3 + $0x8a0] sm:$0xff]
      %v2107 = vld [vmem:[%s3 + $0x8a8] sm:$0xff]
      %v2108 = vld [vmem:[%s3 + $0x8b0] sm:$0xff]
      %v2109 = vld [vmem:[%s3 + $0x8b8] sm:$0xff]
      %v2110 = vld [vmem:[%s3 + $0x8c0] sm:$0xff]
      %v2111 = vld [vmem:[%s3 + $0x8c8] sm:$0xff]
      %v2112 = vld [vmem:[%s3 + $0x8d0] sm:$0xff]
      %v2113 = vld [vmem:[%s3 + $0x8d8] sm:$0xff]
      %v2114 = vld [vmem:[%s3 + $0x8e0] sm:$0xff]
      %v2115 = vld [vmem:[%s3 + $0x8e8] sm:$0xff]
      %v2116 = vld [vmem:[%s3 + $0x8f0] sm:$0xff]
      %v2117 = vld [vmem:[%s3 + $0x8f8] sm:$0xff]
      %v2118 = vld [vmem:[%s3 + $0x900] sm:$0xff]
      %v2119 = vld [vmem:[%s3 + $0x908] sm:$0xff]
      %v2120 = vld [vmem:[%s3 + $0x910] sm:$0xff]
      %v2121 = vld [vmem:[%s3 + $0x918] sm:$0xff]
      %v2122 = vld [vmem:[%s3 + $0x920] sm:$0xff]
      %v2123 = vld [vmem:[%s3 + $0x928] sm:$0xff]
      %v2124 = vld [vmem:[%s3 + $0x930] sm:$0xff]
      %v2125 = vld [vmem:[%s3 + $0x938] sm:$0xff]
      %v2126 = vld [vmem:[%s3 + $0x940] sm:$0xff]
      %v2127 = vld [vmem:[%s3 + $0x948] sm:$0xff]
      %v2128 = vld [vmem:[%s3 + $0x950] sm:$0xff]
      %v2129 = vld [vmem:[%s3 + $0x958] sm:$0xff]
      %v2130 = vld [vmem:[%s3 + $0x960] sm:$0xff]
      %v2131 = vld [vmem:[%s3 + $0x968] sm:$0xff]
      %v2132 = vld [vmem:[%s3 + $0x970] sm:$0xff]
      %v2133 = vld [vmem:[%s3 + $0x978] sm:$0xff]
      %v2134 = vld [vmem:[%s3 + $0x980] sm:$0xff]
      %v2135 = vld [vmem:[%s3 + $0x988] sm:$0xff]
      %v2136 = vld [vmem:[%s3 + $0x990] sm:$0xff]
      %v2137 = vld [vmem:[%s3 + $0x998] sm:$0xff]
      %v2138 = vld [vmem:[%s3 + $0x9a0] sm:$0xff]
      %v2139 = vld [vmem:[%s3 + $0x9a8] sm:$0xff]
      %v2140 = vld [vmem:[%s3 + $0x9b0] sm:$0xff]
      %v2141 = vld [vmem:[%s3 + $0x9b8] sm:$0xff]
      %v2142 = vld [vmem:[%s3 + $0x9c0] sm:$0xff]
      %v2143 = vld [vmem:[%s3 + $0x9c8] sm:$0xff]
      %v2144 = vld [vmem:[%s3 + $0x9d0] sm:$0xff]
      %v2145 = vld [vmem:[%s3 + $0x9d8] sm:$0xff]
      %v2146 = vld [vmem:[%s3 + $0x9e0] sm:$0xff]
      %v2147 = vld [vmem:[%s3 + $0x9e8] sm:$0xff]
      %v2148 = vld [vmem:[%s3 + $0x9f0] sm:$0xff]
      %v2149 = vld [vmem:[%s3 + $0x9f8] sm:$0xff]
      %v2470 = vunpack.c.l.b16 %v1830
      %v2471 = vunpack.c.h.b16 %v1830
      %v2472 = vunpack.c.l.b16 %v1831
      %v2473 = vunpack.c.h.b16 %v1831
      %v2474 = vunpack.c.l.b16 %v1832
      %v2475 = vunpack.c.h.b16 %v1832
      %v2476 = vunpack.c.l.b16 %v1833
      %v2477 = vunpack.c.h.b16 %v1833
      %v2478 = vunpack.c.l.b16 %v1834
      %v2479 = vunpack.c.h.b16 %v1834
      %v2480 = vunpack.c.l.b16 %v1835
      %v2481 = vunpack.c.h.b16 %v1835
      %v2482 = vunpack.c.l.b16 %v1836
      %v2483 = vunpack.c.h.b16 %v1836
      %v2484 = vunpack.c.l.b16 %v1837
      %v2485 = vunpack.c.h.b16 %v1837
      %v2486 = vunpack.c.l.b16 %v1838
      %v2487 = vunpack.c.h.b16 %v1838
      %v2488 = vunpack.c.l.b16 %v1839
      %v2489 = vunpack.c.h.b16 %v1839
      %v2490 = vunpack.c.l.b16 %v1840
      %v2491 = vunpack.c.h.b16 %v1840
      %v2492 = vunpack.c.l.b16 %v1841
      %v2493 = vunpack.c.h.b16 %v1841
      %v2494 = vunpack.c.l.b16 %v1842
      %v2495 = vunpack.c.h.b16 %v1842
      %v2496 = vunpack.c.l.b16 %v1843
      %v2497 = vunpack.c.h.b16 %v1843
      %v2498 = vunpack.c.l.b16 %v1844
      %v2499 = vunpack.c.h.b16 %v1844
      %v2500 = vunpack.c.l.b16 %v1845
      %v2501 = vunpack.c.h.b16 %v1845
      %v2502 = vunpack.c.l.b16 %v1846
      %v2503 = vunpack.c.h.b16 %v1846
      %v2504 = vunpack.c.l.b16 %v1847
      %v2505 = vunpack.c.h.b16 %v1847
      %v2506 = vunpack.c.l.b16 %v1848
      %v2507 = vunpack.c.h.b16 %v1848
      %v2508 = vunpack.c.l.b16 %v1849
      %v2509 = vunpack.c.h.b16 %v1849
      %v2510 = vunpack.c.l.b16 %v1850
      %v2511 = vunpack.c.h.b16 %v1850
      %v2512 = vunpack.c.l.b16 %v1851
      %v2513 = vunpack.c.h.b16 %v1851
      %v2514 = vunpack.c.l.b16 %v1852
      %v2515 = vunpack.c.h.b16 %v1852
      %v2516 = vunpack.c.l.b16 %v1853
      %v2517 = vunpack.c.h.b16 %v1853
      %v2518 = vunpack.c.l.b16 %v1854
      %v2519 = vunpack.c.h.b16 %v1854
      %v2520 = vunpack.c.l.b16 %v1855
      %v2521 = vunpack.c.h.b16 %v1855
      %v2522 = vunpack.c.l.b16 %v1856
      %v2523 = vunpack.c.h.b16 %v1856
      %v2524 = vunpack.c.l.b16 %v1857
      %v2525 = vunpack.c.h.b16 %v1857
      %v2526 = vunpack.c.l.b16 %v1858
      %v2527 = vunpack.c.h.b16 %v1858
      %v2528 = vunpack.c.l.b16 %v1859
      %v2529 = vunpack.c.h.b16 %v1859
      %v2530 = vunpack.c.l.b16 %v1860
      %v2531 = vunpack.c.h.b16 %v1860
      %v2532 = vunpack.c.l.b16 %v1861
      %v2533 = vunpack.c.h.b16 %v1861
      %v2534 = vunpack.c.l.b16 %v1862
      %v2535 = vunpack.c.h.b16 %v1862
      %v2536 = vunpack.c.l.b16 %v1863
      %v2537 = vunpack.c.h.b16 %v1863
      %v2538 = vunpack.c.l.b16 %v1864
      %v2539 = vunpack.c.h.b16 %v1864
      %v2540 = vunpack.c.l.b16 %v1865
      %v2541 = vunpack.c.h.b16 %v1865
      %v2542 = vunpack.c.l.b16 %v1866
      %v2543 = vunpack.c.h.b16 %v1866
      %v2544 = vunpack.c.l.b16 %v1867
      %v2545 = vunpack.c.h.b16 %v1867
      %v2546 = vunpack.c.l.b16 %v1868
      %v2547 = vunpack.c.h.b16 %v1868
      %v2548 = vunpack.c.l.b16 %v1869
      %v2549 = vunpack.c.h.b16 %v1869
      %v2550 = vunpack.c.l.b16 %v1870
      %v2551 = vunpack.c.h.b16 %v1870
      %v2552 = vunpack.c.l.b16 %v1871
      %v2553 = vunpack.c.h.b16 %v1871
      %v2554 = vunpack.c.l.b16 %v1872
      %v2555 = vunpack.c.h.b16 %v1872
      %v2556 = vunpack.c.l.b16 %v1873
      %v2557 = vunpack.c.h.b16 %v1873
      %v2558 = vunpack.c.l.b16 %v1874
      %v2559 = vunpack.c.h.b16 %v1874
      %v2560 = vunpack.c.l.b16 %v1875
      %v2561 = vunpack.c.h.b16 %v1875
      %v2562 = vunpack.c.l.b16 %v1876
      %v2563 = vunpack.c.h.b16 %v1876
      %v2564 = vunpack.c.l.b16 %v1877
      %v2565 = vunpack.c.h.b16 %v1877
      %v2566 = vunpack.c.l.b16 %v1878
      %v2567 = vunpack.c.h.b16 %v1878
      %v2568 = vunpack.c.l.b16 %v1879
      %v2569 = vunpack.c.h.b16 %v1879
      %v2570 = vunpack.c.l.b16 %v1880
      %v2571 = vunpack.c.h.b16 %v1880
      %v2572 = vunpack.c.l.b16 %v1881
      %v2573 = vunpack.c.h.b16 %v1881
      %v2574 = vunpack.c.l.b16 %v1882
      %v2575 = vunpack.c.h.b16 %v1882
      %v2576 = vunpack.c.l.b16 %v1883
      %v2577 = vunpack.c.h.b16 %v1883
      %v2578 = vunpack.c.l.b16 %v1884
      %v2579 = vunpack.c.h.b16 %v1884
      %v2580 = vunpack.c.l.b16 %v1885
      %v2581 = vunpack.c.h.b16 %v1885
      %v2582 = vunpack.c.l.b16 %v1886
      %v2583 = vunpack.c.h.b16 %v1886
      %v2584 = vunpack.c.l.b16 %v1887
      %v2585 = vunpack.c.h.b16 %v1887
      %v2586 = vunpack.c.l.b16 %v1888
      %v2587 = vunpack.c.h.b16 %v1888
      %v2588 = vunpack.c.l.b16 %v1889
      %v2589 = vunpack.c.h.b16 %v1889
      %v2590 = vunpack.c.l.b16 %v1890
      %v2591 = vunpack.c.h.b16 %v1890
      %v2592 = vunpack.c.l.b16 %v1891
      %v2593 = vunpack.c.h.b16 %v1891
      %v2594 = vunpack.c.l.b16 %v1892
      %v2595 = vunpack.c.h.b16 %v1892
      %v2596 = vunpack.c.l.b16 %v1893
      %v2597 = vunpack.c.h.b16 %v1893
      %v2598 = vunpack.c.l.b16 %v1894
      %v2599 = vunpack.c.h.b16 %v1894
      %v2600 = vunpack.c.l.b16 %v1895
      %v2601 = vunpack.c.h.b16 %v1895
      %v2602 = vunpack.c.l.b16 %v1896
      %v2603 = vunpack.c.h.b16 %v1896
      %v2604 = vunpack.c.l.b16 %v1897
      %v2605 = vunpack.c.h.b16 %v1897
      %v2606 = vunpack.c.l.b16 %v1898
      %v2607 = vunpack.c.h.b16 %v1898
      %v2608 = vunpack.c.l.b16 %v1899
      %v2609 = vunpack.c.h.b16 %v1899
      %v2610 = vunpack.c.l.b16 %v1900
      %v2611 = vunpack.c.h.b16 %v1900
      %v2612 = vunpack.c.l.b16 %v1901
      %v2613 = vunpack.c.h.b16 %v1901
      %v2614 = vunpack.c.l.b16 %v1902
      %v2615 = vunpack.c.h.b16 %v1902
      %v2616 = vunpack.c.l.b16 %v1903
      %v2617 = vunpack.c.h.b16 %v1903
      %v2618 = vunpack.c.l.b16 %v1904
      %v2619 = vunpack.c.h.b16 %v1904
      %v2620 = vunpack.c.l.b16 %v1905
      %v2621 = vunpack.c.h.b16 %v1905
      %v2622 = vunpack.c.l.b16 %v1906
      %v2623 = vunpack.c.h.b16 %v1906
      %v2624 = vunpack.c.l.b16 %v1907
      %v2625 = vunpack.c.h.b16 %v1907
      %v2626 = vunpack.c.l.b16 %v1908
      %v2627 = vunpack.c.h.b16 %v1908
      %v2628 = vunpack.c.l.b16 %v1909
      %v2629 = vunpack.c.h.b16 %v1909
      %v2630 = vunpack.c.l.b16 %v1910
      %v2631 = vunpack.c.h.b16 %v1910
      %v2632 = vunpack.c.l.b16 %v1911
      %v2633 = vunpack.c.h.b16 %v1911
      %v2634 = vunpack.c.l.b16 %v1912
      %v2635 = vunpack.c.h.b16 %v1912
      %v2636 = vunpack.c.l.b16 %v1913
      %v2637 = vunpack.c.h.b16 %v1913
      %v2638 = vunpack.c.l.b16 %v1914
      %v2639 = vunpack.c.h.b16 %v1914
      %v2640 = vunpack.c.l.b16 %v1915
      %v2641 = vunpack.c.h.b16 %v1915
      %v2642 = vunpack.c.l.b16 %v1916
      %v2643 = vunpack.c.h.b16 %v1916
      %v2644 = vunpack.c.l.b16 %v1917
      %v2645 = vunpack.c.h.b16 %v1917
      %v2646 = vunpack.c.l.b16 %v1918
      %v2647 = vunpack.c.h.b16 %v1918
      %v2648 = vunpack.c.l.b16 %v1919
      %v2649 = vunpack.c.h.b16 %v1919
      %v2650 = vunpack.c.l.b16 %v1920
      %v2651 = vunpack.c.h.b16 %v1920
      %v2652 = vunpack.c.l.b16 %v1921
      %v2653 = vunpack.c.h.b16 %v1921
      %v2654 = vunpack.c.l.b16 %v1922
      %v2655 = vunpack.c.h.b16 %v1922
      %v2656 = vunpack.c.l.b16 %v1923
      %v2657 = vunpack.c.h.b16 %v1923
      %v2658 = vunpack.c.l.b16 %v1924
      %v2659 = vunpack.c.h.b16 %v1924
      %v2660 = vunpack.c.l.b16 %v1925
      %v2661 = vunpack.c.h.b16 %v1925
      %v2662 = vunpack.c.l.b16 %v1926
      %v2663 = vunpack.c.h.b16 %v1926
      %v2664 = vunpack.c.l.b16 %v1927
      %v2665 = vunpack.c.h.b16 %v1927
      %v2666 = vunpack.c.l.b16 %v1928
      %v2667 = vunpack.c.h.b16 %v1928
      %v2668 = vunpack.c.l.b16 %v1929
      %v2669 = vunpack.c.h.b16 %v1929
      %v2670 = vunpack.c.l.b16 %v1930
      %v2671 = vunpack.c.h.b16 %v1930
      %v2672 = vunpack.c.l.b16 %v1931
      %v2673 = vunpack.c.h.b16 %v1931
      %v2674 = vunpack.c.l.b16 %v1932
      %v2675 = vunpack.c.h.b16 %v1932
      %v2676 = vunpack.c.l.b16 %v1933
      %v2677 = vunpack.c.h.b16 %v1933
      %v2678 = vunpack.c.l.b16 %v1934
      %v2679 = vunpack.c.h.b16 %v1934
      %v2680 = vunpack.c.l.b16 %v1935
      %v2681 = vunpack.c.h.b16 %v1935
      %v2682 = vunpack.c.l.b16 %v1936
      %v2683 = vunpack.c.h.b16 %v1936
      %v2684 = vunpack.c.l.b16 %v1937
      %v2685 = vunpack.c.h.b16 %v1937
      %v2686 = vunpack.c.l.b16 %v1938
      %v2687 = vunpack.c.h.b16 %v1938
      %v2688 = vunpack.c.l.b16 %v1939
      %v2689 = vunpack.c.h.b16 %v1939
      %v2690 = vunpack.c.l.b16 %v1940
      %v2691 = vunpack.c.h.b16 %v1940
      %v2692 = vunpack.c.l.b16 %v1941
      %v2693 = vunpack.c.h.b16 %v1941
      %v2694 = vunpack.c.l.b16 %v1942
      %v2695 = vunpack.c.h.b16 %v1942
      %v2696 = vunpack.c.l.b16 %v1943
      %v2697 = vunpack.c.h.b16 %v1943
      %v2698 = vunpack.c.l.b16 %v1944
      %v2699 = vunpack.c.h.b16 %v1944
      %v2700 = vunpack.c.l.b16 %v1945
      %v2701 = vunpack.c.h.b16 %v1945
      %v2702 = vunpack.c.l.b16 %v1946
      %v2703 = vunpack.c.h.b16 %v1946
      %v2704 = vunpack.c.l.b16 %v1947
      %v2705 = vunpack.c.h.b16 %v1947
      %v2706 = vunpack.c.l.b16 %v1948
      %v2707 = vunpack.c.h.b16 %v1948
      %v2708 = vunpack.c.l.b16 %v1949
      %v2709 = vunpack.c.h.b16 %v1949
      %v2710 = vunpack.c.l.b16 %v1950
      %v2711 = vunpack.c.h.b16 %v1950
      %v2712 = vunpack.c.l.b16 %v1951
      %v2713 = vunpack.c.h.b16 %v1951
      %v2714 = vunpack.c.l.b16 %v1952
      %v2715 = vunpack.c.h.b16 %v1952
      %v2716 = vunpack.c.l.b16 %v1953
      %v2717 = vunpack.c.h.b16 %v1953
      %v2718 = vunpack.c.l.b16 %v1954
      %v2719 = vunpack.c.h.b16 %v1954
      %v2720 = vunpack.c.l.b16 %v1955
      %v2721 = vunpack.c.h.b16 %v1955
      %v2722 = vunpack.c.l.b16 %v1956
      %v2723 = vunpack.c.h.b16 %v1956
      %v2724 = vunpack.c.l.b16 %v1957
      %v2725 = vunpack.c.h.b16 %v1957
      %v2726 = vunpack.c.l.b16 %v1958
      %v2727 = vunpack.c.h.b16 %v1958
      %v2728 = vunpack.c.l.b16 %v1959
      %v2729 = vunpack.c.h.b16 %v1959
      %v2730 = vunpack.c.l.b16 %v1960
      %v2731 = vunpack.c.h.b16 %v1960
      %v2732 = vunpack.c.l.b16 %v1961
      %v2733 = vunpack.c.h.b16 %v1961
      %v2734 = vunpack.c.l.b16 %v1962
      %v2735 = vunpack.c.h.b16 %v1962
      %v2736 = vunpack.c.l.b16 %v1963
      %v2737 = vunpack.c.h.b16 %v1963
      %v2738 = vunpack.c.l.b16 %v1964
      %v2739 = vunpack.c.h.b16 %v1964
      %v2740 = vunpack.c.l.b16 %v1965
      %v2741 = vunpack.c.h.b16 %v1965
      %v2742 = vunpack.c.l.b16 %v1966
      %v2743 = vunpack.c.h.b16 %v1966
      %v2744 = vunpack.c.l.b16 %v1967
      %v2745 = vunpack.c.h.b16 %v1967
      %v2746 = vunpack.c.l.b16 %v1968
      %v2747 = vunpack.c.h.b16 %v1968
      %v2748 = vunpack.c.l.b16 %v1969
      %v2749 = vunpack.c.h.b16 %v1969
      %v2750 = vunpack.c.l.b16 %v1970
      %v2751 = vunpack.c.h.b16 %v1970
      %v2752 = vunpack.c.l.b16 %v1971
      %v2753 = vunpack.c.h.b16 %v1971
      %v2754 = vunpack.c.l.b16 %v1972
      %v2755 = vunpack.c.h.b16 %v1972
      %v2756 = vunpack.c.l.b16 %v1973
      %v2757 = vunpack.c.h.b16 %v1973
      %v2758 = vunpack.c.l.b16 %v1974
      %v2759 = vunpack.c.h.b16 %v1974
      %v2760 = vunpack.c.l.b16 %v1975
      %v2761 = vunpack.c.h.b16 %v1975
      %v2762 = vunpack.c.l.b16 %v1976
      %v2763 = vunpack.c.h.b16 %v1976
      %v2764 = vunpack.c.l.b16 %v1977
      %v2765 = vunpack.c.h.b16 %v1977
      %v2766 = vunpack.c.l.b16 %v1978
      %v2767 = vunpack.c.h.b16 %v1978
      %v2768 = vunpack.c.l.b16 %v1979
      %v2769 = vunpack.c.h.b16 %v1979
      %v2770 = vunpack.c.l.b16 %v1980
      %v2771 = vunpack.c.h.b16 %v1980
      %v2772 = vunpack.c.l.b16 %v1981
      %v2773 = vunpack.c.h.b16 %v1981
      %v2774 = vunpack.c.l.b16 %v1982
      %v2775 = vunpack.c.h.b16 %v1982
      %v2776 = vunpack.c.l.b16 %v1983
      %v2777 = vunpack.c.h.b16 %v1983
      %v2778 = vunpack.c.l.b16 %v1984
      %v2779 = vunpack.c.h.b16 %v1984
      %v2780 = vunpack.c.l.b16 %v1985
      %v2781 = vunpack.c.h.b16 %v1985
      %v2782 = vunpack.c.l.b16 %v1986
      %v2783 = vunpack.c.h.b16 %v1986
      %v2784 = vunpack.c.l.b16 %v1987
      %v2785 = vunpack.c.h.b16 %v1987
      %v2786 = vunpack.c.l.b16 %v1988
      %v2787 = vunpack.c.h.b16 %v1988
      %v2788 = vunpack.c.l.b16 %v1989
      %v2789 = vunpack.c.h.b16 %v1989
      %v2790 = vunpack.c.l.b16 %v1990
      %v2791 = vunpack.c.h.b16 %v1990
      %v2792 = vunpack.c.l.b16 %v1991
      %v2793 = vunpack.c.h.b16 %v1991
      %v2794 = vunpack.c.l.b16 %v1992
      %v2795 = vunpack.c.h.b16 %v1992
      %v2796 = vunpack.c.l.b16 %v1993
      %v2797 = vunpack.c.h.b16 %v1993
      %v2798 = vunpack.c.l.b16 %v1994
      %v2799 = vunpack.c.h.b16 %v1994
      %v2800 = vunpack.c.l.b16 %v1995
      %v2801 = vunpack.c.h.b16 %v1995
      %v2802 = vunpack.c.l.b16 %v1996
      %v2803 = vunpack.c.h.b16 %v1996
      %v2804 = vunpack.c.l.b16 %v1997
      %v2805 = vunpack.c.h.b16 %v1997
      %v2806 = vunpack.c.l.b16 %v1998
      %v2807 = vunpack.c.h.b16 %v1998
      %v2808 = vunpack.c.l.b16 %v1999
      %v2809 = vunpack.c.h.b16 %v1999
      %v2810 = vunpack.c.l.b16 %v2000
      %v2811 = vunpack.c.h.b16 %v2000
      %v2812 = vunpack.c.l.b16 %v2001
      %v2813 = vunpack.c.h.b16 %v2001
      %v2814 = vunpack.c.l.b16 %v2002
      %v2815 = vunpack.c.h.b16 %v2002
      %v2816 = vunpack.c.l.b16 %v2003
      %v2817 = vunpack.c.h.b16 %v2003
      %v2818 = vunpack.c.l.b16 %v2004
      %v2819 = vunpack.c.h.b16 %v2004
      %v2820 = vunpack.c.l.b16 %v2005
      %v2821 = vunpack.c.h.b16 %v2005
      %v2822 = vunpack.c.l.b16 %v2006
      %v2823 = vunpack.c.h.b16 %v2006
      %v2824 = vunpack.c.l.b16 %v2007
      %v2825 = vunpack.c.h.b16 %v2007
      %v2826 = vunpack.c.l.b16 %v2008
      %v2827 = vunpack.c.h.b16 %v2008
      %v2828 = vunpack.c.l.b16 %v2009
      %v2829 = vunpack.c.h.b16 %v2009
      %v2830 = vunpack.c.l.b16 %v2010
      %v2831 = vunpack.c.h.b16 %v2010
      %v2832 = vunpack.c.l.b16 %v2011
      %v2833 = vunpack.c.h.b16 %v2011
      %v2834 = vunpack.c.l.b16 %v2012
      %v2835 = vunpack.c.h.b16 %v2012
      %v2836 = vunpack.c.l.b16 %v2013
      %v2837 = vunpack.c.h.b16 %v2013
      %v2838 = vunpack.c.l.b16 %v2014
      %v2839 = vunpack.c.h.b16 %v2014
      %v2840 = vunpack.c.l.b16 %v2015
      %v2841 = vunpack.c.h.b16 %v2015
      %v2842 = vunpack.c.l.b16 %v2016
      %v2843 = vunpack.c.h.b16 %v2016
      %v2844 = vunpack.c.l.b16 %v2017
      %v2845 = vunpack.c.h.b16 %v2017
      %v2846 = vunpack.c.l.b16 %v2018
      %v2847 = vunpack.c.h.b16 %v2018
      %v2848 = vunpack.c.l.b16 %v2019
      %v2849 = vunpack.c.h.b16 %v2019
      %v2850 = vunpack.c.l.b16 %v2020
      %v2851 = vunpack.c.h.b16 %v2020
      %v2852 = vunpack.c.l.b16 %v2021
      %v2853 = vunpack.c.h.b16 %v2021
      %v2854 = vunpack.c.l.b16 %v2022
      %v2855 = vunpack.c.h.b16 %v2022
      %v2856 = vunpack.c.l.b16 %v2023
      %v2857 = vunpack.c.h.b16 %v2023
      %v2858 = vunpack.c.l.b16 %v2024
      %v2859 = vunpack.c.h.b16 %v2024
      %v2860 = vunpack.c.l.b16 %v2025
      %v2861 = vunpack.c.h.b16 %v2025
      %v2862 = vunpack.c.l.b16 %v2026
      %v2863 = vunpack.c.h.b16 %v2026
      %v2864 = vunpack.c.l.b16 %v2027
      %v2865 = vunpack.c.h.b16 %v2027
      %v2866 = vunpack.c.l.b16 %v2028
      %v2867 = vunpack.c.h.b16 %v2028
      %v2868 = vunpack.c.l.b16 %v2029
      %v2869 = vunpack.c.h.b16 %v2029
      %v2870 = vunpack.c.l.b16 %v2030
      %v2871 = vunpack.c.h.b16 %v2030
      %v2872 = vunpack.c.l.b16 %v2031
      %v2873 = vunpack.c.h.b16 %v2031
      %v2874 = vunpack.c.l.b16 %v2032
      %v2875 = vunpack.c.h.b16 %v2032
      %v2876 = vunpack.c.l.b16 %v2033
      %v2877 = vunpack.c.h.b16 %v2033
      %v2878 = vunpack.c.l.b16 %v2034
      %v2879 = vunpack.c.h.b16 %v2034
      %v2880 = vunpack.c.l.b16 %v2035
      %v2881 = vunpack.c.h.b16 %v2035
      %v2882 = vunpack.c.l.b16 %v2036
      %v2883 = vunpack.c.h.b16 %v2036
      %v2884 = vunpack.c.l.b16 %v2037
      %v2885 = vunpack.c.h.b16 %v2037
      %v2886 = vunpack.c.l.b16 %v2038
      %v2887 = vunpack.c.h.b16 %v2038
      %v2888 = vunpack.c.l.b16 %v2039
      %v2889 = vunpack.c.h.b16 %v2039
      %v2890 = vunpack.c.l.b16 %v2040
      %v2891 = vunpack.c.h.b16 %v2040
      %v2892 = vunpack.c.l.b16 %v2041
      %v2893 = vunpack.c.h.b16 %v2041
      %v2894 = vunpack.c.l.b16 %v2042
      %v2895 = vunpack.c.h.b16 %v2042
      %v2896 = vunpack.c.l.b16 %v2043
      %v2897 = vunpack.c.h.b16 %v2043
      %v2898 = vunpack.c.l.b16 %v2044
      %v2899 = vunpack.c.h.b16 %v2044
      %v2900 = vunpack.c.l.b16 %v2045
      %v2901 = vunpack.c.h.b16 %v2045
      %v2902 = vunpack.c.l.b16 %v2046
      %v2903 = vunpack.c.h.b16 %v2046
      %v2904 = vunpack.c.l.b16 %v2047
      %v2905 = vunpack.c.h.b16 %v2047
      %v2906 = vunpack.c.l.b16 %v2048
      %v2907 = vunpack.c.h.b16 %v2048
      %v2908 = vunpack.c.l.b16 %v2049
      %v2909 = vunpack.c.h.b16 %v2049
      %v2910 = vunpack.c.l.b16 %v2050
      %v2911 = vunpack.c.h.b16 %v2050
      %v2912 = vunpack.c.l.b16 %v2051
      %v2913 = vunpack.c.h.b16 %v2051
      %v2914 = vunpack.c.l.b16 %v2052
      %v2915 = vunpack.c.h.b16 %v2052
      %v2916 = vunpack.c.l.b16 %v2053
      %v2917 = vunpack.c.h.b16 %v2053
      %v2918 = vunpack.c.l.b16 %v2054
      %v2919 = vunpack.c.h.b16 %v2054
      %v2920 = vunpack.c.l.b16 %v2055
      %v2921 = vunpack.c.h.b16 %v2055
      %v2922 = vunpack.c.l.b16 %v2056
      %v2923 = vunpack.c.h.b16 %v2056
      %v2924 = vunpack.c.l.b16 %v2057
      %v2925 = vunpack.c.h.b16 %v2057
      %v2926 = vunpack.c.l.b16 %v2058
      %v2927 = vunpack.c.h.b16 %v2058
      %v2928 = vunpack.c.l.b16 %v2059
      %v2929 = vunpack.c.h.b16 %v2059
      %v2930 = vunpack.c.l.b16 %v2060
      %v2931 = vunpack.c.h.b16 %v2060
      %v2932 = vunpack.c.l.b16 %v2061
      %v2933 = vunpack.c.h.b16 %v2061
      %v2934 = vunpack.c.l.b16 %v2062
      %v2935 = vunpack.c.h.b16 %v2062
      %v2936 = vunpack.c.l.b16 %v2063
      %v2937 = vunpack.c.h.b16 %v2063
      %v2938 = vunpack.c.l.b16 %v2064
      %v2939 = vunpack.c.h.b16 %v2064
      %v2940 = vunpack.c.l.b16 %v2065
      %v2941 = vunpack.c.h.b16 %v2065
      %v2942 = vunpack.c.l.b16 %v2066
      %v2943 = vunpack.c.h.b16 %v2066
      %v2944 = vunpack.c.l.b16 %v2067
      %v2945 = vunpack.c.h.b16 %v2067
      %v2946 = vunpack.c.l.b16 %v2068
      %v2947 = vunpack.c.h.b16 %v2068
      %v2948 = vunpack.c.l.b16 %v2069
      %v2949 = vunpack.c.h.b16 %v2069
      %v2950 = vunpack.c.l.b16 %v2070
      %v2951 = vunpack.c.h.b16 %v2070
      %v2952 = vunpack.c.l.b16 %v2071
      %v2953 = vunpack.c.h.b16 %v2071
      %v2954 = vunpack.c.l.b16 %v2072
      %v2955 = vunpack.c.h.b16 %v2072
      %v2956 = vunpack.c.l.b16 %v2073
      %v2957 = vunpack.c.h.b16 %v2073
      %v2958 = vunpack.c.l.b16 %v2074
      %v2959 = vunpack.c.h.b16 %v2074
      %v2960 = vunpack.c.l.b16 %v2075
      %v2961 = vunpack.c.h.b16 %v2075
      %v2962 = vunpack.c.l.b16 %v2076
      %v2963 = vunpack.c.h.b16 %v2076
      %v2964 = vunpack.c.l.b16 %v2077
      %v2965 = vunpack.c.h.b16 %v2077
      %v2966 = vunpack.c.l.b16 %v2078
      %v2967 = vunpack.c.h.b16 %v2078
      %v2968 = vunpack.c.l.b16 %v2079
      %v2969 = vunpack.c.h.b16 %v2079
      %v2970 = vunpack.c.l.b16 %v2080
      %v2971 = vunpack.c.h.b16 %v2080
      %v2972 = vunpack.c.l.b16 %v2081
      %v2973 = vunpack.c.h.b16 %v2081
      %v2974 = vunpack.c.l.b16 %v2082
      %v2975 = vunpack.c.h.b16 %v2082
      %v2976 = vunpack.c.l.b16 %v2083
      %v2977 = vunpack.c.h.b16 %v2083
      %v2978 = vunpack.c.l.b16 %v2084
      %v2979 = vunpack.c.h.b16 %v2084
      %v2980 = vunpack.c.l.b16 %v2085
      %v2981 = vunpack.c.h.b16 %v2085
      %v2982 = vunpack.c.l.b16 %v2086
      %v2983 = vunpack.c.h.b16 %v2086
      %v2984 = vunpack.c.l.b16 %v2087
      %v2985 = vunpack.c.h.b16 %v2087
      %v2986 = vunpack.c.l.b16 %v2088
      %v2987 = vunpack.c.h.b16 %v2088
      %v2988 = vunpack.c.l.b16 %v2089
      %v2989 = vunpack.c.h.b16 %v2089
      %v2990 = vunpack.c.l.b16 %v2090
      %v2991 = vunpack.c.h.b16 %v2090
      %v2992 = vunpack.c.l.b16 %v2091
      %v2993 = vunpack.c.h.b16 %v2091
      %v2994 = vunpack.c.l.b16 %v2092
      %v2995 = vunpack.c.h.b16 %v2092
      %v2996 = vunpack.c.l.b16 %v2093
      %v2997 = vunpack.c.h.b16 %v2093
      %v2998 = vunpack.c.l.b16 %v2094
      %v2999 = vunpack.c.h.b16 %v2094
      %v3000 = vunpack.c.l.b16 %v2095
      %v3001 = vunpack.c.h.b16 %v2095
      %v3002 = vunpack.c.l.b16 %v2096
      %v3003 = vunpack.c.h.b16 %v2096
      %v3004 = vunpack.c.l.b16 %v2097
      %v3005 = vunpack.c.h.b16 %v2097
      %v3006 = vunpack.c.l.b16 %v2098
      %v3007 = vunpack.c.h.b16 %v2098
      %v3008 = vunpack.c.l.b16 %v2099
      %v3009 = vunpack.c.h.b16 %v2099
      %v3010 = vunpack.c.l.b16 %v2100
      %v3011 = vunpack.c.h.b16 %v2100
      %v3012 = vunpack.c.l.b16 %v2101
      %v3013 = vunpack.c.h.b16 %v2101
      %v3014 = vunpack.c.l.b16 %v2102
      %v3015 = vunpack.c.h.b16 %v2102
      %v3016 = vunpack.c.l.b16 %v2103
      %v3017 = vunpack.c.h.b16 %v2103
      %v3018 = vunpack.c.l.b16 %v2104
      %v3019 = vunpack.c.h.b16 %v2104
      %v3020 = vunpack.c.l.b16 %v2105
      %v3021 = vunpack.c.h.b16 %v2105
      %v3022 = vunpack.c.l.b16 %v2106
      %v3023 = vunpack.c.h.b16 %v2106
      %v3024 = vunpack.c.l.b16 %v2107
      %v3025 = vunpack.c.h.b16 %v2107
      %v3026 = vunpack.c.l.b16 %v2108
      %v3027 = vunpack.c.h.b16 %v2108
      %v3028 = vunpack.c.l.b16 %v2109
      %v3029 = vunpack.c.h.b16 %v2109
      %v3030 = vunpack.c.l.b16 %v2110
      %v3031 = vunpack.c.h.b16 %v2110
      %v3032 = vunpack.c.l.b16 %v2111
      %v3033 = vunpack.c.h.b16 %v2111
      %v3034 = vunpack.c.l.b16 %v2112
      %v3035 = vunpack.c.h.b16 %v2112
      %v3036 = vunpack.c.l.b16 %v2113
      %v3037 = vunpack.c.h.b16 %v2113
      %v3038 = vunpack.c.l.b16 %v2114
      %v3039 = vunpack.c.h.b16 %v2114
      %v3040 = vunpack.c.l.b16 %v2115
      %v3041 = vunpack.c.h.b16 %v2115
      %v3042 = vunpack.c.l.b16 %v2116
      %v3043 = vunpack.c.h.b16 %v2116
      %v3044 = vunpack.c.l.b16 %v2117
      %v3045 = vunpack.c.h.b16 %v2117
      %v3046 = vunpack.c.l.b16 %v2118
      %v3047 = vunpack.c.h.b16 %v2118
      %v3048 = vunpack.c.l.b16 %v2119
      %v3049 = vunpack.c.h.b16 %v2119
      %v3050 = vunpack.c.l.b16 %v2120
      %v3051 = vunpack.c.h.b16 %v2120
      %v3052 = vunpack.c.l.b16 %v2121
      %v3053 = vunpack.c.h.b16 %v2121
      %v3054 = vunpack.c.l.b16 %v2122
      %v3055 = vunpack.c.h.b16 %v2122
      %v3056 = vunpack.c.l.b16 %v2123
      %v3057 = vunpack.c.h.b16 %v2123
      %v3058 = vunpack.c.l.b16 %v2124
      %v3059 = vunpack.c.h.b16 %v2124
      %v3060 = vunpack.c.l.b16 %v2125
      %v3061 = vunpack.c.h.b16 %v2125
      %v3062 = vunpack.c.l.b16 %v2126
      %v3063 = vunpack.c.h.b16 %v2126
      %v3064 = vunpack.c.l.b16 %v2127
      %v3065 = vunpack.c.h.b16 %v2127
      %v3066 = vunpack.c.l.b16 %v2128
      %v3067 = vunpack.c.h.b16 %v2128
      %v3068 = vunpack.c.l.b16 %v2129
      %v3069 = vunpack.c.h.b16 %v2129
      %v3070 = vunpack.c.l.b16 %v2130
      %v3071 = vunpack.c.h.b16 %v2130
      %v3072 = vunpack.c.l.b16 %v2131
      %v3073 = vunpack.c.h.b16 %v2131
      %v3074 = vunpack.c.l.b16 %v2132
      %v3075 = vunpack.c.h.b16 %v2132
      %v3076 = vunpack.c.l.b16 %v2133
      %v3077 = vunpack.c.h.b16 %v2133
      %v3078 = vunpack.c.l.b16 %v2134
      %v3079 = vunpack.c.h.b16 %v2134
      %v3080 = vunpack.c.l.b16 %v2135
      %v3081 = vunpack.c.h.b16 %v2135
      %v3082 = vunpack.c.l.b16 %v2136
      %v3083 = vunpack.c.h.b16 %v2136
      %v3084 = vunpack.c.l.b16 %v2137
      %v3085 = vunpack.c.h.b16 %v2137
      %v3086 = vunpack.c.l.b16 %v2138
      %v3087 = vunpack.c.h.b16 %v2138
      %v3088 = vunpack.c.l.b16 %v2139
      %v3089 = vunpack.c.h.b16 %v2139
      %v3090 = vunpack.c.l.b16 %v2140
      %v3091 = vunpack.c.h.b16 %v2140
      %v3092 = vunpack.c.l.b16 %v2141
      %v3093 = vunpack.c.h.b16 %v2141
      %v3094 = vunpack.c.l.b16 %v2142
      %v3095 = vunpack.c.h.b16 %v2142
      %v3096 = vunpack.c.l.b16 %v2143
      %v3097 = vunpack.c.h.b16 %v2143
      %v3098 = vunpack.c.l.b16 %v2144
      %v3099 = vunpack.c.h.b16 %v2144
      %v3100 = vunpack.c.l.b16 %v2145
      %v3101 = vunpack.c.h.b16 %v2145
      %v3102 = vunpack.c.l.b16 %v2146
      %v3103 = vunpack.c.h.b16 %v2146
      %v3104 = vunpack.c.l.b16 %v2147
      %v3105 = vunpack.c.h.b16 %v2147
      %v3106 = vunpack.c.l.b16 %v2148
      %v3107 = vunpack.c.h.b16 %v2148
      %v3108 = vunpack.c.l.b16 %v2149
      %v3109 = vunpack.c.h.b16 %v2149
      %v3110 = vpack.c.b16 %v2474, %v2470
      %v3111 = vpack.c.b16 %v2475, %v2471
      %v3112 = vpack.c.b16 %v2476, %v2472
      %v3113 = vpack.c.b16 %v2477, %v2473
      %v3114 = vpack.c.b16 %v2482, %v2478
      %v3115 = vpack.c.b16 %v2483, %v2479
      %v3116 = vpack.c.b16 %v2484, %v2480
      %v3117 = vpack.c.b16 %v2485, %v2481
      %v3118 = vpack.c.b16 %v2490, %v2486
      %v3119 = vpack.c.b16 %v2491, %v2487
      %v3120 = vpack.c.b16 %v2492, %v2488
      %v3121 = vpack.c.b16 %v2493, %v2489
      %v3122 = vpack.c.b16 %v2498, %v2494
      %v3123 = vpack.c.b16 %v2499, %v2495
      %v3124 = vpack.c.b16 %v2500, %v2496
      %v3125 = vpack.c.b16 %v2501, %v2497
      %v3126 = vpack.c.b16 %v2506, %v2502
      %v3127 = vpack.c.b16 %v2507, %v2503
      %v3128 = vpack.c.b16 %v2508, %v2504
      %v3129 = vpack.c.b16 %v2509, %v2505
      %v3130 = vpack.c.b16 %v2514, %v2510
      %v3131 = vpack.c.b16 %v2515, %v2511
      %v3132 = vpack.c.b16 %v2516, %v2512
      %v3133 = vpack.c.b16 %v2517, %v2513
      %v3134 = vpack.c.b16 %v2522, %v2518
      %v3135 = vpack.c.b16 %v2523, %v2519
      %v3136 = vpack.c.b16 %v2524, %v2520
      %v3137 = vpack.c.b16 %v2525, %v2521
      %v3138 = vpack.c.b16 %v2530, %v2526
      %v3139 = vpack.c.b16 %v2531, %v2527
      %v3140 = vpack.c.b16 %v2532, %v2528
      %v3141 = vpack.c.b16 %v2533, %v2529
      %v3142 = vpack.c.b16 %v2538, %v2534
      %v3143 = vpack.c.b16 %v2539, %v2535
      %v3144 = vpack.c.b16 %v2540, %v2536
      %v3145 = vpack.c.b16 %v2541, %v2537
      %v3146 = vpack.c.b16 %v2546, %v2542
      %v3147 = vpack.c.b16 %v2547, %v2543
      %v3148 = vpack.c.b16 %v2548, %v2544
      %v3149 = vpack.c.b16 %v2549, %v2545
      %v3150 = vpack.c.b16 %v2554, %v2550
      %v3151 = vpack.c.b16 %v2555, %v2551
      %v3152 = vpack.c.b16 %v2556, %v2552
      %v3153 = vpack.c.b16 %v2557, %v2553
      %v3154 = vpack.c.b16 %v2562, %v2558
      %v3155 = vpack.c.b16 %v2563, %v2559
      %v3156 = vpack.c.b16 %v2564, %v2560
      %v3157 = vpack.c.b16 %v2565, %v2561
      %v3158 = vpack.c.b16 %v2570, %v2566
      %v3159 = vpack.c.b16 %v2571, %v2567
      %v3160 = vpack.c.b16 %v2572, %v2568
      %v3161 = vpack.c.b16 %v2573, %v2569
      %v3162 = vpack.c.b16 %v2578, %v2574
      %v3163 = vpack.c.b16 %v2579, %v2575
      %v3164 = vpack.c.b16 %v2580, %v2576
      %v3165 = vpack.c.b16 %v2581, %v2577
      %v3166 = vpack.c.b16 %v2586, %v2582
      %v3167 = vpack.c.b16 %v2587, %v2583
      %v3168 = vpack.c.b16 %v2588, %v2584
      %v3169 = vpack.c.b16 %v2589, %v2585
      %v3170 = vpack.c.b16 %v2594, %v2590
      %v3171 = vpack.c.b16 %v2595, %v2591
      %v3172 = vpack.c.b16 %v2596, %v2592
      %v3173 = vpack.c.b16 %v2597, %v2593
      %v3174 = vpack.c.b16 %v2602, %v2598
      %v3175 = vpack.c.b16 %v2603, %v2599
      %v3176 = vpack.c.b16 %v2604, %v2600
      %v3177 = vpack.c.b16 %v2605, %v2601
      %v3178 = vpack.c.b16 %v2610, %v2606
      %v3179 = vpack.c.b16 %v2611, %v2607
      %v3180 = vpack.c.b16 %v2612, %v2608
      %v3181 = vpack.c.b16 %v2613, %v2609
      %v3182 = vpack.c.b16 %v2618, %v2614
      %v3183 = vpack.c.b16 %v2619, %v2615
      %v3184 = vpack.c.b16 %v2620, %v2616
      %v3185 = vpack.c.b16 %v2621, %v2617
      %v3186 = vpack.c.b16 %v2626, %v2622
      %v3187 = vpack.c.b16 %v2627, %v2623
      %v3188 = vpack.c.b16 %v2628, %v2624
      %v3189 = vpack.c.b16 %v2629, %v2625
      %v3190 = vpack.c.b16 %v2634, %v2630
      %v3191 = vpack.c.b16 %v2635, %v2631
      %v3192 = vpack.c.b16 %v2636, %v2632
      %v3193 = vpack.c.b16 %v2637, %v2633
      %v3194 = vpack.c.b16 %v2642, %v2638
      %v3195 = vpack.c.b16 %v2643, %v2639
      %v3196 = vpack.c.b16 %v2644, %v2640
      %v3197 = vpack.c.b16 %v2645, %v2641
      %v3198 = vpack.c.b16 %v2650, %v2646
      %v3199 = vpack.c.b16 %v2651, %v2647
      %v3200 = vpack.c.b16 %v2652, %v2648
      %v3201 = vpack.c.b16 %v2653, %v2649
      %v3202 = vpack.c.b16 %v2658, %v2654
      %v3203 = vpack.c.b16 %v2659, %v2655
      %v3204 = vpack.c.b16 %v2660, %v2656
      %v3205 = vpack.c.b16 %v2661, %v2657
      %v3206 = vpack.c.b16 %v2666, %v2662
      %v3207 = vpack.c.b16 %v2667, %v2663
      %v3208 = vpack.c.b16 %v2668, %v2664
      %v3209 = vpack.c.b16 %v2669, %v2665
      %v3210 = vpack.c.b16 %v2674, %v2670
      %v3211 = vpack.c.b16 %v2675, %v2671
      %v3212 = vpack.c.b16 %v2676, %v2672
      %v3213 = vpack.c.b16 %v2677, %v2673
      %v3214 = vpack.c.b16 %v2682, %v2678
      %v3215 = vpack.c.b16 %v2683, %v2679
      %v3216 = vpack.c.b16 %v2684, %v2680
      %v3217 = vpack.c.b16 %v2685, %v2681
      %v3218 = vpack.c.b16 %v2690, %v2686
      %v3219 = vpack.c.b16 %v2691, %v2687
      %v3220 = vpack.c.b16 %v2692, %v2688
      %v3221 = vpack.c.b16 %v2693, %v2689
      %v3222 = vpack.c.b16 %v2698, %v2694
      %v3223 = vpack.c.b16 %v2699, %v2695
      %v3224 = vpack.c.b16 %v2700, %v2696
      %v3225 = vpack.c.b16 %v2701, %v2697
      %v3226 = vpack.c.b16 %v2706, %v2702
      %v3227 = vpack.c.b16 %v2707, %v2703
      %v3228 = vpack.c.b16 %v2708, %v2704
      %v3229 = vpack.c.b16 %v2709, %v2705
      %v3230 = vpack.c.b16 %v2714, %v2710
      %v3231 = vpack.c.b16 %v2715, %v2711
      %v3232 = vpack.c.b16 %v2716, %v2712
      %v3233 = vpack.c.b16 %v2717, %v2713
      %v3234 = vpack.c.b16 %v2722, %v2718
      %v3235 = vpack.c.b16 %v2723, %v2719
      %v3236 = vpack.c.b16 %v2724, %v2720
      %v3237 = vpack.c.b16 %v2725, %v2721
      %v3238 = vpack.c.b16 %v2730, %v2726
      %v3239 = vpack.c.b16 %v2731, %v2727
      %v3240 = vpack.c.b16 %v2732, %v2728
      %v3241 = vpack.c.b16 %v2733, %v2729
      %v3242 = vpack.c.b16 %v2738, %v2734
      %v3243 = vpack.c.b16 %v2739, %v2735
      %v3244 = vpack.c.b16 %v2740, %v2736
      %v3245 = vpack.c.b16 %v2741, %v2737
      %v3246 = vpack.c.b16 %v2746, %v2742
      %v3247 = vpack.c.b16 %v2747, %v2743
      %v3248 = vpack.c.b16 %v2748, %v2744
      %v3249 = vpack.c.b16 %v2749, %v2745
      %v3250 = vpack.c.b16 %v2754, %v2750
      %v3251 = vpack.c.b16 %v2755, %v2751
      %v3252 = vpack.c.b16 %v2756, %v2752
      %v3253 = vpack.c.b16 %v2757, %v2753
      %v3254 = vpack.c.b16 %v2762, %v2758
      %v3255 = vpack.c.b16 %v2763, %v2759
      %v3256 = vpack.c.b16 %v2764, %v2760
      %v3257 = vpack.c.b16 %v2765, %v2761
      %v3258 = vpack.c.b16 %v2770, %v2766
      %v3259 = vpack.c.b16 %v2771, %v2767
      %v3260 = vpack.c.b16 %v2772, %v2768
      %v3261 = vpack.c.b16 %v2773, %v2769
      %v3262 = vpack.c.b16 %v2778, %v2774
      %v3263 = vpack.c.b16 %v2779, %v2775
      %v3264 = vpack.c.b16 %v2780, %v2776
      %v3265 = vpack.c.b16 %v2781, %v2777
      %v3266 = vpack.c.b16 %v2786, %v2782
      %v3267 = vpack.c.b16 %v2787, %v2783
      %v3268 = vpack.c.b16 %v2788, %v2784
      %v3269 = vpack.c.b16 %v2789, %v2785
      %v3270 = vpack.c.b16 %v2794, %v2790
      %v3271 = vpack.c.b16 %v2795, %v2791
      %v3272 = vpack.c.b16 %v2796, %v2792
      %v3273 = vpack.c.b16 %v2797, %v2793
      %v3274 = vpack.c.b16 %v2802, %v2798
      %v3275 = vpack.c.b16 %v2803, %v2799
      %v3276 = vpack.c.b16 %v2804, %v2800
      %v3277 = vpack.c.b16 %v2805, %v2801
      %v3278 = vpack.c.b16 %v2810, %v2806
      %v3279 = vpack.c.b16 %v2811, %v2807
      %v3280 = vpack.c.b16 %v2812, %v2808
      %v3281 = vpack.c.b16 %v2813, %v2809
      %v3282 = vpack.c.b16 %v2818, %v2814
      %v3283 = vpack.c.b16 %v2819, %v2815
      %v3284 = vpack.c.b16 %v2820, %v2816
      %v3285 = vpack.c.b16 %v2821, %v2817
      %v3286 = vpack.c.b16 %v2826, %v2822
      %v3287 = vpack.c.b16 %v2827, %v2823
      %v3288 = vpack.c.b16 %v2828, %v2824
      %v3289 = vpack.c.b16 %v2829, %v2825
      %v3290 = vpack.c.b16 %v2834, %v2830
      %v3291 = vpack.c.b16 %v2835, %v2831
      %v3292 = vpack.c.b16 %v2836, %v2832
      %v3293 = vpack.c.b16 %v2837, %v2833
      %v3294 = vpack.c.b16 %v2842, %v2838
      %v3295 = vpack.c.b16 %v2843, %v2839
      %v3296 = vpack.c.b16 %v2844, %v2840
      %v3297 = vpack.c.b16 %v2845, %v2841
      %v3298 = vpack.c.b16 %v2850, %v2846
      %v3299 = vpack.c.b16 %v2851, %v2847
      %v3300 = vpack.c.b16 %v2852, %v2848
      %v3301 = vpack.c.b16 %v2853, %v2849
      %v3302 = vpack.c.b16 %v2858, %v2854
      %v3303 = vpack.c.b16 %v2859, %v2855
      %v3304 = vpack.c.b16 %v2860, %v2856
      %v3305 = vpack.c.b16 %v2861, %v2857
      %v3306 = vpack.c.b16 %v2866, %v2862
      %v3307 = vpack.c.b16 %v2867, %v2863
      %v3308 = vpack.c.b16 %v2868, %v2864
      %v3309 = vpack.c.b16 %v2869, %v2865
      %v3310 = vpack.c.b16 %v2874, %v2870
      %v3311 = vpack.c.b16 %v2875, %v2871
      %v3312 = vpack.c.b16 %v2876, %v2872
      %v3313 = vpack.c.b16 %v2877, %v2873
      %v3314 = vpack.c.b16 %v2882, %v2878
      %v3315 = vpack.c.b16 %v2883, %v2879
      %v3316 = vpack.c.b16 %v2884, %v2880
      %v3317 = vpack.c.b16 %v2885, %v2881
      %v3318 = vpack.c.b16 %v2890, %v2886
      %v3319 = vpack.c.b16 %v2891, %v2887
      %v3320 = vpack.c.b16 %v2892, %v2888
      %v3321 = vpack.c.b16 %v2893, %v2889
      %v3322 = vpack.c.b16 %v2898, %v2894
      %v3323 = vpack.c.b16 %v2899, %v2895
      %v3324 = vpack.c.b16 %v2900, %v2896
      %v3325 = vpack.c.b16 %v2901, %v2897
      %v3326 = vpack.c.b16 %v2906, %v2902
      %v3327 = vpack.c.b16 %v2907, %v2903
      %v3328 = vpack.c.b16 %v2908, %v2904
      %v3329 = vpack.c.b16 %v2909, %v2905
      %v3330 = vpack.c.b16 %v2914, %v2910
      %v3331 = vpack.c.b16 %v2915, %v2911
      %v3332 = vpack.c.b16 %v2916, %v2912
      %v3333 = vpack.c.b16 %v2917, %v2913
      %v3334 = vpack.c.b16 %v2922, %v2918
      %v3335 = vpack.c.b16 %v2923, %v2919
      %v3336 = vpack.c.b16 %v2924, %v2920
      %v3337 = vpack.c.b16 %v2925, %v2921
      %v3338 = vpack.c.b16 %v2930, %v2926
      %v3339 = vpack.c.b16 %v2931, %v2927
      %v3340 = vpack.c.b16 %v2932, %v2928
      %v3341 = vpack.c.b16 %v2933, %v2929
      %v3342 = vpack.c.b16 %v2938, %v2934
      %v3343 = vpack.c.b16 %v2939, %v2935
      %v3344 = vpack.c.b16 %v2940, %v2936
      %v3345 = vpack.c.b16 %v2941, %v2937
      %v3346 = vpack.c.b16 %v2946, %v2942
      %v3347 = vpack.c.b16 %v2947, %v2943
      %v3348 = vpack.c.b16 %v2948, %v2944
      %v3349 = vpack.c.b16 %v2949, %v2945
      %v3350 = vpack.c.b16 %v2954, %v2950
      %v3351 = vpack.c.b16 %v2955, %v2951
      %v3352 = vpack.c.b16 %v2956, %v2952
      %v3353 = vpack.c.b16 %v2957, %v2953
      %v3354 = vpack.c.b16 %v2962, %v2958
      %v3355 = vpack.c.b16 %v2963, %v2959
      %v3356 = vpack.c.b16 %v2964, %v2960
      %v3357 = vpack.c.b16 %v2965, %v2961
      %v3358 = vpack.c.b16 %v2970, %v2966
      %v3359 = vpack.c.b16 %v2971, %v2967
      %v3360 = vpack.c.b16 %v2972, %v2968
      %v3361 = vpack.c.b16 %v2973, %v2969
      %v3362 = vpack.c.b16 %v2978, %v2974
      %v3363 = vpack.c.b16 %v2979, %v2975
      %v3364 = vpack.c.b16 %v2980, %v2976
      %v3365 = vpack.c.b16 %v2981, %v2977
      %v3366 = vpack.c.b16 %v2986, %v2982
      %v3367 = vpack.c.b16 %v2987, %v2983
      %v3368 = vpack.c.b16 %v2988, %v2984
      %v3369 = vpack.c.b16 %v2989, %v2985
      %v3370 = vpack.c.b16 %v2994, %v2990
      %v3371 = vpack.c.b16 %v2995, %v2991
      %v3372 = vpack.c.b16 %v2996, %v2992
      %v3373 = vpack.c.b16 %v2997, %v2993
      %v3374 = vpack.c.b16 %v3002, %v2998
      %v3375 = vpack.c.b16 %v3003, %v2999
      %v3376 = vpack.c.b16 %v3004, %v3000
      %v3377 = vpack.c.b16 %v3005, %v3001
      %v3378 = vpack.c.b16 %v3010, %v3006
      %v3379 = vpack.c.b16 %v3011, %v3007
      %v3380 = vpack.c.b16 %v3012, %v3008
      %v3381 = vpack.c.b16 %v3013, %v3009
      %v3382 = vpack.c.b16 %v3018, %v3014
      %v3383 = vpack.c.b16 %v3019, %v3015
      %v3384 = vpack.c.b16 %v3020, %v3016
      %v3385 = vpack.c.b16 %v3021, %v3017
      %v3386 = vpack.c.b16 %v3026, %v3022
      %v3387 = vpack.c.b16 %v3027, %v3023
      %v3388 = vpack.c.b16 %v3028, %v3024
      %v3389 = vpack.c.b16 %v3029, %v3025
      %v3390 = vpack.c.b16 %v3034, %v3030
      %v3391 = vpack.c.b16 %v3035, %v3031
      %v3392 = vpack.c.b16 %v3036, %v3032
      %v3393 = vpack.c.b16 %v3037, %v3033
      %v3394 = vpack.c.b16 %v3042, %v3038
      %v3395 = vpack.c.b16 %v3043, %v3039
      %v3396 = vpack.c.b16 %v3044, %v3040
      %v3397 = vpack.c.b16 %v3045, %v3041
      %v3398 = vpack.c.b16 %v3050, %v3046
      %v3399 = vpack.c.b16 %v3051, %v3047
      %v3400 = vpack.c.b16 %v3052, %v3048
      %v3401 = vpack.c.b16 %v3053, %v3049
      %v3402 = vpack.c.b16 %v3058, %v3054
      %v3403 = vpack.c.b16 %v3059, %v3055
      %v3404 = vpack.c.b16 %v3060, %v3056
      %v3405 = vpack.c.b16 %v3061, %v3057
      %v3406 = vpack.c.b16 %v3066, %v3062
      %v3407 = vpack.c.b16 %v3067, %v3063
      %v3408 = vpack.c.b16 %v3068, %v3064
      %v3409 = vpack.c.b16 %v3069, %v3065
      %v3410 = vpack.c.b16 %v3074, %v3070
      %v3411 = vpack.c.b16 %v3075, %v3071
      %v3412 = vpack.c.b16 %v3076, %v3072
      %v3413 = vpack.c.b16 %v3077, %v3073
      %v3414 = vpack.c.b16 %v3082, %v3078
      %v3415 = vpack.c.b16 %v3083, %v3079
      %v3416 = vpack.c.b16 %v3084, %v3080
      %v3417 = vpack.c.b16 %v3085, %v3081
      %v3418 = vpack.c.b16 %v3090, %v3086
      %v3419 = vpack.c.b16 %v3091, %v3087
      %v3420 = vpack.c.b16 %v3092, %v3088
      %v3421 = vpack.c.b16 %v3093, %v3089
      %v3422 = vpack.c.b16 %v3098, %v3094
      %v3423 = vpack.c.b16 %v3099, %v3095
      %v3424 = vpack.c.b16 %v3100, %v3096
      %v3425 = vpack.c.b16 %v3101, %v3097
      %v3426 = vpack.c.b16 %v3106, %v3102
      %v3427 = vpack.c.b16 %v3107, %v3103
      %v3428 = vpack.c.b16 %v3108, %v3104
      %v3429 = vpack.c.b16 %v3109, %v3105
      %3750 = vmatprep.subr.bf16.mxu0 %v3111
      %3751 = vmatpush1.bf16.msra.mxu0 %v3110
      %3752 = vmatprep.subr.bf16.mxu0 %v3115
      %3753 = vmatpush1.bf16.msra.mxu0 %v3114
      %3754 = vmatprep.subr.bf16.mxu0 %v3119
      %3755 = vmatpush1.bf16.msra.mxu0 %v3118
      %3756 = vmatprep.subr.bf16.mxu0 %v3123
      %3757 = vmatpush1.bf16.msra.mxu0 %v3122
      %3758 = vmatprep.subr.bf16.mxu0 %v3127
      %3759 = vmatpush1.bf16.msra.mxu0 %v3126
      %3760 = vmatprep.subr.bf16.mxu0 %v3131
      %3761 = vmatpush1.bf16.msra.mxu0 %v3130
      %3762 = vmatprep.subr.bf16.mxu0 %v3135
      %3763 = vmatpush1.bf16.msra.mxu0 %v3134
      %3764 = vmatprep.subr.bf16.mxu0 %v3139
      %3765 = vmatpush1.bf16.msra.mxu0 %v3138
      %3766 = vmatprep.subr.bf16.mxu0 %v3143
      %3767 = vmatpush1.bf16.msra.mxu0 %v3142
      %3768 = vmatprep.subr.bf16.mxu0 %v3147
      %3769 = vmatpush1.bf16.msra.mxu0 %v3146
      %3770 = vmatprep.subr.bf16.mxu0 %v3151
      %3771 = vmatpush1.bf16.msra.mxu0 %v3150
      %3772 = vmatprep.subr.bf16.mxu0 %v3155
      %3773 = vmatpush1.bf16.msra.mxu0 %v3154
      %3774 = vmatprep.subr.bf16.mxu0 %v3159
      %3775 = vmatpush1.bf16.msra.mxu0 %v3158
      %3776 = vmatprep.subr.bf16.mxu0 %v3163
      %3777 = vmatpush1.bf16.msra.mxu0 %v3162
      %3778 = vmatprep.subr.bf16.mxu0 %v3167
      %3779 = vmatpush1.bf16.msra.mxu0 %v3166
      %3780 = vmatprep.subr.bf16.mxu0 %v3171
      %3781 = vmatpush1.bf16.msra.mxu0 %v3170
      %3782 = vmatprep.mubr.bf16.mxu0 %v1751
      %3783 = vmatmul.mubr.bf16.gmra.mrb[0].mxu0 %v1750
      %v3784 = vpop.f32.mrb[0].mxu0
      %v3785 = vadd.f32 0.0, %v3784
      %v3786 = vpop.f32.mrb[0].mxu0
      %v3787 = vadd.f32 0.0, %v3786
      %v3788 = vpop.f32.mrb[0].mxu0
      %v3789 = vadd.f32 0.0, %v3788
      %v3790 = vpop.f32.mrb[0].mxu0
      %v3791 = vadd.f32 0.0, %v3790
      %3792 = vmatprep.mubr.bf16.mxu0 %v1761
      %3793 = vmatmul.mubr.bf16.gmra.mrb[0].mxu0 %v1760
      %v3794 = vpop.f32.mrb[0].mxu0
      %v3795 = vadd.f32 0.0, %v3794
      %v3796 = vpop.f32.mrb[0].mxu0
      %v3797 = vadd.f32 0.0, %v3796
      %v3798 = vpop.f32.mrb[0].mxu0
      %v3799 = vadd.f32 0.0, %v3798
      %v3800 = vpop.f32.mrb[0].mxu0
      %v3801 = vadd.f32 0.0, %v3800
      %3802 = vmatprep.mubr.bf16.mxu0 %v1771
      %3803 = vmatmul.mubr.bf16.gmra.mrb[0].mxu0 %v1770
      %v3804 = vpop.f32.mrb[0].mxu0
      %v3805 = vadd.f32 0.0, %v3804
      %v3806 = vpop.f32.mrb[0].mxu0
      %v3807 = vadd.f32 0.0, %v3806
      %v3808 = vpop.f32.mrb[0].mxu0
      %v3809 = vadd.f32 0.0, %v3808
      %v3810 = vpop.f32.mrb[0].mxu0
      %v3811 = vadd.f32 0.0, %v3810
      %3812 = vmatprep.mubr.bf16.mxu0 %v1781
      %3813 = vmatmul.mubr.bf16.gmra.mrb[0].mxu0 %v1780
      %v3814 = vpop.f32.mrb[0].mxu0
      %v3815 = vadd.f32 0.0, %v3814
      %v3816 = vpop.f32.mrb[0].mxu0
      %v3817 = vadd.f32 0.0, %v3816
      %v3818 = vpop.f32.mrb[0].mxu0
      %v3819 = vadd.f32 0.0, %v3818
      %v3820 = vpop.f32.mrb[0].mxu0
      %v3821 = vadd.f32 0.0, %v3820
      %3822 = vmatprep.mubr.bf16.mxu0 %v1791
      %3823 = vmatmul.mubr.bf16.gmra.mrb[0].mxu0 %v1790
      %v3824 = vpop.f32.mrb[0].mxu0
      %v3825 = vadd.f32 0.0, %v3824
      %v3826 = vpop.f32.mrb[0].mxu0
      %v3827 = vadd.f32 0.0, %v3826
      %v3828 = vpop.f32.mrb[0].mxu0
      %v3829 = vadd.f32 0.0, %v3828
      %v3830 = vpop.f32.mrb[0].mxu0
      %v3831 = vadd.f32 0.0, %v3830
      %3832 = vmatprep.mubr.bf16.mxu0 %v1801
      %3833 = vmatmul.mubr.bf16.gmra.mrb[0].mxu0 %v1800
      %v3834 = vpop.f32.mrb[0].mxu0
      %v3835 = vadd.f32 0.0, %v3834
      %v3836 = vpop.f32.mrb[0].mxu0
      %v3837 = vadd.f32 0.0, %v3836
      %v3838 = vpop.f32.mrb[0].mxu0
      %v3839 = vadd.f32 0.0, %v3838
      %v3840 = vpop.f32.mrb[0].mxu0
      %v3841 = vadd.f32 0.0, %v3840
      %3842 = vmatprep.mubr.bf16.mxu0 %v1811
      %3843 = vmatmul.mubr.bf16.gmra.mrb[0].mxu0 %v1810
      %v3844 = vpop.f32.mrb[0].mxu0
      %v3845 = vadd.f32 0.0, %v3844
      %v3846 = vpop.f32.mrb[0].mxu0
      %v3847 = vadd.f32 0.0, %v3846
      %v3848 = vpop.f32.mrb[0].mxu0
      %v3849 = vadd.f32 0.0, %v3848
      %v3850 = vpop.f32.mrb[0].mxu0
      %v3851 = vadd.f32 0.0, %v3850
      %3852 = vmatprep.mubr.bf16.mxu0 %v1821
      %3853 = vmatmul.mubr.bf16.gmra.mrb[0].mxu0 %v1820
      %v3854 = vpop.f32.mrb[0].mxu0
      %v3855 = vadd.f32 0.0, %v3854
      %v3856 = vpop.f32.mrb[0].mxu0
      %v3857 = vadd.f32 0.0, %v3856
      %v3858 = vpop.f32.mrb[0].mxu0
      %v3859 = vadd.f32 0.0, %v3858
      %v3860 = vpop.f32.mrb[0].mxu0
      %v3861 = vadd.f32 0.0, %v3860
      %3862 = vdwg.mxu0
      %3863 = vmatprep.subr.bf16.mxu0 %v3175
      %3864 = vmatpush1.bf16.msra.mxu0 %v3174
      %3865 = vmatprep.subr.bf16.mxu0 %v3179
      %3866 = vmatpush1.bf16.msra.mxu0 %v3178
      %3867 = vmatprep.subr.bf16.mxu0 %v3183
      %3868 = vmatpush1.bf16.msra.mxu0 %v3182
      %3869 = vmatprep.subr.bf16.mxu0 %v3187
      %3870 = vmatpush1.bf16.msra.mxu0 %v3186
      %3871 = vmatprep.subr.bf16.mxu0 %v3191
      %3872 = vmatpush1.bf16.msra.mxu0 %v3190
      %3873 = vmatprep.subr.bf16.mxu0 %v3195
      %3874 = vmatpush1.bf16.msra.mxu0 %v3194
      %3875 = vmatprep.subr.bf16.mxu0 %v3199
      %3876 = vmatpush1.bf16.msra.mxu0 %v3198
      %3877 = vmatprep.subr.bf16.mxu0 %v3203
      %3878 = vmatpush1.bf16.msra.mxu0 %v3202
      %3879 = vmatprep.subr.bf16.mxu0 %v3207
      %3880 = vmatpush1.bf16.msra.mxu0 %v3206
      %3881 = vmatprep.subr.bf16.mxu0 %v3211
      %3882 = vmatpush1.bf16.msra.mxu0 %v3210
      %3883 = vmatprep.subr.bf16.mxu0 %v3215
      %3884 = vmatpush1.bf16.msra.mxu0 %v3214
      %3885 = vmatprep.subr.bf16.mxu0 %v3219
      %3886 = vmatpush1.bf16.msra.mxu0 %v3218
      %3887 = vmatprep.subr.bf16.mxu0 %v3223
      %3888 = vmatpush1.bf16.msra.mxu0 %v3222
      %3889 = vmatprep.subr.bf16.mxu0 %v3227
      %3890 = vmatpush1.bf16.msra.mxu0 %v3226
      %3891 = vmatprep.subr.bf16.mxu0 %v3231
      %3892 = vmatpush1.bf16.msra.mxu0 %v3230
      %3893 = vmatprep.subr.bf16.mxu0 %v3235
      %3894 = vmatpush1.bf16.msra.mxu0 %v3234
      %3895 = vmatprep.mubr.bf16.mxu0 %v1753
      %3896 = vmatmul.mubr.bf16.gmra.mrb[0].mxu0 %v1752
      %v3897 = vpop.f32.mrb[0].mxu0
      %v3898 = vadd.f32 %v3785, %v3897
      %v3899 = vpop.f32.mrb[0].mxu0
      %v3900 = vadd.f32 %v3787, %v3899
      %v3901 = vpop.f32.mrb[0].mxu0
      %v3902 = vadd.f32 %v3789, %v3901
      %v3903 = vpop.f32.mrb[0].mxu0
      %v3904 = vadd.f32 %v3791, %v3903
      %3905 = vmatprep.mubr.bf16.mxu0 %v1763
      %3906 = vmatmul.mubr.bf16.gmra.mrb[0].mxu0 %v1762
      %v3907 = vpop.f32.mrb[0].mxu0
      %v3908 = vadd.f32 %v3795, %v3907
      %v3909 = vpop.f32.mrb[0].mxu0
      %v3910 = vadd.f32 %v3797, %v3909
      %v3911 = vpop.f32.mrb[0].mxu0
      %v3912 = vadd.f32 %v3799, %v3911
      %v3913 = vpop.f32.mrb[0].mxu0
      %v3914 = vadd.f32 %v3801, %v3913
      %3915 = vmatprep.mubr.bf16.mxu0 %v1773
      %3916 = vmatmul.mubr.bf16.gmra.mrb[0].mxu0 %v1772
      %v3917 = vpop.f32.mrb[0].mxu0
      %v3918 = vadd.f32 %v3805, %v3917
      %v3919 = vpop.f32.mrb[0].mxu0
      %v3920 = vadd.f32 %v3807, %v3919
      %v3921 = vpop.f32.mrb[0].mxu0
      %v3922 = vadd.f32 %v3809, %v3921
      %v3923 = vpop.f32.mrb[0].mxu0
      %v3924 = vadd.f32 %v3811, %v3923
      %3925 = vmatprep.mubr.bf16.mxu0 %v1783
      %3926 = vmatmul.mubr.bf16.gmra.mrb[0].mxu0 %v1782
      %v3927 = vpop.f32.mrb[0].mxu0
      %v3928 = vadd.f32 %v3815, %v3927
      %v3929 = vpop.f32.mrb[0].mxu0
      %v3930 = vadd.f32 %v3817, %v3929
      %v3931 = vpop.f32.mrb[0].mxu0
      %v3932 = vadd.f32 %v3819, %v3931
      %v3933 = vpop.f32.mrb[0].mxu0
      %v3934 = vadd.f32 %v3821, %v3933
      %3935 = vmatprep.mubr.bf16.mxu0 %v1793
      %3936 = vmatmul.mubr.bf16.gmra.mrb[0].mxu0 %v1792
      %v3937 = vpop.f32.mrb[0].mxu0
      %v3938 = vadd.f32 %v3825, %v3937
      %v3939 = vpop.f32.mrb[0].mxu0
      %v3940 = vadd.f32 %v3827, %v3939
      %v3941 = vpop.f32.mrb[0].mxu0
      %v3942 = vadd.f32 %v3829, %v3941
      %v3943 = vpop.f32.mrb[0].mxu0
      %v3944 = vadd.f32 %v3831, %v3943
      %3945 = vmatprep.mubr.bf16.mxu0 %v1803
      %3946 = vmatmul.mubr.bf16.gmra.mrb[0].mxu0 %v1802
      %v3947 = vpop.f32.mrb[0].mxu0
      %v3948 = vadd.f32 %v3835, %v3947
      %v3949 = vpop.f32.mrb[0].mxu0
      %v3950 = vadd.f32 %v3837, %v3949
      %v3951 = vpop.f32.mrb[0].mxu0
      %v3952 = vadd.f32 %v3839, %v3951
      %v3953 = vpop.f32.mrb[0].mxu0
      %v3954 = vadd.f32 %v3841, %v3953
      %3955 = vmatprep.mubr.bf16.mxu0 %v1813
      %3956 = vmatmul.mubr.bf16.gmra.mrb[0].mxu0 %v1812
      %v3957 = vpop.f32.mrb[0].mxu0
      %v3958 = vadd.f32 %v3845, %v3957
      %v3959 = vpop.f32.mrb[0].mxu0
      %v3960 = vadd.f32 %v3847, %v3959
      %v3961 = vpop.f32.mrb[0].mxu0
      %v3962 = vadd.f32 %v3849, %v3961
      %v3963 = vpop.f32.mrb[0].mxu0
      %v3964 = vadd.f32 %v3851, %v3963
      %3965 = vmatprep.mubr.bf16.mxu0 %v1823
      %3966 = vmatmul.mubr.bf16.gmra.mrb[0].mxu0 %v1822
      %v3967 = vpop.f32.mrb[0].mxu0
      %v3968 = vadd.f32 %v3855, %v3967
      %v3969 = vpop.f32.mrb[0].mxu0
      %v3970 = vadd.f32 %v3857, %v3969
      %v3971 = vpop.f32.mrb[0].mxu0
      %v3972 = vadd.f32 %v3859, %v3971
      %v3973 = vpop.f32.mrb[0].mxu0
      %v3974 = vadd.f32 %v3861, %v3973
      %3975 = vdwg.mxu0
      %3976 = vmatprep.subr.bf16.mxu0 %v3239
      %3977 = vmatpush1.bf16.msra.mxu0 %v3238
      %3978 = vmatprep.subr.bf16.mxu0 %v3243
      %3979 = vmatpush1.bf16.msra.mxu0 %v3242
      %3980 = vmatprep.subr.bf16.mxu0 %v3247
      %3981 = vmatpush1.bf16.msra.mxu0 %v3246
      %3982 = vmatprep.subr.bf16.mxu0 %v3251
      %3983 = vmatpush1.bf16.msra.mxu0 %v3250
      %3984 = vmatprep.subr.bf16.mxu0 %v3255
      %3985 = vmatpush1.bf16.msra.mxu0 %v3254
      %3986 = vmatprep.subr.bf16.mxu0 %v3259
      %3987 = vmatpush1.bf16.msra.mxu0 %v3258
      %3988 = vmatprep.subr.bf16.mxu0 %v3263
      %3989 = vmatpush1.bf16.msra.mxu0 %v3262
      %3990 = vmatprep.subr.bf16.mxu0 %v3267
      %3991 = vmatpush1.bf16.msra.mxu0 %v3266
      %3992 = vmatprep.subr.bf16.mxu0 %v3271
      %3993 = vmatpush1.bf16.msra.mxu0 %v3270
      %3994 = vmatprep.subr.bf16.mxu0 %v3275
      %3995 = vmatpush1.bf16.msra.mxu0 %v3274
      %3996 = vmatprep.subr.bf16.mxu0 %v3279
      %3997 = vmatpush1.bf16.msra.mxu0 %v3278
      %3998 = vmatprep.subr.bf16.mxu0 %v3283
      %3999 = vmatpush1.bf16.msra.mxu0 %v3282
      %4000 = vmatprep.subr.bf16.mxu0 %v3287
      %4001 = vmatpush1.bf16.msra.mxu0 %v3286
      %4002 = vmatprep.subr.bf16.mxu0 %v3291
      %4003 = vmatpush1.bf16.msra.mxu0 %v3290
      %4004 = vmatprep.subr.bf16.mxu0 %v3295
      %4005 = vmatpush1.bf16.msra.mxu0 %v3294
      %4006 = vmatprep.subr.bf16.mxu0 %v3299
      %4007 = vmatpush1.bf16.msra.mxu0 %v3298
      %4008 = vmatprep.mubr.bf16.mxu0 %v1755
      %4009 = vmatmul.mubr.bf16.gmra.mrb[0].mxu0 %v1754
      %v4010 = vpop.f32.mrb[0].mxu0
      %v4011 = vadd.f32 %v3898, %v4010
      %v4012 = vpop.f32.mrb[0].mxu0
      %v4013 = vadd.f32 %v3900, %v4012
      %v4014 = vpop.f32.mrb[0].mxu0
      %v4015 = vadd.f32 %v3902, %v4014
      %v4016 = vpop.f32.mrb[0].mxu0
      %v4017 = vadd.f32 %v3904, %v4016
      %4018 = vmatprep.mubr.bf16.mxu0 %v1765
      %4019 = vmatmul.mubr.bf16.gmra.mrb[0].mxu0 %v1764
      %v4020 = vpop.f32.mrb[0].mxu0
      %v4021 = vadd.f32 %v3908, %v4020
      %v4022 = vpop.f32.mrb[0].mxu0
      %v4023 = vadd.f32 %v3910, %v4022
      %v4024 = vpop.f32.mrb[0].mxu0
      %v4025 = vadd.f32 %v3912, %v4024
      %v4026 = vpop.f32.mrb[0].mxu0
      %v4027 = vadd.f32 %v3914, %v4026
      %4028 = vmatprep.mubr.bf16.mxu0 %v1775
      %4029 = vmatmul.mubr.bf16.gmra.mrb[0].mxu0 %v1774
      %v4030 = vpop.f32.mrb[0].mxu0
      %v4031 = vadd.f32 %v3918, %v4030
      %v4032 = vpop.f32.mrb[0].mxu0
      %v4033 = vadd.f32 %v3920, %v4032
      %v4034 = vpop.f32.mrb[0].mxu0
      %v4035 = vadd.f32 %v3922, %v4034
      %v4036 = vpop.f32.mrb[0].mxu0
      %v4037 = vadd.f32 %v3924, %v4036
      %4038 = vmatprep.mubr.bf16.mxu0 %v1785
      %4039 = vmatmul.mubr.bf16.gmra.mrb[0].mxu0 %v1784
      %v4040 = vpop.f32.mrb[0].mxu0
      %v4041 = vadd.f32 %v3928, %v4040
      %v4042 = vpop.f32.mrb[0].mxu0
      %v4043 = vadd.f32 %v3930, %v4042
      %v4044 = vpop.f32.mrb[0].mxu0
      %v4045 = vadd.f32 %v3932, %v4044
      %v4046 = vpop.f32.mrb[0].mxu0
      %v4047 = vadd.f32 %v3934, %v4046
      %4048 = vmatprep.mubr.bf16.mxu0 %v1795
      %4049 = vmatmul.mubr.bf16.gmra.mrb[0].mxu0 %v1794
      %v4050 = vpop.f32.mrb[0].mxu0
      %v4051 = vadd.f32 %v3938, %v4050
      %v4052 = vpop.f32.mrb[0].mxu0
      %v4053 = vadd.f32 %v3940, %v4052
      %v4054 = vpop.f32.mrb[0].mxu0
      %v4055 = vadd.f32 %v3942, %v4054
      %v4056 = vpop.f32.mrb[0].mxu0
      %v4057 = vadd.f32 %v3944, %v4056
      %4058 = vmatprep.mubr.bf16.mxu0 %v1805
      %4059 = vmatmul.mubr.bf16.gmra.mrb[0].mxu0 %v1804
      %v4060 = vpop.f32.mrb[0].mxu0
      %v4061 = vadd.f32 %v3948, %v4060
      %v4062 = vpop.f32.mrb[0].mxu0
      %v4063 = vadd.f32 %v3950, %v4062
      %v4064 = vpop.f32.mrb[0].mxu0
      %v4065 = vadd.f32 %v3952, %v4064
      %v4066 = vpop.f32.mrb[0].mxu0
      %v4067 = vadd.f32 %v3954, %v4066
      %4068 = vmatprep.mubr.bf16.mxu0 %v1815
      %4069 = vmatmul.mubr.bf16.gmra.mrb[0].mxu0 %v1814
      %v4070 = vpop.f32.mrb[0].mxu0
      %v4071 = vadd.f32 %v3958, %v4070
      %v4072 = vpop.f32.mrb[0].mxu0
      %v4073 = vadd.f32 %v3960, %v4072
      %v4074 = vpop.f32.mrb[0].mxu0
      %v4075 = vadd.f32 %v3962, %v4074
      %v4076 = vpop.f32.mrb[0].mxu0
      %v4077 = vadd.f32 %v3964, %v4076
      %4078 = vmatprep.mubr.bf16.mxu0 %v1825
      %4079 = vmatmul.mubr.bf16.gmra.mrb[0].mxu0 %v1824
      %v4080 = vpop.f32.mrb[0].mxu0
      %v4081 = vadd.f32 %v3968, %v4080
      %v4082 = vpop.f32.mrb[0].mxu0
      %v4083 = vadd.f32 %v3970, %v4082
      %v4084 = vpop.f32.mrb[0].mxu0
      %v4085 = vadd.f32 %v3972, %v4084
      %v4086 = vpop.f32.mrb[0].mxu0
      %v4087 = vadd.f32 %v3974, %v4086
      %4088 = vdwg.mxu0
      %4089 = vmatprep.subr.bf16.mxu0 %v3303
      %4090 = vmatpush1.bf16.msra.mxu0 %v3302
      %4091 = vmatprep.subr.bf16.mxu0 %v3307
      %4092 = vmatpush1.bf16.msra.mxu0 %v3306
      %4093 = vmatprep.subr.bf16.mxu0 %v3311
      %4094 = vmatpush1.bf16.msra.mxu0 %v3310
      %4095 = vmatprep.subr.bf16.mxu0 %v3315
      %4096 = vmatpush1.bf16.msra.mxu0 %v3314
      %4097 = vmatprep.subr.bf16.mxu0 %v3319
      %4098 = vmatpush1.bf16.msra.mxu0 %v3318
      %4099 = vmatprep.subr.bf16.mxu0 %v3323
      %4100 = vmatpush1.bf16.msra.mxu0 %v3322
      %4101 = vmatprep.subr.bf16.mxu0 %v3327
      %4102 = vmatpush1.bf16.msra.mxu0 %v3326
      %4103 = vmatprep.subr.bf16.mxu0 %v3331
      %4104 = vmatpush1.bf16.msra.mxu0 %v3330
      %4105 = vmatprep.subr.bf16.mxu0 %v3335
      %4106 = vmatpush1.bf16.msra.mxu0 %v3334
      %4107 = vmatprep.subr.bf16.mxu0 %v3339
      %4108 = vmatpush1.bf16.msra.mxu0 %v3338
      %4109 = vmatprep.subr.bf16.mxu0 %v3343
      %4110 = vmatpush1.bf16.msra.mxu0 %v3342
      %4111 = vmatprep.subr.bf16.mxu0 %v3347
      %4112 = vmatpush1.bf16.msra.mxu0 %v3346
      %4113 = vmatprep.subr.bf16.mxu0 %v3351
      %4114 = vmatpush1.bf16.msra.mxu0 %v3350
      %4115 = vmatprep.subr.bf16.mxu0 %v3355
      %4116 = vmatpush1.bf16.msra.mxu0 %v3354
      %4117 = vmatprep.subr.bf16.mxu0 %v3359
      %4118 = vmatpush1.bf16.msra.mxu0 %v3358
      %4119 = vmatprep.subr.bf16.mxu0 %v3363
      %4120 = vmatpush1.bf16.msra.mxu0 %v3362
      %4121 = vmatprep.mubr.bf16.mxu0 %v1757
      %4122 = vmatmul.mubr.bf16.gmra.mrb[0].mxu0 %v1756
      %v4123 = vpop.f32.mrb[0].mxu0
      %v4124 = vadd.f32 %v4011, %v4123
      %v4125 = vpop.f32.mrb[0].mxu0
      %v4126 = vadd.f32 %v4013, %v4125
      %v4127 = vpop.f32.mrb[0].mxu0
      %v4128 = vadd.f32 %v4015, %v4127
      %v4129 = vpop.f32.mrb[0].mxu0
      %v4130 = vadd.f32 %v4017, %v4129
      %4131 = vmatprep.mubr.bf16.mxu0 %v1767
      %4132 = vmatmul.mubr.bf16.gmra.mrb[0].mxu0 %v1766
      %v4133 = vpop.f32.mrb[0].mxu0
      %v4134 = vadd.f32 %v4021, %v4133
      %v4135 = vpop.f32.mrb[0].mxu0
      %v4136 = vadd.f32 %v4023, %v4135
      %v4137 = vpop.f32.mrb[0].mxu0
      %v4138 = vadd.f32 %v4025, %v4137
      %v4139 = vpop.f32.mrb[0].mxu0
      %v4140 = vadd.f32 %v4027, %v4139
      %4141 = vmatprep.mubr.bf16.mxu0 %v1777
      %4142 = vmatmul.mubr.bf16.gmra.mrb[0].mxu0 %v1776
      %v4143 = vpop.f32.mrb[0].mxu0
      %v4144 = vadd.f32 %v4031, %v4143
      %v4145 = vpop.f32.mrb[0].mxu0
      %v4146 = vadd.f32 %v4033, %v4145
      %v4147 = vpop.f32.mrb[0].mxu0
      %v4148 = vadd.f32 %v4035, %v4147
      %v4149 = vpop.f32.mrb[0].mxu0
      %v4150 = vadd.f32 %v4037, %v4149
      %4151 = vmatprep.mubr.bf16.mxu0 %v1787
      %4152 = vmatmul.mubr.bf16.gmra.mrb[0].mxu0 %v1786
      %v4153 = vpop.f32.mrb[0].mxu0
      %v4154 = vadd.f32 %v4041, %v4153
      %v4155 = vpop.f32.mrb[0].mxu0
      %v4156 = vadd.f32 %v4043, %v4155
      %v4157 = vpop.f32.mrb[0].mxu0
      %v4158 = vadd.f32 %v4045, %v4157
      %v4159 = vpop.f32.mrb[0].mxu0
      %v4160 = vadd.f32 %v4047, %v4159
      %4161 = vmatprep.mubr.bf16.mxu0 %v1797
      %4162 = vmatmul.mubr.bf16.gmra.mrb[0].mxu0 %v1796
      %v4163 = vpop.f32.mrb[0].mxu0
      %v4164 = vadd.f32 %v4051, %v4163
      %v4165 = vpop.f32.mrb[0].mxu0
      %v4166 = vadd.f32 %v4053, %v4165
      %v4167 = vpop.f32.mrb[0].mxu0
      %v4168 = vadd.f32 %v4055, %v4167
      %v4169 = vpop.f32.mrb[0].mxu0
      %v4170 = vadd.f32 %v4057, %v4169
      %4171 = vmatprep.mubr.bf16.mxu0 %v1807
      %4172 = vmatmul.mubr.bf16.gmra.mrb[0].mxu0 %v1806
      %v4173 = vpop.f32.mrb[0].mxu0
      %v4174 = vadd.f32 %v4061, %v4173
      %v4175 = vpop.f32.mrb[0].mxu0
      %v4176 = vadd.f32 %v4063, %v4175
      %v4177 = vpop.f32.mrb[0].mxu0
      %v4178 = vadd.f32 %v4065, %v4177
      %v4179 = vpop.f32.mrb[0].mxu0
      %v4180 = vadd.f32 %v4067, %v4179
      %4181 = vmatprep.mubr.bf16.mxu0 %v1817
      %4182 = vmatmul.mubr.bf16.gmra.mrb[0].mxu0 %v1816
      %v4183 = vpop.f32.mrb[0].mxu0
      %v4184 = vadd.f32 %v4071, %v4183
      %v4185 = vpop.f32.mrb[0].mxu0
      %v4186 = vadd.f32 %v4073, %v4185
      %v4187 = vpop.f32.mrb[0].mxu0
      %v4188 = vadd.f32 %v4075, %v4187
      %v4189 = vpop.f32.mrb[0].mxu0
      %v4190 = vadd.f32 %v4077, %v4189
      %4191 = vmatprep.mubr.bf16.mxu0 %v1827
      %4192 = vmatmul.mubr.bf16.gmra.mrb[0].mxu0 %v1826
      %v4193 = vpop.f32.mrb[0].mxu0
      %v4194 = vadd.f32 %v4081, %v4193
      %v4195 = vpop.f32.mrb[0].mxu0
      %v4196 = vadd.f32 %v4083, %v4195
      %v4197 = vpop.f32.mrb[0].mxu0
      %v4198 = vadd.f32 %v4085, %v4197
      %v4199 = vpop.f32.mrb[0].mxu0
      %v4200 = vadd.f32 %v4087, %v4199
      %4201 = vdwg.mxu0
      %4202 = vmatprep.subr.bf16.mxu0 %v3367
      %4203 = vmatpush1.bf16.msra.mxu0 %v3366
      %4204 = vmatprep.subr.bf16.mxu0 %v3371
      %4205 = vmatpush1.bf16.msra.mxu0 %v3370
      %4206 = vmatprep.subr.bf16.mxu0 %v3375
      %4207 = vmatpush1.bf16.msra.mxu0 %v3374
      %4208 = vmatprep.subr.bf16.mxu0 %v3379
      %4209 = vmatpush1.bf16.msra.mxu0 %v3378
      %4210 = vmatprep.subr.bf16.mxu0 %v3383
      %4211 = vmatpush1.bf16.msra.mxu0 %v3382
      %4212 = vmatprep.subr.bf16.mxu0 %v3387
      %4213 = vmatpush1.bf16.msra.mxu0 %v3386
      %4214 = vmatprep.subr.bf16.mxu0 %v3391
      %4215 = vmatpush1.bf16.msra.mxu0 %v3390
      %4216 = vmatprep.subr.bf16.mxu0 %v3395
      %4217 = vmatpush1.bf16.msra.mxu0 %v3394
      %4218 = vmatprep.subr.bf16.mxu0 %v3399
      %4219 = vmatpush1.bf16.msra.mxu0 %v3398
      %4220 = vmatprep.subr.bf16.mxu0 %v3403
      %4221 = vmatpush1.bf16.msra.mxu0 %v3402
      %4222 = vmatprep.subr.bf16.mxu0 %v3407
      %4223 = vmatpush1.bf16.msra.mxu0 %v3406
      %4224 = vmatprep.subr.bf16.mxu0 %v3411
      %4225 = vmatpush1.bf16.msra.mxu0 %v3410
      %4226 = vmatprep.subr.bf16.mxu0 %v3415
      %4227 = vmatpush1.bf16.msra.mxu0 %v3414
      %4228 = vmatprep.subr.bf16.mxu0 %v3419
      %4229 = vmatpush1.bf16.msra.mxu0 %v3418
      %4230 = vmatprep.subr.bf16.mxu0 %v3423
      %4231 = vmatpush1.bf16.msra.mxu0 %v3422
      %4232 = vmatprep.subr.bf16.mxu0 %v3427
      %4233 = vmatpush1.bf16.msra.mxu0 %v3426
      %4234 = vmatprep.mubr.bf16.mxu0 %v1759
      %4235 = vmatmul.mubr.bf16.gmra.mrb[0].mxu0 %v1758
      %v4236 = vpop.f32.mrb[0].mxu0
      %v4237 = vadd.f32 %v4124, %v4236
      %v4238 = vpop.f32.mrb[0].mxu0
      %v4239 = vadd.f32 %v4126, %v4238
      %v4240 = vpop.f32.mrb[0].mxu0
      %v4241 = vadd.f32 %v4128, %v4240
      %v4242 = vpop.f32.mrb[0].mxu0
      %v4243 = vadd.f32 %v4130, %v4242
      %4244 = vmatprep.mubr.bf16.mxu0 %v1769
      %4245 = vmatmul.mubr.bf16.gmra.mrb[0].mxu0 %v1768
      %v4246 = vpop.f32.mrb[0].mxu0
      %v4247 = vadd.f32 %v4134, %v4246
      %v4248 = vpop.f32.mrb[0].mxu0
      %v4249 = vadd.f32 %v4136, %v4248
      %v4250 = vpop.f32.mrb[0].mxu0
      %v4251 = vadd.f32 %v4138, %v4250
      %v4252 = vpop.f32.mrb[0].mxu0
      %v4253 = vadd.f32 %v4140, %v4252
      %4254 = vmatprep.mubr.bf16.mxu0 %v1779
      %4255 = vmatmul.mubr.bf16.gmra.mrb[0].mxu0 %v1778
      %v4256 = vpop.f32.mrb[0].mxu0
      %v4257 = vadd.f32 %v4144, %v4256
      %v4258 = vpop.f32.mrb[0].mxu0
      %v4259 = vadd.f32 %v4146, %v4258
      %v4260 = vpop.f32.mrb[0].mxu0
      %v4261 = vadd.f32 %v4148, %v4260
      %v4262 = vpop.f32.mrb[0].mxu0
      %v4263 = vadd.f32 %v4150, %v4262
      %4264 = vmatprep.mubr.bf16.mxu0 %v1789
      %4265 = vmatmul.mubr.bf16.gmra.mrb[0].mxu0 %v1788
      %v4266 = vpop.f32.mrb[0].mxu0
      %v4267 = vadd.f32 %v4154, %v4266
      %v4268 = vpop.f32.mrb[0].mxu0
      %v4269 = vadd.f32 %v4156, %v4268
      %v4270 = vpop.f32.mrb[0].mxu0
      %v4271 = vadd.f32 %v4158, %v4270
      %v4272 = vpop.f32.mrb[0].mxu0
      %v4273 = vadd.f32 %v4160, %v4272
      %4274 = vmatprep.mubr.bf16.mxu0 %v1799
      %4275 = vmatmul.mubr.bf16.gmra.mrb[0].mxu0 %v1798
      %v4276 = vpop.f32.mrb[0].mxu0
      %v4277 = vadd.f32 %v4164, %v4276
      %v4278 = vpop.f32.mrb[0].mxu0
      %v4279 = vadd.f32 %v4166, %v4278
      %v4280 = vpop.f32.mrb[0].mxu0
      %v4281 = vadd.f32 %v4168, %v4280
      %v4282 = vpop.f32.mrb[0].mxu0
      %v4283 = vadd.f32 %v4170, %v4282
      %4284 = vmatprep.mubr.bf16.mxu0 %v1809
      %4285 = vmatmul.mubr.bf16.gmra.mrb[0].mxu0 %v1808
      %v4286 = vpop.f32.mrb[0].mxu0
      %v4287 = vadd.f32 %v4174, %v4286
      %v4288 = vpop.f32.mrb[0].mxu0
      %v4289 = vadd.f32 %v4176, %v4288
      %v4290 = vpop.f32.mrb[0].mxu0
      %v4291 = vadd.f32 %v4178, %v4290
      %v4292 = vpop.f32.mrb[0].mxu0
      %v4293 = vadd.f32 %v4180, %v4292
      %4294 = vmatprep.mubr.bf16.mxu0 %v1819
      %4295 = vmatmul.mubr.bf16.gmra.mrb[0].mxu0 %v1818
      %v4296 = vpop.f32.mrb[0].mxu0
      %v4297 = vadd.f32 %v4184, %v4296
      %v4298 = vpop.f32.mrb[0].mxu0
      %v4299 = vadd.f32 %v4186, %v4298
      %v4300 = vpop.f32.mrb[0].mxu0
      %v4301 = vadd.f32 %v4188, %v4300
      %v4302 = vpop.f32.mrb[0].mxu0
      %v4303 = vadd.f32 %v4190, %v4302
      %4304 = vmatprep.mubr.bf16.mxu0 %v1829
      %4305 = vmatmul.mubr.bf16.gmra.mrb[0].mxu0 %v1828
      %v4306 = vpop.f32.mrb[0].mxu0
      %v4307 = vadd.f32 %v4194, %v4306
      %v4308 = vpop.f32.mrb[0].mxu0
      %v4309 = vadd.f32 %v4196, %v4308
      %v4310 = vpop.f32.mrb[0].mxu0
      %v4311 = vadd.f32 %v4198, %v4310
      %v4312 = vpop.f32.mrb[0].mxu0
      %v4313 = vadd.f32 %v4200, %v4312
      %4314 = vdwg.mxu0
      %4315 = vmatprep.subr.bf16.mxu0 %v3113
      %4316 = vmatpush1.bf16.msra.mxu0 %v3112
      %4317 = vmatprep.subr.bf16.mxu0 %v3117
      %4318 = vmatpush1.bf16.msra.mxu0 %v3116
      %4319 = vmatprep.subr.bf16.mxu0 %v3121
      %4320 = vmatpush1.bf16.msra.mxu0 %v3120
      %4321 = vmatprep.subr.bf16.mxu0 %v3125
      %4322 = vmatpush1.bf16.msra.mxu0 %v3124
      %4323 = vmatprep.subr.bf16.mxu0 %v3129
      %4324 = vmatpush1.bf16.msra.mxu0 %v3128
      %4325 = vmatprep.subr.bf16.mxu0 %v3133
      %4326 = vmatpush1.bf16.msra.mxu0 %v3132
      %4327 = vmatprep.subr.bf16.mxu0 %v3137
      %4328 = vmatpush1.bf16.msra.mxu0 %v3136
      %4329 = vmatprep.subr.bf16.mxu0 %v3141
      %4330 = vmatpush1.bf16.msra.mxu0 %v3140
      %4331 = vmatprep.subr.bf16.mxu0 %v3145
      %4332 = vmatpush1.bf16.msra.mxu0 %v3144
      %4333 = vmatprep.subr.bf16.mxu0 %v3149
      %4334 = vmatpush1.bf16.msra.mxu0 %v3148
      %4335 = vmatprep.subr.bf16.mxu0 %v3153
      %4336 = vmatpush1.bf16.msra.mxu0 %v3152
      %4337 = vmatprep.subr.bf16.mxu0 %v3157
      %4338 = vmatpush1.bf16.msra.mxu0 %v3156
      %4339 = vmatprep.subr.bf16.mxu0 %v3161
      %4340 = vmatpush1.bf16.msra.mxu0 %v3160
      %4341 = vmatprep.subr.bf16.mxu0 %v3165
      %4342 = vmatpush1.bf16.msra.mxu0 %v3164
      %4343 = vmatprep.subr.bf16.mxu0 %v3169
      %4344 = vmatpush1.bf16.msra.mxu0 %v3168
      %4345 = vmatprep.subr.bf16.mxu0 %v3173
      %4346 = vmatpush1.bf16.msra.mxu0 %v3172
      %4347 = vmatprep.mubr.bf16.mxu0 %v1751
      %4348 = vmatmul.mubr.bf16.gmra.mrb[0].mxu0 %v1750
      %v4349 = vpop.f32.mrb[0].mxu0
      %v4350 = vadd.f32 0.0, %v4349
      %v4351 = vpop.f32.mrb[0].mxu0
      %v4352 = vadd.f32 0.0, %v4351
      %v4353 = vpop.f32.mrb[0].mxu0
      %v4354 = vadd.f32 0.0, %v4353
      %v4355 = vpop.f32.mrb[0].mxu0
      %v4356 = vadd.f32 0.0, %v4355
      %4357 = vmatprep.mubr.bf16.mxu0 %v1761
      %4358 = vmatmul.mubr.bf16.gmra.mrb[0].mxu0 %v1760
      %v4359 = vpop.f32.mrb[0].mxu0
      %v4360 = vadd.f32 0.0, %v4359
      %v4361 = vpop.f32.mrb[0].mxu0
      %v4362 = vadd.f32 0.0, %v4361
      %v4363 = vpop.f32.mrb[0].mxu0
      %v4364 = vadd.f32 0.0, %v4363
      %v4365 = vpop.f32.mrb[0].mxu0
      %v4366 = vadd.f32 0.0, %v4365
      %4367 = vmatprep.mubr.bf16.mxu0 %v1771
      %4368 = vmatmul.mubr.bf16.gmra.mrb[0].mxu0 %v1770
      %v4369 = vpop.f32.mrb[0].mxu0
      %v4370 = vadd.f32 0.0, %v4369
      %v4371 = vpop.f32.mrb[0].mxu0
      %v4372 = vadd.f32 0.0, %v4371
      %v4373 = vpop.f32.mrb[0].mxu0
      %v4374 = vadd.f32 0.0, %v4373
      %v4375 = vpop.f32.mrb[0].mxu0
      %v4376 = vadd.f32 0.0, %v4375
      %4377 = vmatprep.mubr.bf16.mxu0 %v1781
      %4378 = vmatmul.mubr.bf16.gmra.mrb[0].mxu0 %v1780
      %v4379 = vpop.f32.mrb[0].mxu0
      %v4380 = vadd.f32 0.0, %v4379
      %v4381 = vpop.f32.mrb[0].mxu0
      %v4382 = vadd.f32 0.0, %v4381
      %v4383 = vpop.f32.mrb[0].mxu0
      %v4384 = vadd.f32 0.0, %v4383
      %v4385 = vpop.f32.mrb[0].mxu0
      %v4386 = vadd.f32 0.0, %v4385
      %4387 = vmatprep.mubr.bf16.mxu0 %v1791
      %4388 = vmatmul.mubr.bf16.gmra.mrb[0].mxu0 %v1790
      %v4389 = vpop.f32.mrb[0].mxu0
      %v4390 = vadd.f32 0.0, %v4389
      %v4391 = vpop.f32.mrb[0].mxu0
      %v4392 = vadd.f32 0.0, %v4391
      %v4393 = vpop.f32.mrb[0].mxu0
      %v4394 = vadd.f32 0.0, %v4393
      %v4395 = vpop.f32.mrb[0].mxu0
      %v4396 = vadd.f32 0.0, %v4395
      %4397 = vmatprep.mubr.bf16.mxu0 %v1801
      %4398 = vmatmul.mubr.bf16.gmra.mrb[0].mxu0 %v1800
      %v4399 = vpop.f32.mrb[0].mxu0
      %v4400 = vadd.f32 0.0, %v4399
      %v4401 = vpop.f32.mrb[0].mxu0
      %v4402 = vadd.f32 0.0, %v4401
      %v4403 = vpop.f32.mrb[0].mxu0
      %v4404 = vadd.f32 0.0, %v4403
      %v4405 = vpop.f32.mrb[0].mxu0
      %v4406 = vadd.f32 0.0, %v4405
      %4407 = vmatprep.mubr.bf16.mxu0 %v1811
      %4408 = vmatmul.mubr.bf16.gmra.mrb[0].mxu0 %v1810
      %v4409 = vpop.f32.mrb[0].mxu0
      %v4410 = vadd.f32 0.0, %v4409
      %v4411 = vpop.f32.mrb[0].mxu0
      %v4412 = vadd.f32 0.0, %v4411
      %v4413 = vpop.f32.mrb[0].mxu0
      %v4414 = vadd.f32 0.0, %v4413
      %v4415 = vpop.f32.mrb[0].mxu0
      %v4416 = vadd.f32 0.0, %v4415
      %4417 = vmatprep.mubr.bf16.mxu0 %v1821
      %4418 = vmatmul.mubr.bf16.gmra.mrb[0].mxu0 %v1820
      %v4419 = vpop.f32.mrb[0].mxu0
      %v4420 = vadd.f32 0.0, %v4419
      %v4421 = vpop.f32.mrb[0].mxu0
      %v4422 = vadd.f32 0.0, %v4421
      %v4423 = vpop.f32.mrb[0].mxu0
      %v4424 = vadd.f32 0.0, %v4423
      %v4425 = vpop.f32.mrb[0].mxu0
      %v4426 = vadd.f32 0.0, %v4425
      %4427 = vdwg.mxu0
      %4428 = vmatprep.subr.bf16.mxu0 %v3177
      %4429 = vmatpush1.bf16.msra.mxu0 %v3176
      %4430 = vmatprep.subr.bf16.mxu0 %v3181
      %4431 = vmatpush1.bf16.msra.mxu0 %v3180
      %4432 = vmatprep.subr.bf16.mxu0 %v3185
      %4433 = vmatpush1.bf16.msra.mxu0 %v3184
      %4434 = vmatprep.subr.bf16.mxu0 %v3189
      %4435 = vmatpush1.bf16.msra.mxu0 %v3188
      %4436 = vmatprep.subr.bf16.mxu0 %v3193
      %4437 = vmatpush1.bf16.msra.mxu0 %v3192
      %4438 = vmatprep.subr.bf16.mxu0 %v3197
      %4439 = vmatpush1.bf16.msra.mxu0 %v3196
      %4440 = vmatprep.subr.bf16.mxu0 %v3201
      %4441 = vmatpush1.bf16.msra.mxu0 %v3200
      %4442 = vmatprep.subr.bf16.mxu0 %v3205
      %4443 = vmatpush1.bf16.msra.mxu0 %v3204
      %4444 = vmatprep.subr.bf16.mxu0 %v3209
      %4445 = vmatpush1.bf16.msra.mxu0 %v3208
      %4446 = vmatprep.subr.bf16.mxu0 %v3213
      %4447 = vmatpush1.bf16.msra.mxu0 %v3212
      %4448 = vmatprep.subr.bf16.mxu0 %v3217
      %4449 = vmatpush1.bf16.msra.mxu0 %v3216
      %4450 = vmatprep.subr.bf16.mxu0 %v3221
      %4451 = vmatpush1.bf16.msra.mxu0 %v3220
      %4452 = vmatprep.subr.bf16.mxu0 %v3225
      %4453 = vmatpush1.bf16.msra.mxu0 %v3224
      %4454 = vmatprep.subr.bf16.mxu0 %v3229
      %4455 = vmatpush1.bf16.msra.mxu0 %v3228
      %4456 = vmatprep.subr.bf16.mxu0 %v3233
      %4457 = vmatpush1.bf16.msra.mxu0 %v3232
      %4458 = vmatprep.subr.bf16.mxu0 %v3237
      %4459 = vmatpush1.bf16.msra.mxu0 %v3236
      %4460 = vmatprep.mubr.bf16.mxu0 %v1753
      %4461 = vmatmul.mubr.bf16.gmra.mrb[0].mxu0 %v1752
      %v4462 = vpop.f32.mrb[0].mxu0
      %v4463 = vadd.f32 %v4350, %v4462
      %v4464 = vpop.f32.mrb[0].mxu0
      %v4465 = vadd.f32 %v4352, %v4464
      %v4466 = vpop.f32.mrb[0].mxu0
      %v4467 = vadd.f32 %v4354, %v4466
      %v4468 = vpop.f32.mrb[0].mxu0
      %v4469 = vadd.f32 %v4356, %v4468
      %4470 = vmatprep.mubr.bf16.mxu0 %v1763
      %4471 = vmatmul.mubr.bf16.gmra.mrb[0].mxu0 %v1762
      %v4472 = vpop.f32.mrb[0].mxu0
      %v4473 = vadd.f32 %v4360, %v4472
      %v4474 = vpop.f32.mrb[0].mxu0
      %v4475 = vadd.f32 %v4362, %v4474
      %v4476 = vpop.f32.mrb[0].mxu0
      %v4477 = vadd.f32 %v4364, %v4476
      %v4478 = vpop.f32.mrb[0].mxu0
      %v4479 = vadd.f32 %v4366, %v4478
      %4480 = vmatprep.mubr.bf16.mxu0 %v1773
      %4481 = vmatmul.mubr.bf16.gmra.mrb[0].mxu0 %v1772
      %v4482 = vpop.f32.mrb[0].mxu0
      %v4483 = vadd.f32 %v4370, %v4482
      %v4484 = vpop.f32.mrb[0].mxu0
      %v4485 = vadd.f32 %v4372, %v4484
      %v4486 = vpop.f32.mrb[0].mxu0
      %v4487 = vadd.f32 %v4374, %v4486
      %v4488 = vpop.f32.mrb[0].mxu0
      %v4489 = vadd.f32 %v4376, %v4488
      %4490 = vmatprep.mubr.bf16.mxu0 %v1783
      %4491 = vmatmul.mubr.bf16.gmra.mrb[0].mxu0 %v1782
      %v4492 = vpop.f32.mrb[0].mxu0
      %v4493 = vadd.f32 %v4380, %v4492
      %v4494 = vpop.f32.mrb[0].mxu0
      %v4495 = vadd.f32 %v4382, %v4494
      %v4496 = vpop.f32.mrb[0].mxu0
      %v4497 = vadd.f32 %v4384, %v4496
      %v4498 = vpop.f32.mrb[0].mxu0
      %v4499 = vadd.f32 %v4386, %v4498
      %4500 = vmatprep.mubr.bf16.mxu0 %v1793
      %4501 = vmatmul.mubr.bf16.gmra.mrb[0].mxu0 %v1792
      %v4502 = vpop.f32.mrb[0].mxu0
      %v4503 = vadd.f32 %v4390, %v4502
      %v4504 = vpop.f32.mrb[0].mxu0
      %v4505 = vadd.f32 %v4392, %v4504
      %v4506 = vpop.f32.mrb[0].mxu0
      %v4507 = vadd.f32 %v4394, %v4506
      %v4508 = vpop.f32.mrb[0].mxu0
      %v4509 = vadd.f32 %v4396, %v4508
      %4510 = vmatprep.mubr.bf16.mxu0 %v1803
      %4511 = vmatmul.mubr.bf16.gmra.mrb[0].mxu0 %v1802
      %v4512 = vpop.f32.mrb[0].mxu0
      %v4513 = vadd.f32 %v4400, %v4512
      %v4514 = vpop.f32.mrb[0].mxu0
      %v4515 = vadd.f32 %v4402, %v4514
      %v4516 = vpop.f32.mrb[0].mxu0
      %v4517 = vadd.f32 %v4404, %v4516
      %v4518 = vpop.f32.mrb[0].mxu0
      %v4519 = vadd.f32 %v4406, %v4518
      %4520 = vmatprep.mubr.bf16.mxu0 %v1813
      %4521 = vmatmul.mubr.bf16.gmra.mrb[0].mxu0 %v1812
      %v4522 = vpop.f32.mrb[0].mxu0
      %v4523 = vadd.f32 %v4410, %v4522
      %v4524 = vpop.f32.mrb[0].mxu0
      %v4525 = vadd.f32 %v4412, %v4524
      %v4526 = vpop.f32.mrb[0].mxu0
      %v4527 = vadd.f32 %v4414, %v4526
      %v4528 = vpop.f32.mrb[0].mxu0
      %v4529 = vadd.f32 %v4416, %v4528
      %4530 = vmatprep.mubr.bf16.mxu0 %v1823
      %4531 = vmatmul.mubr.bf16.gmra.mrb[0].mxu0 %v1822
      %v4532 = vpop.f32.mrb[0].mxu0
      %v4533 = vadd.f32 %v4420, %v4532
      %v4534 = vpop.f32.mrb[0].mxu0
      %v4535 = vadd.f32 %v4422, %v4534
      %v4536 = vpop.f32.mrb[0].mxu0
      %v4537 = vadd.f32 %v4424, %v4536
      %v4538 = vpop.f32.mrb[0].mxu0
      %v4539 = vadd.f32 %v4426, %v4538
      %4540 = vdwg.mxu0
      %4541 = vmatprep.subr.bf16.mxu0 %v3241
      %4542 = vmatpush1.bf16.msra.mxu0 %v3240
      %4543 = vmatprep.subr.bf16.mxu0 %v3245
      %4544 = vmatpush1.bf16.msra.mxu0 %v3244
      %4545 = vmatprep.subr.bf16.mxu0 %v3249
      %4546 = vmatpush1.bf16.msra.mxu0 %v3248
      %4547 = vmatprep.subr.bf16.mxu0 %v3253
      %4548 = vmatpush1.bf16.msra.mxu0 %v3252
      %4549 = vmatprep.subr.bf16.mxu0 %v3257
      %4550 = vmatpush1.bf16.msra.mxu0 %v3256
      %4551 = vmatprep.subr.bf16.mxu0 %v3261
      %4552 = vmatpush1.bf16.msra.mxu0 %v3260
      %4553 = vmatprep.subr.bf16.mxu0 %v3265
      %4554 = vmatpush1.bf16.msra.mxu0 %v3264
      %4555 = vmatprep.subr.bf16.mxu0 %v3269
      %4556 = vmatpush1.bf16.msra.mxu0 %v3268
      %4557 = vmatprep.subr.bf16.mxu0 %v3273
      %4558 = vmatpush1.bf16.msra.mxu0 %v3272
      %4559 = vmatprep.subr.bf16.mxu0 %v3277
      %4560 = vmatpush1.bf16.msra.mxu0 %v3276
      %4561 = vmatprep.subr.bf16.mxu0 %v3281
      %4562 = vmatpush1.bf16.msra.mxu0 %v3280
      %4563 = vmatprep.subr.bf16.mxu0 %v3285
      %4564 = vmatpush1.bf16.msra.mxu0 %v3284
      %4565 = vmatprep.subr.bf16.mxu0 %v3289
      %4566 = vmatpush1.bf16.msra.mxu0 %v3288
      %4567 = vmatprep.subr.bf16.mxu0 %v3293
      %4568 = vmatpush1.bf16.msra.mxu0 %v3292
      %4569 = vmatprep.subr.bf16.mxu0 %v3297
      %4570 = vmatpush1.bf16.msra.mxu0 %v3296
      %4571 = vmatprep.subr.bf16.mxu0 %v3301
      %4572 = vmatpush1.bf16.msra.mxu0 %v3300
      %4573 = vmatprep.mubr.bf16.mxu0 %v1755
      %4574 = vmatmul.mubr.bf16.gmra.mrb[0].mxu0 %v1754
      %v4575 = vpop.f32.mrb[0].mxu0
      %v4576 = vadd.f32 %v4463, %v4575
      %v4577 = vpop.f32.mrb[0].mxu0
      %v4578 = vadd.f32 %v4465, %v4577
      %v4579 = vpop.f32.mrb[0].mxu0
      %v4580 = vadd.f32 %v4467, %v4579
      %v4581 = vpop.f32.mrb[0].mxu0
      %v4582 = vadd.f32 %v4469, %v4581
      %4583 = vmatprep.mubr.bf16.mxu0 %v1765
      %4584 = vmatmul.mubr.bf16.gmra.mrb[0].mxu0 %v1764
      %v4585 = vpop.f32.mrb[0].mxu0
      %v4586 = vadd.f32 %v4473, %v4585
      %v4587 = vpop.f32.mrb[0].mxu0
      %v4588 = vadd.f32 %v4475, %v4587
      %v4589 = vpop.f32.mrb[0].mxu0
      %v4590 = vadd.f32 %v4477, %v4589
      %v4591 = vpop.f32.mrb[0].mxu0
      %v4592 = vadd.f32 %v4479, %v4591
      %4593 = vmatprep.mubr.bf16.mxu0 %v1775
      %4594 = vmatmul.mubr.bf16.gmra.mrb[0].mxu0 %v1774
      %v4595 = vpop.f32.mrb[0].mxu0
      %v4596 = vadd.f32 %v4483, %v4595
      %v4597 = vpop.f32.mrb[0].mxu0
      %v4598 = vadd.f32 %v4485, %v4597
      %v4599 = vpop.f32.mrb[0].mxu0
      %v4600 = vadd.f32 %v4487, %v4599
      %v4601 = vpop.f32.mrb[0].mxu0
      %v4602 = vadd.f32 %v4489, %v4601
      %4603 = vmatprep.mubr.bf16.mxu0 %v1785
      %4604 = vmatmul.mubr.bf16.gmra.mrb[0].mxu0 %v1784
      %v4605 = vpop.f32.mrb[0].mxu0
      %v4606 = vadd.f32 %v4493, %v4605
      %v4607 = vpop.f32.mrb[0].mxu0
      %v4608 = vadd.f32 %v4495, %v4607
      %v4609 = vpop.f32.mrb[0].mxu0
      %v4610 = vadd.f32 %v4497, %v4609
      %v4611 = vpop.f32.mrb[0].mxu0
      %v4612 = vadd.f32 %v4499, %v4611
      %4613 = vmatprep.mubr.bf16.mxu0 %v1795
      %4614 = vmatmul.mubr.bf16.gmra.mrb[0].mxu0 %v1794
      %v4615 = vpop.f32.mrb[0].mxu0
      %v4616 = vadd.f32 %v4503, %v4615
      %v4617 = vpop.f32.mrb[0].mxu0
      %v4618 = vadd.f32 %v4505, %v4617
      %v4619 = vpop.f32.mrb[0].mxu0
      %v4620 = vadd.f32 %v4507, %v4619
      %v4621 = vpop.f32.mrb[0].mxu0
      %v4622 = vadd.f32 %v4509, %v4621
      %4623 = vmatprep.mubr.bf16.mxu0 %v1805
      %4624 = vmatmul.mubr.bf16.gmra.mrb[0].mxu0 %v1804
      %v4625 = vpop.f32.mrb[0].mxu0
      %v4626 = vadd.f32 %v4513, %v4625
      %v4627 = vpop.f32.mrb[0].mxu0
      %v4628 = vadd.f32 %v4515, %v4627
      %v4629 = vpop.f32.mrb[0].mxu0
      %v4630 = vadd.f32 %v4517, %v4629
      %v4631 = vpop.f32.mrb[0].mxu0
      %v4632 = vadd.f32 %v4519, %v4631
      %4633 = vmatprep.mubr.bf16.mxu0 %v1815
      %4634 = vmatmul.mubr.bf16.gmra.mrb[0].mxu0 %v1814
      %v4635 = vpop.f32.mrb[0].mxu0
      %v4636 = vadd.f32 %v4523, %v4635
      %v4637 = vpop.f32.mrb[0].mxu0
      %v4638 = vadd.f32 %v4525, %v4637
      %v4639 = vpop.f32.mrb[0].mxu0
      %v4640 = vadd.f32 %v4527, %v4639
      %v4641 = vpop.f32.mrb[0].mxu0
      %v4642 = vadd.f32 %v4529, %v4641
      %4643 = vmatprep.mubr.bf16.mxu0 %v1825
      %4644 = vmatmul.mubr.bf16.gmra.mrb[0].mxu0 %v1824
      %v4645 = vpop.f32.mrb[0].mxu0
      %v4646 = vadd.f32 %v4533, %v4645
      %v4647 = vpop.f32.mrb[0].mxu0
      %v4648 = vadd.f32 %v4535, %v4647
      %v4649 = vpop.f32.mrb[0].mxu0
      %v4650 = vadd.f32 %v4537, %v4649
      %v4651 = vpop.f32.mrb[0].mxu0
      %v4652 = vadd.f32 %v4539, %v4651
      %4653 = vdwg.mxu0
      %4654 = vmatprep.subr.bf16.mxu0 %v3305
      %4655 = vmatpush1.bf16.msra.mxu0 %v3304
      %4656 = vmatprep.subr.bf16.mxu0 %v3309
      %4657 = vmatpush1.bf16.msra.mxu0 %v3308
      %4658 = vmatprep.subr.bf16.mxu0 %v3313
      %4659 = vmatpush1.bf16.msra.mxu0 %v3312
      %4660 = vmatprep.subr.bf16.mxu0 %v3317
      %4661 = vmatpush1.bf16.msra.mxu0 %v3316
      %4662 = vmatprep.subr.bf16.mxu0 %v3321
      %4663 = vmatpush1.bf16.msra.mxu0 %v3320
      %4664 = vmatprep.subr.bf16.mxu0 %v3325
      %4665 = vmatpush1.bf16.msra.mxu0 %v3324
      %4666 = vmatprep.subr.bf16.mxu0 %v3329
      %4667 = vmatpush1.bf16.msra.mxu0 %v3328
      %4668 = vmatprep.subr.bf16.mxu0 %v3333
      %4669 = vmatpush1.bf16.msra.mxu0 %v3332
      %4670 = vmatprep.subr.bf16.mxu0 %v3337
      %4671 = vmatpush1.bf16.msra.mxu0 %v3336
      %4672 = vmatprep.subr.bf16.mxu0 %v3341
      %4673 = vmatpush1.bf16.msra.mxu0 %v3340
      %4674 = vmatprep.subr.bf16.mxu0 %v3345
      %4675 = vmatpush1.bf16.msra.mxu0 %v3344
      %4676 = vmatprep.subr.bf16.mxu0 %v3349
      %4677 = vmatpush1.bf16.msra.mxu0 %v3348
      %4678 = vmatprep.subr.bf16.mxu0 %v3353
      %4679 = vmatpush1.bf16.msra.mxu0 %v3352
      %4680 = vmatprep.subr.bf16.mxu0 %v3357
      %4681 = vmatpush1.bf16.msra.mxu0 %v3356
      %4682 = vmatprep.subr.bf16.mxu0 %v3361
      %4683 = vmatpush1.bf16.msra.mxu0 %v3360
      %4684 = vmatprep.subr.bf16.mxu0 %v3365
      %4685 = vmatpush1.bf16.msra.mxu0 %v3364
      %4686 = vmatprep.mubr.bf16.mxu0 %v1757
      %4687 = vmatmul.mubr.bf16.gmra.mrb[0].mxu0 %v1756
      %v4688 = vpop.f32.mrb[0].mxu0
      %v4689 = vadd.f32 %v4576, %v4688
      %v4690 = vpop.f32.mrb[0].mxu0
      %v4691 = vadd.f32 %v4578, %v4690
      %v4692 = vpop.f32.mrb[0].mxu0
      %v4693 = vadd.f32 %v4580, %v4692
      %v4694 = vpop.f32.mrb[0].mxu0
      %v4695 = vadd.f32 %v4582, %v4694
      %4696 = vmatprep.mubr.bf16.mxu0 %v1767
      %4697 = vmatmul.mubr.bf16.gmra.mrb[0].mxu0 %v1766
      %v4698 = vpop.f32.mrb[0].mxu0
      %v4699 = vadd.f32 %v4586, %v4698
      %v4700 = vpop.f32.mrb[0].mxu0
      %v4701 = vadd.f32 %v4588, %v4700
      %v4702 = vpop.f32.mrb[0].mxu0
      %v4703 = vadd.f32 %v4590, %v4702
      %v4704 = vpop.f32.mrb[0].mxu0
      %v4705 = vadd.f32 %v4592, %v4704
      %4706 = vmatprep.mubr.bf16.mxu0 %v1777
      %4707 = vmatmul.mubr.bf16.gmra.mrb[0].mxu0 %v1776
      %v4708 = vpop.f32.mrb[0].mxu0
      %v4709 = vadd.f32 %v4596, %v4708
      %v4710 = vpop.f32.mrb[0].mxu0
      %v4711 = vadd.f32 %v4598, %v4710
      %v4712 = vpop.f32.mrb[0].mxu0
      %v4713 = vadd.f32 %v4600, %v4712
      %v4714 = vpop.f32.mrb[0].mxu0
      %v4715 = vadd.f32 %v4602, %v4714
      %4716 = vmatprep.mubr.bf16.mxu0 %v1787
      %4717 = vmatmul.mubr.bf16.gmra.mrb[0].mxu0 %v1786
      %v4718 = vpop.f32.mrb[0].mxu0
      %v4719 = vadd.f32 %v4606, %v4718
      %v4720 = vpop.f32.mrb[0].mxu0
      %v4721 = vadd.f32 %v4608, %v4720
      %v4722 = vpop.f32.mrb[0].mxu0
      %v4723 = vadd.f32 %v4610, %v4722
      %v4724 = vpop.f32.mrb[0].mxu0
      %v4725 = vadd.f32 %v4612, %v4724
      %4726 = vmatprep.mubr.bf16.mxu0 %v1797
      %4727 = vmatmul.mubr.bf16.gmra.mrb[0].mxu0 %v1796
      %v4728 = vpop.f32.mrb[0].mxu0
      %v4729 = vadd.f32 %v4616, %v4728
      %v4730 = vpop.f32.mrb[0].mxu0
      %v4731 = vadd.f32 %v4618, %v4730
      %v4732 = vpop.f32.mrb[0].mxu0
      %v4733 = vadd.f32 %v4620, %v4732
      %v4734 = vpop.f32.mrb[0].mxu0
      %v4735 = vadd.f32 %v4622, %v4734
      %4736 = vmatprep.mubr.bf16.mxu0 %v1807
      %4737 = vmatmul.mubr.bf16.gmra.mrb[0].mxu0 %v1806
      %v4738 = vpop.f32.mrb[0].mxu0
      %v4739 = vadd.f32 %v4626, %v4738
      %v4740 = vpop.f32.mrb[0].mxu0
      %v4741 = vadd.f32 %v4628, %v4740
      %v4742 = vpop.f32.mrb[0].mxu0
      %v4743 = vadd.f32 %v4630, %v4742
      %v4744 = vpop.f32.mrb[0].mxu0
      %v4745 = vadd.f32 %v4632, %v4744
      %4746 = vmatprep.mubr.bf16.mxu0 %v1817
      %4747 = vmatmul.mubr.bf16.gmra.mrb[0].mxu0 %v1816
      %v4748 = vpop.f32.mrb[0].mxu0
      %v4749 = vadd.f32 %v4636, %v4748
      %v4750 = vpop.f32.mrb[0].mxu0
      %v4751 = vadd.f32 %v4638, %v4750
      %v4752 = vpop.f32.mrb[0].mxu0
      %v4753 = vadd.f32 %v4640, %v4752
      %v4754 = vpop.f32.mrb[0].mxu0
      %v4755 = vadd.f32 %v4642, %v4754
      %4756 = vmatprep.mubr.bf16.mxu0 %v1827
      %4757 = vmatmul.mubr.bf16.gmra.mrb[0].mxu0 %v1826
      %v4758 = vpop.f32.mrb[0].mxu0
      %v4759 = vadd.f32 %v4646, %v4758
      %v4760 = vpop.f32.mrb[0].mxu0
      %v4761 = vadd.f32 %v4648, %v4760
      %v4762 = vpop.f32.mrb[0].mxu0
      %v4763 = vadd.f32 %v4650, %v4762
      %v4764 = vpop.f32.mrb[0].mxu0
      %v4765 = vadd.f32 %v4652, %v4764
      %4766 = vdwg.mxu0
      %4767 = vmatprep.subr.bf16.mxu0 %v3369
      %4768 = vmatpush1.bf16.msra.mxu0 %v3368
      %4769 = vmatprep.subr.bf16.mxu0 %v3373
      %4770 = vmatpush1.bf16.msra.mxu0 %v3372
      %4771 = vmatprep.subr.bf16.mxu0 %v3377
      %4772 = vmatpush1.bf16.msra.mxu0 %v3376
      %4773 = vmatprep.subr.bf16.mxu0 %v3381
      %4774 = vmatpush1.bf16.msra.mxu0 %v3380
      %4775 = vmatprep.subr.bf16.mxu0 %v3385
      %4776 = vmatpush1.bf16.msra.mxu0 %v3384
      %4777 = vmatprep.subr.bf16.mxu0 %v3389
      %4778 = vmatpush1.bf16.msra.mxu0 %v3388
      %4779 = vmatprep.subr.bf16.mxu0 %v3393
      %4780 = vmatpush1.bf16.msra.mxu0 %v3392
      %4781 = vmatprep.subr.bf16.mxu0 %v3397
      %4782 = vmatpush1.bf16.msra.mxu0 %v3396
      %4783 = vmatprep.subr.bf16.mxu0 %v3401
      %4784 = vmatpush1.bf16.msra.mxu0 %v3400
      %4785 = vmatprep.subr.bf16.mxu0 %v3405
      %4786 = vmatpush1.bf16.msra.mxu0 %v3404
      %4787 = vmatprep.subr.bf16.mxu0 %v3409
      %4788 = vmatpush1.bf16.msra.mxu0 %v3408
      %4789 = vmatprep.subr.bf16.mxu0 %v3413
      %4790 = vmatpush1.bf16.msra.mxu0 %v3412
      %4791 = vmatprep.subr.bf16.mxu0 %v3417
      %4792 = vmatpush1.bf16.msra.mxu0 %v3416
      %4793 = vmatprep.subr.bf16.mxu0 %v3421
      %4794 = vmatpush1.bf16.msra.mxu0 %v3420
      %4795 = vmatprep.subr.bf16.mxu0 %v3425
      %4796 = vmatpush1.bf16.msra.mxu0 %v3424
      %4797 = vmatprep.subr.bf16.mxu0 %v3429
      %4798 = vmatpush1.bf16.msra.mxu0 %v3428
      %4799 = vmatprep.mubr.bf16.mxu0 %v1759
      %4800 = vmatmul.mubr.bf16.gmra.mrb[0].mxu0 %v1758
      %v4801 = vpop.f32.mrb[0].mxu0
      %v4802 = vadd.f32 %v4689, %v4801
      %v4803 = vpop.f32.mrb[0].mxu0
      %v4804 = vadd.f32 %v4691, %v4803
      %v4805 = vpop.f32.mrb[0].mxu0
      %v4806 = vadd.f32 %v4693, %v4805
      %v4807 = vpop.f32.mrb[0].mxu0
      %v4808 = vadd.f32 %v4695, %v4807
      %4809 = vmatprep.mubr.bf16.mxu0 %v1769
      %4810 = vmatmul.mubr.bf16.gmra.mrb[0].mxu0 %v1768
      %v4811 = vpop.f32.mrb[0].mxu0
      %v4812 = vadd.f32 %v4699, %v4811
      %v4813 = vpop.f32.mrb[0].mxu0
      %v4814 = vadd.f32 %v4701, %v4813
      %v4815 = vpop.f32.mrb[0].mxu0
      %v4816 = vadd.f32 %v4703, %v4815
      %v4817 = vpop.f32.mrb[0].mxu0
      %v4818 = vadd.f32 %v4705, %v4817
      %4819 = vmatprep.mubr.bf16.mxu0 %v1779
      %4820 = vmatmul.mubr.bf16.gmra.mrb[0].mxu0 %v1778
      %v4821 = vpop.f32.mrb[0].mxu0
      %v4822 = vadd.f32 %v4709, %v4821
      %v4823 = vpop.f32.mrb[0].mxu0
      %v4824 = vadd.f32 %v4711, %v4823
      %v4825 = vpop.f32.mrb[0].mxu0
      %v4826 = vadd.f32 %v4713, %v4825
      %v4827 = vpop.f32.mrb[0].mxu0
      %v4828 = vadd.f32 %v4715, %v4827
      %4829 = vmatprep.mubr.bf16.mxu0 %v1789
      %4830 = vmatmul.mubr.bf16.gmra.mrb[0].mxu0 %v1788
      %v4831 = vpop.f32.mrb[0].mxu0
      %v4832 = vadd.f32 %v4719, %v4831
      %v4833 = vpop.f32.mrb[0].mxu0
      %v4834 = vadd.f32 %v4721, %v4833
      %v4835 = vpop.f32.mrb[0].mxu0
      %v4836 = vadd.f32 %v4723, %v4835
      %v4837 = vpop.f32.mrb[0].mxu0
      %v4838 = vadd.f32 %v4725, %v4837
      %4839 = vmatprep.mubr.bf16.mxu0 %v1799
      %4840 = vmatmul.mubr.bf16.gmra.mrb[0].mxu0 %v1798
      %v4841 = vpop.f32.mrb[0].mxu0
      %v4842 = vadd.f32 %v4729, %v4841
      %v4843 = vpop.f32.mrb[0].mxu0
      %v4844 = vadd.f32 %v4731, %v4843
      %v4845 = vpop.f32.mrb[0].mxu0
      %v4846 = vadd.f32 %v4733, %v4845
      %v4847 = vpop.f32.mrb[0].mxu0
      %v4848 = vadd.f32 %v4735, %v4847
      %4849 = vmatprep.mubr.bf16.mxu0 %v1809
      %4850 = vmatmul.mubr.bf16.gmra.mrb[0].mxu0 %v1808
      %v4851 = vpop.f32.mrb[0].mxu0
      %v4852 = vadd.f32 %v4739, %v4851
      %v4853 = vpop.f32.mrb[0].mxu0
      %v4854 = vadd.f32 %v4741, %v4853
      %v4855 = vpop.f32.mrb[0].mxu0
      %v4856 = vadd.f32 %v4743, %v4855
      %v4857 = vpop.f32.mrb[0].mxu0
      %v4858 = vadd.f32 %v4745, %v4857
      %4859 = vmatprep.mubr.bf16.mxu0 %v1819
      %4860 = vmatmul.mubr.bf16.gmra.mrb[0].mxu0 %v1818
      %v4861 = vpop.f32.mrb[0].mxu0
      %v4862 = vadd.f32 %v4749, %v4861
      %v4863 = vpop.f32.mrb[0].mxu0
      %v4864 = vadd.f32 %v4751, %v4863
      %v4865 = vpop.f32.mrb[0].mxu0
      %v4866 = vadd.f32 %v4753, %v4865
      %v4867 = vpop.f32.mrb[0].mxu0
      %v4868 = vadd.f32 %v4755, %v4867
      %4869 = vmatprep.mubr.bf16.mxu0 %v1829
      %4870 = vmatmul.mubr.bf16.gmra.mrb[0].mxu0 %v1828
      %v4871 = vpop.f32.mrb[0].mxu0
      %v4872 = vadd.f32 %v4759, %v4871
      %v4873 = vpop.f32.mrb[0].mxu0
      %v4874 = vadd.f32 %v4761, %v4873
      %v4875 = vpop.f32.mrb[0].mxu0
      %v4876 = vadd.f32 %v4763, %v4875
      %v4877 = vpop.f32.mrb[0].mxu0
      %v4878 = vadd.f32 %v4765, %v4877
      %4879 = vdwg.mxu0
      %v4880 = vmax.f32 %v4237, %v4277
      %v4881 = vmax.f32 %v4239, %v4279
      %v4882 = vmax.f32 %v4802, %v4842
      %v4883 = vmax.f32 %v4804, %v4844
      %v4884 = vmax.f32 %v4241, %v4281
      %v4885 = vmax.f32 %v4243, %v4283
      %v4886 = vmax.f32 %v4806, %v4846
      %v4887 = vmax.f32 %v4808, %v4848
      %v4888 = vmax.f32 %v4247, %v4287
      %v4889 = vmax.f32 %v4249, %v4289
      %v4890 = vmax.f32 %v4812, %v4852
      %v4891 = vmax.f32 %v4814, %v4854
      %v4892 = vmax.f32 %v4251, %v4291
      %v4893 = vmax.f32 %v4253, %v4293
      %v4894 = vmax.f32 %v4816, %v4856
      %v4895 = vmax.f32 %v4818, %v4858
      %v4896 = vmax.f32 %v4257, %v4297
      %v4897 = vmax.f32 %v4259, %v4299
      %v4898 = vmax.f32 %v4822, %v4862
      %v4899 = vmax.f32 %v4824, %v4864
      %v4900 = vmax.f32 %v4261, %v4301
      %v4901 = vmax.f32 %v4263, %v4303
      %v4902 = vmax.f32 %v4826, %v4866
      %v4903 = vmax.f32 %v4828, %v4868
      %v4904 = vmax.f32 %v4267, %v4307
      %v4905 = vmax.f32 %v4269, %v4309
      %v4906 = vmax.f32 %v4832, %v4872
      %v4907 = vmax.f32 %v4834, %v4874
      %v4908 = vmax.f32 %v4271, %v4311
      %v4909 = vmax.f32 %v4273, %v4313
      %v4910 = vmax.f32 %v4836, %v4876
      %v4911 = vmax.f32 %v4838, %v4878
      %v4912 = vmax.f32 %v4880, %v4882
      %v4913 = vmax.f32 %v4881, %v4883
      %v4914 = vmax.f32 %v4884, %v4886
      %v4915 = vmax.f32 %v4885, %v4887
      %v4916 = vmax.f32 %v4888, %v4890
      %v4917 = vmax.f32 %v4889, %v4891
      %v4918 = vmax.f32 %v4892, %v4894
      %v4919 = vmax.f32 %v4893, %v4895
      %v4920 = vmax.f32 %v4896, %v4898
      %v4921 = vmax.f32 %v4897, %v4899
      %v4922 = vmax.f32 %v4900, %v4902
      %v4923 = vmax.f32 %v4901, %v4903
      %v4924 = vmax.f32 %v4904, %v4906
      %v4925 = vmax.f32 %v4905, %v4907
      %v4926 = vmax.f32 %v4908, %v4910
      %v4927 = vmax.f32 %v4909, %v4911
      %v4928 = vld [vmem:[%s4] sm:$0x3]
      %v4930 = vlaneseq
      %v4931 = vshrl.u32 %v4930, 7
      %v4932 = vsub.s32 0, %v4931
      %v4933 = vrot.slane %v4928, %v4932
      %v4934 = vlaneseq
      %v4935 = vshrl.u32 %v4934, 7
      %v4936 = vsub.s32 1, %v4935
      %v4937 = vrot.slane %v4928, %v4936
      %v4940 = vadd.f32 %v4912, %v4933
      %v4941 = vadd.f32 %v4913, %v4937
      %v4942 = vadd.f32 %v4914, %v4933
      %v4943 = vadd.f32 %v4915, %v4937
      %v4944 = vadd.f32 %v4916, %v4933
      %v4945 = vadd.f32 %v4917, %v4937
      %v4946 = vadd.f32 %v4918, %v4933
      %v4947 = vadd.f32 %v4919, %v4937
      %v4948 = vadd.f32 %v4920, %v4933
      %v4949 = vadd.f32 %v4921, %v4937
      %v4950 = vadd.f32 %v4922, %v4933
      %v4951 = vadd.f32 %v4923, %v4937
      %v4952 = vadd.f32 %v4924, %v4933
      %v4953 = vadd.f32 %v4925, %v4937
      %v4954 = vadd.f32 %v4926, %v4933
      %v4955 = vadd.f32 %v4927, %v4937
      %v4956 = vmax.f32 %v4940, 0.0
      %v4957 = vmax.f32 %v4941, 0.0
      %v4958 = vmax.f32 %v4942, 0.0
      %v4959 = vmax.f32 %v4943, 0.0
      %v4960 = vmax.f32 %v4944, 0.0
      %v4961 = vmax.f32 %v4945, 0.0
      %v4962 = vmax.f32 %v4946, 0.0
      %v4963 = vmax.f32 %v4947, 0.0
      %v4964 = vmax.f32 %v4948, 0.0
      %v4965 = vmax.f32 %v4949, 0.0
      %v4966 = vmax.f32 %v4950, 0.0
      %v4967 = vmax.f32 %v4951, 0.0
      %v4968 = vmax.f32 %v4952, 0.0
      %v4969 = vmax.f32 %v4953, 0.0
      %v4970 = vmax.f32 %v4954, 0.0
      %v4971 = vmax.f32 %v4955, 0.0
      %v4972 = vpack.c.bf16 %v4958, %v4956
      %v4973 = vpack.c.bf16 %v4959, %v4957
      %v4974 = vpack.c.bf16 %v4962, %v4960
      %v4975 = vpack.c.bf16 %v4963, %v4961
      %v4976 = vpack.c.bf16 %v4966, %v4964
      %v4977 = vpack.c.bf16 %v4967, %v4965
      %v4978 = vpack.c.bf16 %v4970, %v4968
      %v4979 = vpack.c.bf16 %v4971, %v4969
      %v4980 = vld [vmem:[%s6] sm:$0x1]
      %v4981 = vld [vmem:[%s5] sm:$0xf]
      %v4982 = vld [vmem:[%s5 + $0x4] sm:$0xf]
      %v4983 = vld [vmem:[%s5 + $0x8] sm:$0xf]
      %v4984 = vld [vmem:[%s5 + $0xc] sm:$0xf]
      %v4985 = vld [vmem:[%s5 + $0x10] sm:$0xf]
      %v4986 = vld [vmem:[%s5 + $0x14] sm:$0xf]
      %v4987 = vld [vmem:[%s5 + $0x18] sm:$0xf]
      %v4988 = vld [vmem:[%s5 + $0x1c] sm:$0xf]
      %v4989 = vld [vmem:[%s5 + $0x20] sm:$0xf]
      %v4990 = vld [vmem:[%s5 + $0x24] sm:$0xf]
      %v4991 = vld [vmem:[%s5 + $0x28] sm:$0xf]
      %v4992 = vld [vmem:[%s5 + $0x2c] sm:$0xf]
      %v4993 = vld [vmem:[%s5 + $0x30] sm:$0xf]
      %v4994 = vld [vmem:[%s5 + $0x34] sm:$0xf]
      %v4995 = vld [vmem:[%s5 + $0x38] sm:$0xf]
      %v4996 = vld [vmem:[%s5 + $0x3c] sm:$0xf]
      %v4997 = vld [vmem:[%s5 + $0x40] sm:$0xf]
      %v4998 = vld [vmem:[%s5 + $0x44] sm:$0xf]
      %v4999 = vld [vmem:[%s5 + $0x48] sm:$0xf]
      %v5000 = vld [vmem:[%s5 + $0x4c] sm:$0xf]
      %v5001 = vld [vmem:[%s5 + $0x50] sm:$0xf]
      %v5002 = vld [vmem:[%s5 + $0x54] sm:$0xf]
      %v5003 = vld [vmem:[%s5 + $0x58] sm:$0xf]
      %v5004 = vld [vmem:[%s5 + $0x5c] sm:$0xf]
      %v5005 = vld [vmem:[%s5 + $0x60] sm:$0xf]
      %v5006 = vld [vmem:[%s5 + $0x64] sm:$0xf]
      %v5007 = vld [vmem:[%s5 + $0x68] sm:$0xf]
      %v5008 = vld [vmem:[%s5 + $0x6c] sm:$0xf]
      %v5009 = vld [vmem:[%s5 + $0x70] sm:$0xf]
      %v5010 = vld [vmem:[%s5 + $0x74] sm:$0xf]
      %v5011 = vld [vmem:[%s5 + $0x78] sm:$0xf]
      %v5012 = vld [vmem:[%s5 + $0x7c] sm:$0xf]
      %v5045 = vunpack.c.l.b16 %v4981
      %v5046 = vunpack.c.l.b16 %v4982
      %v5047 = vunpack.c.l.b16 %v4983
      %v5048 = vunpack.c.l.b16 %v4984
      %v5049 = vunpack.c.l.b16 %v4985
      %v5050 = vunpack.c.l.b16 %v4986
      %v5051 = vunpack.c.l.b16 %v4987
      %v5052 = vunpack.c.l.b16 %v4988
      %v5053 = vunpack.c.l.b16 %v4989
      %v5054 = vunpack.c.l.b16 %v4990
      %v5055 = vunpack.c.l.b16 %v4991
      %v5056 = vunpack.c.l.b16 %v4992
      %v5057 = vunpack.c.l.b16 %v4993
      %v5058 = vunpack.c.l.b16 %v4994
      %v5059 = vunpack.c.l.b16 %v4995
      %v5060 = vunpack.c.l.b16 %v4996
      %v5061 = vunpack.c.l.b16 %v4997
      %v5062 = vunpack.c.l.b16 %v4998
      %v5063 = vunpack.c.l.b16 %v4999
      %v5064 = vunpack.c.l.b16 %v5000
      %v5065 = vunpack.c.l.b16 %v5001
      %v5066 = vunpack.c.l.b16 %v5002
      %v5067 = vunpack.c.l.b16 %v5003
      %v5068 = vunpack.c.l.b16 %v5004
      %v5069 = vunpack.c.l.b16 %v5005
      %v5070 = vunpack.c.l.b16 %v5006
      %v5071 = vunpack.c.l.b16 %v5007
      %v5072 = vunpack.c.l.b16 %v5008
      %v5073 = vunpack.c.l.b16 %v5009
      %v5074 = vunpack.c.l.b16 %v5010
      %v5075 = vunpack.c.l.b16 %v5011
      %v5076 = vunpack.c.l.b16 %v5012
      %v5077 = vpack.c.b16 %v5046, %v5045
      %v5078 = vpack.c.b16 %v5048, %v5047
      %v5079 = vpack.c.b16 %v5050, %v5049
      %v5080 = vpack.c.b16 %v5052, %v5051
      %v5081 = vpack.c.b16 %v5054, %v5053
      %v5082 = vpack.c.b16 %v5056, %v5055
      %v5083 = vpack.c.b16 %v5058, %v5057
      %v5084 = vpack.c.b16 %v5060, %v5059
      %v5085 = vpack.c.b16 %v5062, %v5061
      %v5086 = vpack.c.b16 %v5064, %v5063
      %v5087 = vpack.c.b16 %v5066, %v5065
      %v5088 = vpack.c.b16 %v5068, %v5067
      %v5089 = vpack.c.b16 %v5070, %v5069
      %v5090 = vpack.c.b16 %v5072, %v5071
      %v5091 = vpack.c.b16 %v5074, %v5073
      %v5092 = vpack.c.b16 %v5076, %v5075
      %5109 = vmatprep.subr.bf16.mxu0 0
      %5110 = vmatpush1.bf16.msra.mxu0 %v5077
      %5111 = vmatprep.subr.bf16.mxu0 0
      %5112 = vmatpush1.bf16.msra.mxu0 %v5078
      %5113 = vmatprep.subr.bf16.mxu0 0
      %5114 = vmatpush1.bf16.msra.mxu0 %v5079
      %5115 = vmatprep.subr.bf16.mxu0 0
      %5116 = vmatpush1.bf16.msra.mxu0 %v5080
      %5117 = vmatprep.subr.bf16.mxu0 0
      %5118 = vmatpush1.bf16.msra.mxu0 %v5081
      %5119 = vmatprep.subr.bf16.mxu0 0
      %5120 = vmatpush1.bf16.msra.mxu0 %v5082
      %5121 = vmatprep.subr.bf16.mxu0 0
      %5122 = vmatpush1.bf16.msra.mxu0 %v5083
      %5123 = vmatprep.subr.bf16.mxu0 0
      %5124 = vmatpush1.bf16.msra.mxu0 %v5084
      %5125 = vmatprep.subr.bf16.mxu0 0
      %5126 = vmatpush1.bf16.msra.mxu0 %v5085
      %5127 = vmatprep.subr.bf16.mxu0 0
      %5128 = vmatpush1.bf16.msra.mxu0 %v5086
      %5129 = vmatprep.subr.bf16.mxu0 0
      %5130 = vmatpush1.bf16.msra.mxu0 %v5087
      %5131 = vmatprep.subr.bf16.mxu0 0
      %5132 = vmatpush1.bf16.msra.mxu0 %v5088
      %5133 = vmatprep.subr.bf16.mxu0 0
      %5134 = vmatpush1.bf16.msra.mxu0 %v5089
      %5135 = vmatprep.subr.bf16.mxu0 0
      %5136 = vmatpush1.bf16.msra.mxu0 %v5090
      %5137 = vmatprep.subr.bf16.mxu0 0
      %5138 = vmatpush1.bf16.msra.mxu0 %v5091
      %5139 = vmatprep.subr.bf16.mxu0 0
      %5140 = vmatpush1.bf16.msra.mxu0 %v5092
      %5141 = vmatprep.mubr.bf16.mxu0 %v4973
      %5142 = vmatmul.mubr.bf16.gmra.mrb[0].mxu0 %v4972
      %v5143 = vpop.f32.mrb[0].mxu0
      %v5144 = vadd.f32 0.0, %v5143
      %v5145 = vpop.f32.mrb[0].mxu0
      %v5146 = vpop.f32.mrb[0].mxu0
      %v5147 = vadd.f32 0.0, %v5146
      %v5148 = vpop.f32.mrb[0].mxu0
      %5149 = vdwg.mxu0
      %v5151 = vlaneseq
      %v5152 = vshrl.u32 %v5151, 7
      %v5153 = vsub.s32 0, %v5152
      %v5154 = vrot.slane %v4980, %v5153
      %v5156 = vadd.f32 %v5154, %v5144
      %v5157 = vadd.f32 %v5154, %v5147
      %s5158 = scalar_lea.vmem %s5, 128
      %v5159 = vld [vmem:[%s5158] sm:$0xf]
      %v5160 = vld [vmem:[%s5158 + $0x4] sm:$0xf]
      %v5161 = vld [vmem:[%s5158 + $0x8] sm:$0xf]
      %v5162 = vld [vmem:[%s5158 + $0xc] sm:$0xf]
      %v5163 = vld [vmem:[%s5158 + $0x10] sm:$0xf]
      %v5164 = vld [vmem:[%s5158 + $0x14] sm:$0xf]
      %v5165 = vld [vmem:[%s5158 + $0x18] sm:$0xf]
      %v5166 = vld [vmem:[%s5158 + $0x1c] sm:$0xf]
      %v5167 = vld [vmem:[%s5158 + $0x20] sm:$0xf]
      %v5168 = vld [vmem:[%s5158 + $0x24] sm:$0xf]
      %v5169 = vld [vmem:[%s5158 + $0x28] sm:$0xf]
      %v5170 = vld [vmem:[%s5158 + $0x2c] sm:$0xf]
      %v5171 = vld [vmem:[%s5158 + $0x30] sm:$0xf]
      %v5172 = vld [vmem:[%s5158 + $0x34] sm:$0xf]
      %v5173 = vld [vmem:[%s5158 + $0x38] sm:$0xf]
      %v5174 = vld [vmem:[%s5158 + $0x3c] sm:$0xf]
      %v5175 = vld [vmem:[%s5158 + $0x40] sm:$0xf]
      %v5176 = vld [vmem:[%s5158 + $0x44] sm:$0xf]
      %v5177 = vld [vmem:[%s5158 + $0x48] sm:$0xf]
      %v5178 = vld [vmem:[%s5158 + $0x4c] sm:$0xf]
      %v5179 = vld [vmem:[%s5158 + $0x50] sm:$0xf]
      %v5180 = vld [vmem:[%s5158 + $0x54] sm:$0xf]
      %v5181 = vld [vmem:[%s5158 + $0x58] sm:$0xf]
      %v5182 = vld [vmem:[%s5158 + $0x5c] sm:$0xf]
      %v5183 = vld [vmem:[%s5158 + $0x60] sm:$0xf]
      %v5184 = vld [vmem:[%s5158 + $0x64] sm:$0xf]
      %v5185 = vld [vmem:[%s5158 + $0x68] sm:$0xf]
      %v5186 = vld [vmem:[%s5158 + $0x6c] sm:$0xf]
      %v5187 = vld [vmem:[%s5158 + $0x70] sm:$0xf]
      %v5188 = vld [vmem:[%s5158 + $0x74] sm:$0xf]
      %v5189 = vld [vmem:[%s5158 + $0x78] sm:$0xf]
      %v5190 = vld [vmem:[%s5158 + $0x7c] sm:$0xf]
      %v5223 = vunpack.c.l.b16 %v5159
      %v5224 = vunpack.c.l.b16 %v5160
      %v5225 = vunpack.c.l.b16 %v5161
      %v5226 = vunpack.c.l.b16 %v5162
      %v5227 = vunpack.c.l.b16 %v5163
      %v5228 = vunpack.c.l.b16 %v5164
      %v5229 = vunpack.c.l.b16 %v5165
      %v5230 = vunpack.c.l.b16 %v5166
      %v5231 = vunpack.c.l.b16 %v5167
      %v5232 = vunpack.c.l.b16 %v5168
      %v5233 = vunpack.c.l.b16 %v5169
      %v5234 = vunpack.c.l.b16 %v5170
      %v5235 = vunpack.c.l.b16 %v5171
      %v5236 = vunpack.c.l.b16 %v5172
      %v5237 = vunpack.c.l.b16 %v5173
      %v5238 = vunpack.c.l.b16 %v5174
      %v5239 = vunpack.c.l.b16 %v5175
      %v5240 = vunpack.c.l.b16 %v5176
      %v5241 = vunpack.c.l.b16 %v5177
      %v5242 = vunpack.c.l.b16 %v5178
      %v5243 = vunpack.c.l.b16 %v5179
      %v5244 = vunpack.c.l.b16 %v5180
      %v5245 = vunpack.c.l.b16 %v5181
      %v5246 = vunpack.c.l.b16 %v5182
      %v5247 = vunpack.c.l.b16 %v5183
      %v5248 = vunpack.c.l.b16 %v5184
      %v5249 = vunpack.c.l.b16 %v5185
      %v5250 = vunpack.c.l.b16 %v5186
      %v5251 = vunpack.c.l.b16 %v5187
      %v5252 = vunpack.c.l.b16 %v5188
      %v5253 = vunpack.c.l.b16 %v5189
      %v5254 = vunpack.c.l.b16 %v5190
      %v5255 = vpack.c.b16 %v5224, %v5223
      %v5256 = vpack.c.b16 %v5226, %v5225
      %v5257 = vpack.c.b16 %v5228, %v5227
      %v5258 = vpack.c.b16 %v5230, %v5229
      %v5259 = vpack.c.b16 %v5232, %v5231
      %v5260 = vpack.c.b16 %v5234, %v5233
      %v5261 = vpack.c.b16 %v5236, %v5235
      %v5262 = vpack.c.b16 %v5238, %v5237
      %v5263 = vpack.c.b16 %v5240, %v5239
      %v5264 = vpack.c.b16 %v5242, %v5241
      %v5265 = vpack.c.b16 %v5244, %v5243
      %v5266 = vpack.c.b16 %v5246, %v5245
      %v5267 = vpack.c.b16 %v5248, %v5247
      %v5268 = vpack.c.b16 %v5250, %v5249
      %v5269 = vpack.c.b16 %v5252, %v5251
      %v5270 = vpack.c.b16 %v5254, %v5253
      %5287 = vmatprep.subr.bf16.mxu0 0
      %5288 = vmatpush1.bf16.msra.mxu0 %v5255
      %5289 = vmatprep.subr.bf16.mxu0 0
      %5290 = vmatpush1.bf16.msra.mxu0 %v5256
      %5291 = vmatprep.subr.bf16.mxu0 0
      %5292 = vmatpush1.bf16.msra.mxu0 %v5257
      %5293 = vmatprep.subr.bf16.mxu0 0
      %5294 = vmatpush1.bf16.msra.mxu0 %v5258
      %5295 = vmatprep.subr.bf16.mxu0 0
      %5296 = vmatpush1.bf16.msra.mxu0 %v5259
      %5297 = vmatprep.subr.bf16.mxu0 0
      %5298 = vmatpush1.bf16.msra.mxu0 %v5260
      %5299 = vmatprep.subr.bf16.mxu0 0
      %5300 = vmatpush1.bf16.msra.mxu0 %v5261
      %5301 = vmatprep.subr.bf16.mxu0 0
      %5302 = vmatpush1.bf16.msra.mxu0 %v5262
      %5303 = vmatprep.subr.bf16.mxu0 0
      %5304 = vmatpush1.bf16.msra.mxu0 %v5263
      %5305 = vmatprep.subr.bf16.mxu0 0
      %5306 = vmatpush1.bf16.msra.mxu0 %v5264
      %5307 = vmatprep.subr.bf16.mxu0 0
      %5308 = vmatpush1.bf16.msra.mxu0 %v5265
      %5309 = vmatprep.subr.bf16.mxu0 0
      %5310 = vmatpush1.bf16.msra.mxu0 %v5266
      %5311 = vmatprep.subr.bf16.mxu0 0
      %5312 = vmatpush1.bf16.msra.mxu0 %v5267
      %5313 = vmatprep.subr.bf16.mxu0 0
      %5314 = vmatpush1.bf16.msra.mxu0 %v5268
      %5315 = vmatprep.subr.bf16.mxu0 0
      %5316 = vmatpush1.bf16.msra.mxu0 %v5269
      %5317 = vmatprep.subr.bf16.mxu0 0
      %5318 = vmatpush1.bf16.msra.mxu0 %v5270
      %5319 = vmatprep.mubr.bf16.mxu0 %v4975
      %5320 = vmatmul.mubr.bf16.gmra.mrb[0].mxu0 %v4974
      %v5321 = vpop.f32.mrb[0].mxu0
      %v5322 = vadd.f32 0.0, %v5321
      %v5323 = vpop.f32.mrb[0].mxu0
      %v5324 = vpop.f32.mrb[0].mxu0
      %v5325 = vadd.f32 0.0, %v5324
      %v5326 = vpop.f32.mrb[0].mxu0
      %5327 = vdwg.mxu0
      %v5328 = vadd.f32 %v5156, %v5322
      %v5329 = vadd.f32 %v5157, %v5325
      %s5330 = scalar_lea.vmem %s5, 256
      %v5331 = vld [vmem:[%s5330] sm:$0xf]
      %v5332 = vld [vmem:[%s5330 + $0x4] sm:$0xf]
      %v5333 = vld [vmem:[%s5330 + $0x8] sm:$0xf]
      %v5334 = vld [vmem:[%s5330 + $0xc] sm:$0xf]
      %v5335 = vld [vmem:[%s5330 + $0x10] sm:$0xf]
      %v5336 = vld [vmem:[%s5330 + $0x14] sm:$0xf]
      %v5337 = vld [vmem:[%s5330 + $0x18] sm:$0xf]
      %v5338 = vld [vmem:[%s5330 + $0x1c] sm:$0xf]
      %v5339 = vld [vmem:[%s5330 + $0x20] sm:$0xf]
      %v5340 = vld [vmem:[%s5330 + $0x24] sm:$0xf]
      %v5341 = vld [vmem:[%s5330 + $0x28] sm:$0xf]
      %v5342 = vld [vmem:[%s5330 + $0x2c] sm:$0xf]
      %v5343 = vld [vmem:[%s5330 + $0x30] sm:$0xf]
      %v5344 = vld [vmem:[%s5330 + $0x34] sm:$0xf]
      %v5345 = vld [vmem:[%s5330 + $0x38] sm:$0xf]
      %v5346 = vld [vmem:[%s5330 + $0x3c] sm:$0xf]
      %v5347 = vld [vmem:[%s5330 + $0x40] sm:$0xf]
      %v5348 = vld [vmem:[%s5330 + $0x44] sm:$0xf]
      %v5349 = vld [vmem:[%s5330 + $0x48] sm:$0xf]
      %v5350 = vld [vmem:[%s5330 + $0x4c] sm:$0xf]
      %v5351 = vld [vmem:[%s5330 + $0x50] sm:$0xf]
      %v5352 = vld [vmem:[%s5330 + $0x54] sm:$0xf]
      %v5353 = vld [vmem:[%s5330 + $0x58] sm:$0xf]
      %v5354 = vld [vmem:[%s5330 + $0x5c] sm:$0xf]
      %v5355 = vld [vmem:[%s5330 + $0x60] sm:$0xf]
      %v5356 = vld [vmem:[%s5330 + $0x64] sm:$0xf]
      %v5357 = vld [vmem:[%s5330 + $0x68] sm:$0xf]
      %v5358 = vld [vmem:[%s5330 + $0x6c] sm:$0xf]
      %v5359 = vld [vmem:[%s5330 + $0x70] sm:$0xf]
      %v5360 = vld [vmem:[%s5330 + $0x74] sm:$0xf]
      %v5361 = vld [vmem:[%s5330 + $0x78] sm:$0xf]
      %v5362 = vld [vmem:[%s5330 + $0x7c] sm:$0xf]
      %v5395 = vunpack.c.l.b16 %v5331
      %v5396 = vunpack.c.l.b16 %v5332
      %v5397 = vunpack.c.l.b16 %v5333
      %v5398 = vunpack.c.l.b16 %v5334
      %v5399 = vunpack.c.l.b16 %v5335
      %v5400 = vunpack.c.l.b16 %v5336
      %v5401 = vunpack.c.l.b16 %v5337
      %v5402 = vunpack.c.l.b16 %v5338
      %v5403 = vunpack.c.l.b16 %v5339
      %v5404 = vunpack.c.l.b16 %v5340
      %v5405 = vunpack.c.l.b16 %v5341
      %v5406 = vunpack.c.l.b16 %v5342
      %v5407 = vunpack.c.l.b16 %v5343
      %v5408 = vunpack.c.l.b16 %v5344
      %v5409 = vunpack.c.l.b16 %v5345
      %v5410 = vunpack.c.l.b16 %v5346
      %v5411 = vunpack.c.l.b16 %v5347
      %v5412 = vunpack.c.l.b16 %v5348
      %v5413 = vunpack.c.l.b16 %v5349
      %v5414 = vunpack.c.l.b16 %v5350
      %v5415 = vunpack.c.l.b16 %v5351
      %v5416 = vunpack.c.l.b16 %v5352
      %v5417 = vunpack.c.l.b16 %v5353
      %v5418 = vunpack.c.l.b16 %v5354
      %v5419 = vunpack.c.l.b16 %v5355
      %v5420 = vunpack.c.l.b16 %v5356
      %v5421 = vunpack.c.l.b16 %v5357
      %v5422 = vunpack.c.l.b16 %v5358
      %v5423 = vunpack.c.l.b16 %v5359
      %v5424 = vunpack.c.l.b16 %v5360
      %v5425 = vunpack.c.l.b16 %v5361
      %v5426 = vunpack.c.l.b16 %v5362
      %v5427 = vpack.c.b16 %v5396, %v5395
      %v5428 = vpack.c.b16 %v5398, %v5397
      %v5429 = vpack.c.b16 %v5400, %v5399
      %v5430 = vpack.c.b16 %v5402, %v5401
      %v5431 = vpack.c.b16 %v5404, %v5403
      %v5432 = vpack.c.b16 %v5406, %v5405
      %v5433 = vpack.c.b16 %v5408, %v5407
      %v5434 = vpack.c.b16 %v5410, %v5409
      %v5435 = vpack.c.b16 %v5412, %v5411
      %v5436 = vpack.c.b16 %v5414, %v5413
      %v5437 = vpack.c.b16 %v5416, %v5415
      %v5438 = vpack.c.b16 %v5418, %v5417
      %v5439 = vpack.c.b16 %v5420, %v5419
      %v5440 = vpack.c.b16 %v5422, %v5421
      %v5441 = vpack.c.b16 %v5424, %v5423
      %v5442 = vpack.c.b16 %v5426, %v5425
      %5459 = vmatprep.subr.bf16.mxu0 0
      %5460 = vmatpush1.bf16.msra.mxu0 %v5427
      %5461 = vmatprep.subr.bf16.mxu0 0
      %5462 = vmatpush1.bf16.msra.mxu0 %v5428
      %5463 = vmatprep.subr.bf16.mxu0 0
      %5464 = vmatpush1.bf16.msra.mxu0 %v5429
      %5465 = vmatprep.subr.bf16.mxu0 0
      %5466 = vmatpush1.bf16.msra.mxu0 %v5430
      %5467 = vmatprep.subr.bf16.mxu0 0
      %5468 = vmatpush1.bf16.msra.mxu0 %v5431
      %5469 = vmatprep.subr.bf16.mxu0 0
      %5470 = vmatpush1.bf16.msra.mxu0 %v5432
      %5471 = vmatprep.subr.bf16.mxu0 0
      %5472 = vmatpush1.bf16.msra.mxu0 %v5433
      %5473 = vmatprep.subr.bf16.mxu0 0
      %5474 = vmatpush1.bf16.msra.mxu0 %v5434
      %5475 = vmatprep.subr.bf16.mxu0 0
      %5476 = vmatpush1.bf16.msra.mxu0 %v5435
      %5477 = vmatprep.subr.bf16.mxu0 0
      %5478 = vmatpush1.bf16.msra.mxu0 %v5436
      %5479 = vmatprep.subr.bf16.mxu0 0
      %5480 = vmatpush1.bf16.msra.mxu0 %v5437
      %5481 = vmatprep.subr.bf16.mxu0 0
      %5482 = vmatpush1.bf16.msra.mxu0 %v5438
      %5483 = vmatprep.subr.bf16.mxu0 0
      %5484 = vmatpush1.bf16.msra.mxu0 %v5439
      %5485 = vmatprep.subr.bf16.mxu0 0
      %5486 = vmatpush1.bf16.msra.mxu0 %v5440
      %5487 = vmatprep.subr.bf16.mxu0 0
      %5488 = vmatpush1.bf16.msra.mxu0 %v5441
      %5489 = vmatprep.subr.bf16.mxu0 0
      %5490 = vmatpush1.bf16.msra.mxu0 %v5442
      %5491 = vmatprep.mubr.bf16.mxu0 %v4977
      %5492 = vmatmul.mubr.bf16.gmra.mrb[0].mxu0 %v4976
      %v5493 = vpop.f32.mrb[0].mxu0
      %v5494 = vadd.f32 0.0, %v5493
      %v5495 = vpop.f32.mrb[0].mxu0
      %v5496 = vpop.f32.mrb[0].mxu0
      %v5497 = vadd.f32 0.0, %v5496
      %v5498 = vpop.f32.mrb[0].mxu0
      %5499 = vdwg.mxu0
      %v5500 = vadd.f32 %v5328, %v5494
      %v5501 = vadd.f32 %v5329, %v5497
      %s5502 = scalar_lea.vmem %s5, 384
      %v5503 = vld [vmem:[%s5502] sm:$0xf]
      %v5504 = vld [vmem:[%s5502 + $0x4] sm:$0xf]
      %v5505 = vld [vmem:[%s5502 + $0x8] sm:$0xf]
      %v5506 = vld [vmem:[%s5502 + $0xc] sm:$0xf]
      %v5507 = vld [vmem:[%s5502 + $0x10] sm:$0xf]
      %v5508 = vld [vmem:[%s5502 + $0x14] sm:$0xf]
      %v5509 = vld [vmem:[%s5502 + $0x18] sm:$0xf]
      %v5510 = vld [vmem:[%s5502 + $0x1c] sm:$0xf]
      %v5511 = vld [vmem:[%s5502 + $0x20] sm:$0xf]
      %v5512 = vld [vmem:[%s5502 + $0x24] sm:$0xf]
      %v5513 = vld [vmem:[%s5502 + $0x28] sm:$0xf]
      %v5514 = vld [vmem:[%s5502 + $0x2c] sm:$0xf]
      %v5515 = vld [vmem:[%s5502 + $0x30] sm:$0xf]
      %v5516 = vld [vmem:[%s5502 + $0x34] sm:$0xf]
      %v5517 = vld [vmem:[%s5502 + $0x38] sm:$0xf]
      %v5518 = vld [vmem:[%s5502 + $0x3c] sm:$0xf]
      %v5519 = vld [vmem:[%s5502 + $0x40] sm:$0xf]
      %v5520 = vld [vmem:[%s5502 + $0x44] sm:$0xf]
      %v5521 = vld [vmem:[%s5502 + $0x48] sm:$0xf]
      %v5522 = vld [vmem:[%s5502 + $0x4c] sm:$0xf]
      %v5523 = vld [vmem:[%s5502 + $0x50] sm:$0xf]
      %v5524 = vld [vmem:[%s5502 + $0x54] sm:$0xf]
      %v5525 = vld [vmem:[%s5502 + $0x58] sm:$0xf]
      %v5526 = vld [vmem:[%s5502 + $0x5c] sm:$0xf]
      %v5527 = vld [vmem:[%s5502 + $0x60] sm:$0xf]
      %v5528 = vld [vmem:[%s5502 + $0x64] sm:$0xf]
      %v5529 = vld [vmem:[%s5502 + $0x68] sm:$0xf]
      %v5530 = vld [vmem:[%s5502 + $0x6c] sm:$0xf]
      %v5531 = vld [vmem:[%s5502 + $0x70] sm:$0xf]
      %v5532 = vld [vmem:[%s5502 + $0x74] sm:$0xf]
      %v5533 = vld [vmem:[%s5502 + $0x78] sm:$0xf]
      %v5534 = vld [vmem:[%s5502 + $0x7c] sm:$0xf]
      %v5567 = vunpack.c.l.b16 %v5503
      %v5568 = vunpack.c.l.b16 %v5504
      %v5569 = vunpack.c.l.b16 %v5505
      %v5570 = vunpack.c.l.b16 %v5506
      %v5571 = vunpack.c.l.b16 %v5507
      %v5572 = vunpack.c.l.b16 %v5508
      %v5573 = vunpack.c.l.b16 %v5509
      %v5574 = vunpack.c.l.b16 %v5510
      %v5575 = vunpack.c.l.b16 %v5511
      %v5576 = vunpack.c.l.b16 %v5512
      %v5577 = vunpack.c.l.b16 %v5513
      %v5578 = vunpack.c.l.b16 %v5514
      %v5579 = vunpack.c.l.b16 %v5515
      %v5580 = vunpack.c.l.b16 %v5516
      %v5581 = vunpack.c.l.b16 %v5517
      %v5582 = vunpack.c.l.b16 %v5518
      %v5583 = vunpack.c.l.b16 %v5519
      %v5584 = vunpack.c.l.b16 %v5520
      %v5585 = vunpack.c.l.b16 %v5521
      %v5586 = vunpack.c.l.b16 %v5522
      %v5587 = vunpack.c.l.b16 %v5523
      %v5588 = vunpack.c.l.b16 %v5524
      %v5589 = vunpack.c.l.b16 %v5525
      %v5590 = vunpack.c.l.b16 %v5526
      %v5591 = vunpack.c.l.b16 %v5527
      %v5592 = vunpack.c.l.b16 %v5528
      %v5593 = vunpack.c.l.b16 %v5529
      %v5594 = vunpack.c.l.b16 %v5530
      %v5595 = vunpack.c.l.b16 %v5531
      %v5596 = vunpack.c.l.b16 %v5532
      %v5597 = vunpack.c.l.b16 %v5533
      %v5598 = vunpack.c.l.b16 %v5534
      %v5599 = vpack.c.b16 %v5568, %v5567
      %v5600 = vpack.c.b16 %v5570, %v5569
      %v5601 = vpack.c.b16 %v5572, %v5571
      %v5602 = vpack.c.b16 %v5574, %v5573
      %v5603 = vpack.c.b16 %v5576, %v5575
      %v5604 = vpack.c.b16 %v5578, %v5577
      %v5605 = vpack.c.b16 %v5580, %v5579
      %v5606 = vpack.c.b16 %v5582, %v5581
      %v5607 = vpack.c.b16 %v5584, %v5583
      %v5608 = vpack.c.b16 %v5586, %v5585
      %v5609 = vpack.c.b16 %v5588, %v5587
      %v5610 = vpack.c.b16 %v5590, %v5589
      %v5611 = vpack.c.b16 %v5592, %v5591
      %v5612 = vpack.c.b16 %v5594, %v5593
      %v5613 = vpack.c.b16 %v5596, %v5595
      %v5614 = vpack.c.b16 %v5598, %v5597
      %5631 = vmatprep.subr.bf16.mxu0 0
      %5632 = vmatpush1.bf16.msra.mxu0 %v5599
      %5633 = vmatprep.subr.bf16.mxu0 0
      %5634 = vmatpush1.bf16.msra.mxu0 %v5600
      %5635 = vmatprep.subr.bf16.mxu0 0
      %5636 = vmatpush1.bf16.msra.mxu0 %v5601
      %5637 = vmatprep.subr.bf16.mxu0 0
      %5638 = vmatpush1.bf16.msra.mxu0 %v5602
      %5639 = vmatprep.subr.bf16.mxu0 0
      %5640 = vmatpush1.bf16.msra.mxu0 %v5603
      %5641 = vmatprep.subr.bf16.mxu0 0
      %5642 = vmatpush1.bf16.msra.mxu0 %v5604
      %5643 = vmatprep.subr.bf16.mxu0 0
      %5644 = vmatpush1.bf16.msra.mxu0 %v5605
      %5645 = vmatprep.subr.bf16.mxu0 0
      %5646 = vmatpush1.bf16.msra.mxu0 %v5606
      %5647 = vmatprep.subr.bf16.mxu0 0
      %5648 = vmatpush1.bf16.msra.mxu0 %v5607
      %5649 = vmatprep.subr.bf16.mxu0 0
      %5650 = vmatpush1.bf16.msra.mxu0 %v5608
      %5651 = vmatprep.subr.bf16.mxu0 0
      %5652 = vmatpush1.bf16.msra.mxu0 %v5609
      %5653 = vmatprep.subr.bf16.mxu0 0
      %5654 = vmatpush1.bf16.msra.mxu0 %v5610
      %5655 = vmatprep.subr.bf16.mxu0 0
      %5656 = vmatpush1.bf16.msra.mxu0 %v5611
      %5657 = vmatprep.subr.bf16.mxu0 0
      %5658 = vmatpush1.bf16.msra.mxu0 %v5612
      %5659 = vmatprep.subr.bf16.mxu0 0
      %5660 = vmatpush1.bf16.msra.mxu0 %v5613
      %5661 = vmatprep.subr.bf16.mxu0 0
      %5662 = vmatpush1.bf16.msra.mxu0 %v5614
      %5663 = vmatprep.mubr.bf16.mxu0 %v4979
      %5664 = vmatmul.mubr.bf16.gmra.mrb[0].mxu0 %v4978
      %v5665 = vpop.f32.mrb[0].mxu0
      %v5666 = vadd.f32 0.0, %v5665
      %v5667 = vpop.f32.mrb[0].mxu0
      %v5668 = vpop.f32.mrb[0].mxu0
      %v5669 = vadd.f32 0.0, %v5668
      %v5670 = vpop.f32.mrb[0].mxu0
      %5671 = vdwg.mxu0
      %v5672 = vadd.f32 %v5500, %v5666
      %v5673 = vadd.f32 %v5501, %v5669
      %5674 = vst [vmem:[%s283] sm:$0xff] %v5672
      %5675 = vst [vmem:[%s283 + $0x8] sm:$0xff] %v5673
      %s5676 = smul.u32 2, %s18
      %p5677 = scmp.lt.s32.totalorder %s5676, 3
      %s5678 = scalar_select %p5677, %s5676, 3
      %s5679 = smul.addr %s5678, 8
      %s5680 = scalar_lea.vmem %s7, %s5679
      // Predicated region
      $region49: #{lenet_forward.1} parent=47 // pred_check
        %p5681 = pneg %p188
      $region50: #{lenet_forward.1} parent=47 // pred_check_branch
        %5683 = sbr.rel (%p5681) target = $region52
      $region51: #{lenet_forward.1} parent=47 // pred_region
        %s5684 = smul.u32 2, %s18
      $region52: #{lenet_forward.1} parent=47 // pred_fallthru
        _
    $region48: #{lenet_forward.1} parent=5 // pred_fallthru
      _
    %p5685 = scmp.le.s32.totalorder 2, %s13
    // Predicated region
    $region53: #{lenet_forward.1} parent=5 // pred_check
      %p5686 = pneg %p5685
    $region54: #{lenet_forward.1} parent=5 // pred_check_branch
      %5688 = sbr.rel (%p5686) target = $region56
    $region55: #{lenet_forward.1} parent=5 // pred_region
      %s5689 = ssub.s32 %s13, 2
      // Predicated region
      $region57: #{lenet_forward.1} parent=55 // pred_check
        %p5690 = pneg %p194
      $region58: #{lenet_forward.1} parent=55 // pred_check_branch
        %5692 = sbr.rel (%p5690) target = $region60
      $region59: #{lenet_forward.1} parent=55 // pred_region
        %s5693 = smul.u32 2, %s19
        %p5694 = scmp.lt.s32.totalorder %s5693, 3
        %s5695 = scalar_select %p5694, %s5693, 3
        %s5696 = smul.addr %s5695, 8
        %s5697 = scalar_lea.vmem %s7, %s5696
      $region60: #{lenet_forward.1} parent=55 // pred_fallthru
        _
    $region56: #{lenet_forward.1} parent=5 // pred_fallthru
      _
  $region6: #{lenet_forward.1} parent=0 // loop_footer
    %s17 = sadd.s32 1, %s13
  $region7: #{lenet_forward.1} parent=0 // loop_footer_branch
    %12 = sbr.rel target = $region3
  $region8: #{lenet_forward.1} parent=0 // loop_exit
    _

</llo_original>
